<compile_context>
chip_gen: v6e
topology: v6e:2x2x1
jax: 0.10.0
libtpu: 0.0.40
codegen_flags: <defaults>
</compile_context>

<pallas_src>
import functools

import jax
import jax.numpy as jnp
from jax import lax
from jax.experimental import pallas as pl
from jax.experimental.pallas import tpu as pltpu

_EPS = 1e-12  # matches torch.nn.functional.normalize default eps


def _round_up(x, m):
    return (x + m - 1) // m * m


def _inv_norm(x):
    """1 / max(||row||, eps) as rsqrt(max(sum(x^2), eps^2)); f32, keepdims."""
    ss = jnp.sum(x * x, axis=1, keepdims=True)
    return lax.rsqrt(jnp.maximum(ss, _EPS * _EPS))


def _cosine_kernel(q_ref, inv_q_ref, db_ref, out_ref, inv_db_ref):
    """One (tn, tm) tile of normalize(q) @ normalize(db).T.

    Grid is (db_tiles, query_tiles). The db tile stays resident across the inner
    (query) axis, so its inverse row-norms are computed once per db tile (inner
    step 0) and cached in the inv_db VMEM scratch -> db is read from HBM exactly
    once and never re-reduced in the wrapper.
    """

    @pl.when(pl.program_id(1) == 0)
    def _():
        db = db_ref[...].astype(jnp.float32)
        inv_db_ref[...] = lax.rsqrt(
            jnp.maximum(jnp.sum(db * db, axis=1, keepdims=True), _EPS * _EPS)
        )

    mm_dtype = db_ref.dtype  # bf16 inputs stay bf16 on the MXU; f32 accumulation below
    q_n = (q_ref[...].astype(jnp.float32) * inv_q_ref[...]).astype(mm_dtype)
    db_n = (db_ref[...].astype(jnp.float32) * inv_db_ref[...]).astype(mm_dtype)

    # Contract the feature dim of BOTH operands (q @ db.T) -> no transposed db tile.
    sims = lax.dot_general(
        q_n,
        db_n,
        dimension_numbers=(((1,), (1,)), ((), ())),
        preferred_element_type=jnp.float32,
    )
    out_ref[...] = sims.astype(out_ref.dtype)


def _vmem_need_bytes(tn, tm, d, in_bytes, out_bytes):
    # double-buffered q/db/inv_q inputs + double-buffered output tile
    io = 2 * (tn * d + tm * d) * in_bytes + 2 * tn * 4 + 2 * tn * tm * out_bytes
    scratch = tm * 4                                     # inv_db cache
    temps = (tn + tm) * d * 4 + tn * tm * 4              # normalized operands + f32 sims
    return io + scratch + temps


def cosine_similarity_matrix(q, db, *, tn=256, tm=512, sim_dtype=jnp.bfloat16):
    """normalize(q, dim=1) @ normalize(db, dim=1).T via a tiled Pallas kernel."""
    n, d = q.shape
    m, d2 = db.shape
    assert d == d2, "embedding dims must match"
    if q.dtype != db.dtype:
        q = q.astype(db.dtype)  # only the small operand is ever cast/copied

    in_b = jnp.dtype(db.dtype).itemsize
    out_b = jnp.dtype(sim_dtype).itemsize

    # Clamp tiles for tiny problems while keeping (8, 128) block alignment.
    tn = max(8, min(tn, _round_up(n, 8)))
    tm = max(128, min(tm, _round_up(m, 128)))

    # Keep the working set under a conservative budget (v7x has only 64 MiB VMEM).
    budget = 48 << 20
    while _vmem_need_bytes(tn, tm, d, in_b, out_b) > budget and tm > 128:
        tm = max(128, (tm // 2) // 128 * 128)
    while _vmem_need_bytes(tn, tm, d, in_b, out_b) > budget and tn > 8:
        tn = max(8, (tn // 2) // 8 * 8)
    # TODO(synk): for very large D (>~16k), add a K (feature) grid axis with an f32
    #             accumulator instead of full-D tiles (full-D tiles won't fit v7x VMEM).
    vmem_limit = int(
        min(max(_vmem_need_bytes(tn, tm, d, in_b, out_b) + (8 << 20), 32 << 20), 64 << 20)
    )

    # q is the small operand: one cheap f32 pass for its inverse norms.
    inv_q = _inv_norm(q.astype(jnp.float32))  # (n, 1) f32

    # db axis OUTER (slowest): the big db operand is DMA'd from HBM exactly once.
    # TODO(synk): if N ever grows to the same order as M, flip which operand is the
    #             outer (visited-once) axis to avoid re-reading the larger one.
    grid = (pl.cdiv(m, tm), pl.cdiv(n, tn))

    return pl.pallas_call(
        _cosine_kernel,
        out_shape=jax.ShapeDtypeStruct((n, m), sim_dtype),
        grid=grid,
        in_specs=[
            pl.BlockSpec((tn, d), lambda j, i: (i, 0)),   # query tile (re-read per j)
            pl.BlockSpec((tn, 1), lambda j, i: (i, 0)),   # 1/||q|| column
            pl.BlockSpec((tm, d), lambda j, i: (j, 0)),   # db tile (streamed once)
        ],
        out_specs=pl.BlockSpec((tn, tm), lambda j, i: (i, j)),
        scratch_shapes=[pltpu.VMEM((tm, 1), jnp.float32)],  # cached 1/||db|| per db tile
        compiler_params=pltpu.CompilerParams(
            # Outer (db) axis parallel for megacore; inner (query) axis must stay
            # "arbitrary" so inner step 0 (which fills the inv_db cache) always runs
            # on whichever core owns a given db tile.
            dimension_semantics=("parallel", "arbitrary"),
            vmem_limit_bytes=vmem_limit,
        ),
    )(q, inv_q, db)


@functools.partial(jax.jit, static_argnames=("k", "tn", "tm"))
def vector_similarity_forward(vectors, db_vectors, k=20, tn=256, tm=512):
    """JAX equivalent of TorchVectorSimilarity.forward.

    Returns:
      indices: (N, k) indices of the top-k most similar db vectors.
      sims_first_k: (N, k) the FIRST k columns of the similarity matrix, in f32
                    (mirrors the original module, which returns similarities[:, :k]).
    """
    sims = cosine_similarity_matrix(vectors, db_vectors, tn=tn, tm=tm)
    # TODO(synk): torch.topk returns int64 indices; lax.top_k yields int32.
    _, indices = lax.top_k(sims, k)

    # similarities[:, :k] returned in exact FP32 (matching the torch module's FP32
    # output) via a tiny (N, k) matmul against the first k db rows; the bf16 kernel
    # matrix is only used for the (much larger) ranking problem.
    q32 = vectors.astype(jnp.float32)
    db_k = db_vectors[:k].astype(jnp.float32)
    sims_first_k = jnp.dot(
        q32 * _inv_norm(q32),
        (db_k * _inv_norm(db_k)).T,
        precision=lax.Precision.HIGHEST,
    )
    return indices, sims_first_k


if __name__ == "__main__":
    key = jax.random.PRNGKey(0)
    k_q, k_db = jax.random.split(key)

    # Small, deliberately non-tile-aligned shapes: exercises the pad-free
    # partial-block path on both the query and db axes.
    N, M, D, K = 20, 520, 512, 20
    queries = jax.random.normal(k_q, (N, D), dtype=jnp.float32)
    db_vectors = jax.random.normal(k_db, (M, D), dtype=jnp.float32)

    # Pure-JAX reference (torch semantics: x / max(||x||, eps)).
    qn = queries / jnp.maximum(jnp.linalg.norm(queries, axis=1, keepdims=True), _EPS)
    dbn = db_vectors / jnp.maximum(
        jnp.linalg.norm(db_vectors, axis=1, keepdims=True), _EPS)
    sims_ref = jnp.dot(qn, dbn.T, precision=lax.Precision.HIGHEST)
    ref_vals, _ = lax.top_k(sims_ref, K)

    # Run once with the performance-default tiles and once with tiny tiles so the
    # multi-tile grid, the inv_db cache reuse and the edge-block masking all get
    # exercised at demo scale.
    for tiles in ({}, {"tn": 8, "tm": 128}):
        indices, sims_k = vector_similarity_forward(queries, db_vectors, k=K, **tiles)
        jax.block_until_ready((indices, sims_k))

        assert indices.shape == (N, K) and sims_k.shape == (N, K)
        assert jnp.allclose(sims_k, sims_ref[:, :K], atol=1e-4), "similarity mismatch"

        # Check retrieved neighbours by value (robust to ties / bf16 rounding: a rank
        # swap can only happen between values within ~one bf16 ulp, i.e. < 4e-3).
        got_vals = jnp.take_along_axis(sims_ref, indices, axis=1)
        assert jnp.allclose(got_vals, ref_vals, atol=2e-2), "top-k mismatch"

    print("KERNEL_OK")
</pallas_src>

<mosaic_0001>
module attributes {stable_mosaic.version = 11 : i64} {
  func.func @_cosine_kernel(%arg0: i32, %arg1: i32, %arg2: memref<24x512xf32, #tpu.memory_space<vmem>>, %arg3: memref<24x1xf32, #tpu.memory_space<vmem>>, %arg4: memref<512x512xf32, #tpu.memory_space<vmem>>, %arg5: memref<24x512xbf16, #tpu.memory_space<vmem>>, %arg6: memref<512x1xf32, #tpu.memory_space<vmem>>) attributes {dimension_semantics = [#tpu.dimension_semantics<parallel>, #tpu.dimension_semantics<arbitrary>], iteration_bounds = array<i64: 2, 1>, scalar_prefetch = 0 : i64, scratch_operands = 1 : i64, tpu.core_type = #tpu.core_type<tc>, window_params = [{transform_indices = @transform_0, window_bounds = array<i64: 24, 512>}, {transform_indices = @transform_1, window_bounds = array<i64: 24, 1>}, {transform_indices = @transform_2, window_bounds = array<i64: 512, 512>}, {transform_indices = @transform_3, window_bounds = array<i64: 24, 512>}]} {
    %c0_i32 = arith.constant 0 : i32
    %0 = arith.cmpi eq, %arg1, %c0_i32 : i32
    %1 = arith.extui %0 : i1 to i32
    %c0_i32_0 = arith.constant 0 : i32
    %2 = arith.cmpi ne, %1, %c0_i32_0 : i32
    scf.if %2 {
      %c0_10 = arith.constant 0 : index
      %c0_11 = arith.constant 0 : index
      %14 = vector.load %arg4[%c0_10, %c0_11] : memref<512x512xf32, #tpu.memory_space<vmem>>, vector<512x512xf32>
      %15 = arith.mulf %14, %14 : vector<512x512xf32>
      %cst_12 = arith.constant dense<0.000000e+00> : vector<512xf32>
      %16 = vector.multi_reduction <add>, %15, %cst_12 [1] : vector<512x512xf32> to vector<512xf32>
      %17 = vector.shape_cast %16 : vector<512xf32> to vector<512x1xf32>
      %cst_13 = arith.constant 1.000000e-24 : f32
      %18 = vector.broadcast %cst_13 : f32 to vector<512x1xf32>
      %19 = arith.maximumf %17, %18 : vector<512x1xf32>
      %20 = math.rsqrt %19 : vector<512x1xf32>
      %c0_14 = arith.constant 0 : index
      %c0_15 = arith.constant 0 : index
      %21 = vector.load %arg6[%c0_14, %c0_15] : memref<512x1xf32, #tpu.memory_space<vmem>>, vector<512x1xf32>
      tpu.vector_store %arg6[%c0_14, %c0_15], %20 {strides = array<i32>} : memref<512x1xf32, #tpu.memory_space<vmem>>, vector<512x1xf32>,
    } else {
    }
    %c0 = arith.constant 0 : index
    %c0_1 = arith.constant 0 : index
    %3 = vector.load %arg2[%c0, %c0_1] : memref<24x512xf32, #tpu.memory_space<vmem>>, vector<24x512xf32>
    %c0_2 = arith.constant 0 : index
    %c0_3 = arith.constant 0 : index
    %4 = vector.load %arg3[%c0_2, %c0_3] : memref<24x1xf32, #tpu.memory_space<vmem>>, vector<24x1xf32>
    %5 = vector.broadcast %4 : vector<24x1xf32> to vector<24x512xf32>
    %6 = arith.mulf %3, %5 : vector<24x512xf32>
    %c0_4 = arith.constant 0 : index
    %c0_5 = arith.constant 0 : index
    %7 = vector.load %arg4[%c0_4, %c0_5] : memref<512x512xf32, #tpu.memory_space<vmem>>, vector<512x512xf32>
    %c0_6 = arith.constant 0 : index
    %c0_7 = arith.constant 0 : index
    %8 = vector.load %arg6[%c0_6, %c0_7] : memref<512x1xf32, #tpu.memory_space<vmem>>, vector<512x1xf32>
    %9 = vector.broadcast %8 : vector<512x1xf32> to vector<512x512xf32>
    %10 = arith.mulf %7, %9 : vector<512x512xf32>
    %cst = arith.constant dense<0.000000e+00> : vector<24x512xf32>
    %11 = tpu.matmul %6, %10, %cst {dimension_numbers = #tpu.dot_dimension_numbers<[1], [1], [0], [0], [0, 0, 1, 0], [], []>} : vector<24x512xf32>, vector<512x512xf32>, vector<24x512xf32> -> vector<24x512xf32>
    %12 = arith.truncf %11 : vector<24x512xf32> to vector<24x512xbf16>
    %c0_8 = arith.constant 0 : index
    %c0_9 = arith.constant 0 : index
    %13 = vector.load %arg5[%c0_8, %c0_9] : memref<24x512xbf16, #tpu.memory_space<vmem>>, vector<24x512xbf16>
    tpu.vector_store %arg5[%c0_8, %c0_9], %12 {strides = array<i32>} : memref<24x512xbf16, #tpu.memory_space<vmem>>, vector<24x512xbf16>,
    return
  }
  func.func @transform_0(%arg0: i32, %arg1: i32) -> (i32, i32) {
    %c0_i32 = arith.constant 0 : i32
    %c0_i32_0 = arith.constant 0 : i32
    return %arg1, %c0_i32 : i32, i32
  }
  func.func @transform_1(%arg0: i32, %arg1: i32) -> (i32, i32) {
    %c0_i32 = arith.constant 0 : i32
    %c0_i32_0 = arith.constant 0 : i32
    return %arg1, %c0_i32 : i32, i32
  }
  func.func @transform_2(%arg0: i32, %arg1: i32) -> (i32, i32) {
    %c0_i32 = arith.constant 0 : i32
    %c0_i32_0 = arith.constant 0 : i32
    return %arg0, %c0_i32 : i32, i32
  }
  func.func @transform_3(%arg0: i32, %arg1: i32) -> (i32, i32) {
    %c0_i32 = arith.constant 0 : i32
    return %arg1, %arg0 : i32, i32
  }
}

</mosaic_0001>

<llo_original>
// kernel: vector_similarity_forward.1
$region0: #{vector_similarity_forward.1}
  #allocation0 [shape = 'u32[]', space=smem, size = 0x4, offset = 0x4, fixed_abs, tag = 'smem constant byte address 0x4 - core index']
  #allocation1 [shape = 'u32[144,128]{1,0:T(1,128)}', space=vmem, size = 0x12000, scoped, tag = 'internal scratch']
  #allocation2 [shape = 'f32[512,1]{1,0:T(8,128)}', space=vmem, size = 0x40000, scoped, tag = 'scratch operand']
  %s0 = inlined_call_operand.hbm [shape: f32[20,512], index: 0, kind: input, shape index: {}]
  %s1 = inlined_call_operand.vmem [shape: f32[20,1], index: 1, kind: input, shape index: {}]
  %s2 = inlined_call_operand.hbm [shape: f32[520,512], index: 2, kind: input, shape index: {}]
  %s3 = inlined_call_operand.vmem [shape: bf16[20,520], index: 3, kind: output, shape index: {}]
  %s4 = sld [smem:[#allocation0]]
  $region119: #{vector_similarity_forward.1} parent=0
    _
  %s6 = ssub.s32 1, %s4
  %s7 = scalar_select 0, %s6, %s4
  $region1: #{vector_similarity_forward.1} parent=0
    #allocation3 [shape = 'u8[49152]{0}', space=vmem, size = 0xc000, scoped, tag = 'input window, operand 0, single buffered']
    #allocation4 [shape = 's32[2]{0}', space=sflag, size = 0x8, scoped, tag = 'scoped memory for vector_similarity_forward.1']
    #allocation5 [shape = 'u8[2097152]{0}', space=vmem, size = 0x200000, scoped, tag = 'input window, operand 2']
    #allocation6 [shape = 's32[2]{0}', space=sflag, size = 0x8, scoped, tag = 'scoped memory for vector_similarity_forward.1']
    #allocation7 [shape = 'u8[49152]{0}', space=vmem, size = 0xc000, scoped, tag = 'output window, operand 0']
    %8 = vsyncpa [#allocation4], 0
    %9 = vsyncpa [#allocation6], 0
    %s10 = scalar_lea.sflag [#allocation6], 1
    %11 = vsyncpa %s10, 0
    loop: start=0, step=1, limit=4
    $region2: #{vector_similarity_forward.1} parent=1 // loop_pre_header
      _
    $region3: #{vector_similarity_forward.1} parent=1 // loop_header
      %s13 = sphi 0, %s17
      %p14 = scmp.ge.s32.totalorder %s13, 4
      %s20 = sphi 0, %s32
      %s21 = sphi 0, %s28
      %s22 = sphi 0, %s20
      %s23 = sphi 0, %s21
      %s24 = sphi 0, %s22
      %s25 = sphi 0, %s23
      %s35 = sphi 0, %s37
      %s38 = sphi 0, %s35
      %s39 = sphi 0, %s38
      %s55 = sphi 0, %s39
      %s61 = sphi 0, %s63
      %s64 = sphi 0, %s61
      %s65 = sphi 0, %s64
      %s81 = sphi 0, %s65
      %s87 = sphi 0, %s89
      %s90 = sphi 0, %s87
      %s91 = sphi 0, %s90
      %s107 = sphi 0, %s91
      %s115 = sphi 0, %s117
      %s118 = sphi 0, %s115
      %s119 = sphi 0, %s118
      %s135 = sphi 0, %s119
    $region4: #{vector_similarity_forward.1} parent=1 // loop_header_branch
      %16 = sbr.rel (%p14) target = $region8
    $region5: #{vector_similarity_forward.1} parent=1 // loop_body
      %s18 = ssub.s32 %s13, 1
      %s19 = ssub.s32 %s13, 2
      %s26 = sadd.s32 1, %s21
      %p27 = scmp.ge.s32.totalorder %s26, 1
      %s28 = scalar_select %p27, 0, %s26
      %s29 = sadd.s32 1, %s20
      %s30 = scalar_select %p27, %s29, %s20
      %p31 = scmp.ge.s32.totalorder %s30, 2
      %s32 = scalar_select %p31, 0, %s30
      %s33 = ssub.s32 %s21, %s28
      %p34 = scmp.eq.s32.totalorder %s33, 0
      %s36 = sadd.s32 %s35, 1
      %s37 = scalar_select %p34, %s35, %s36
      %p40 = pneg %p34
      %p41 = scmp.eq.s32.totalorder %s13, 1
      %p42 = por %p40, %p41
      %p43 = scmp.ne.s32.totalorder %s35, %s38
      %p44 = scmp.eq.s32.totalorder %s13, 0
      %p45 = por %p43, %p44
      %p46 = scmp.ne.s32.totalorder %s35, %s38
      %p47 = scmp.eq.s32.totalorder %s18, 1
      %p48 = por %p46, %p47
      %p49 = scmp.ne.s32.totalorder %s38, %s39
      %p50 = scmp.eq.s32.totalorder %s18, 0
      %p51 = por %p49, %p50
      %p52 = scmp.ne.s32.totalorder %s38, %s39
      %p53 = scmp.eq.s32.totalorder %s19, 1
      %p54 = por %p52, %p53
      %p56 = scmp.ne.s32.totalorder %s39, %s55
      %p57 = scmp.eq.s32.totalorder %s19, 0
      %p58 = por %p56, %p57
      %s59 = ssub.s32 %s21, %s28
      %p60 = scmp.eq.s32.totalorder %s59, 0
      %s62 = sadd.s32 %s61, 1
      %s63 = scalar_select %p60, %s61, %s62
      %p66 = pneg %p60
      %p67 = scmp.eq.s32.totalorder %s13, 1
      %p68 = por %p66, %p67
      %p69 = scmp.ne.s32.totalorder %s61, %s64
      %p70 = scmp.eq.s32.totalorder %s13, 0
      %p71 = por %p69, %p70
      %p72 = scmp.ne.s32.totalorder %s61, %s64
      %p73 = scmp.eq.s32.totalorder %s18, 1
      %p74 = por %p72, %p73
      %p75 = scmp.ne.s32.totalorder %s64, %s65
      %p76 = scmp.eq.s32.totalorder %s18, 0
      %p77 = por %p75, %p76
      %p78 = scmp.ne.s32.totalorder %s64, %s65
      %p79 = scmp.eq.s32.totalorder %s19, 1
      %p80 = por %p78, %p79
      %p82 = scmp.ne.s32.totalorder %s65, %s81
      %p83 = scmp.eq.s32.totalorder %s19, 0
      %p84 = por %p82, %p83
      %s85 = ssub.s32 %s20, %s32
      %p86 = scmp.eq.s32.totalorder %s85, 0
      %s88 = sadd.s32 %s87, 1
      %s89 = scalar_select %p86, %s87, %s88
      %p92 = pneg %p86
      %p93 = scmp.eq.s32.totalorder %s13, 1
      %p94 = por %p92, %p93
      %p95 = scmp.ne.s32.totalorder %s87, %s90
      %p96 = scmp.eq.s32.totalorder %s13, 0
      %p97 = por %p95, %p96
      %p98 = scmp.ne.s32.totalorder %s87, %s90
      %p99 = scmp.eq.s32.totalorder %s18, 1
      %p100 = por %p98, %p99
      %p101 = scmp.ne.s32.totalorder %s90, %s91
      %p102 = scmp.eq.s32.totalorder %s18, 0
      %p103 = por %p101, %p102
      %p104 = scmp.ne.s32.totalorder %s90, %s91
      %p105 = scmp.eq.s32.totalorder %s19, 1
      %p106 = por %p104, %p105
      %p108 = scmp.ne.s32.totalorder %s91, %s107
      %p109 = scmp.eq.s32.totalorder %s19, 0
      %p110 = por %p108, %p109
      %s111 = ssub.s32 %s21, %s28
      %s112 = ssub.s32 %s20, %s32
      %s113 = sor.u32 %s111, %s112
      %p114 = scmp.eq.s32.totalorder %s113, 0
      %s116 = sadd.s32 %s115, 1
      %s117 = scalar_select %p114, %s115, %s116
      %p120 = pneg %p114
      %p121 = scmp.eq.s32.totalorder %s13, 1
      %p122 = por %p120, %p121
      %p123 = scmp.ne.s32.totalorder %s115, %s118
      %p124 = scmp.eq.s32.totalorder %s13, 0
      %p125 = por %p123, %p124
      %p126 = scmp.ne.s32.totalorder %s115, %s118
      %p127 = scmp.eq.s32.totalorder %s18, 1
      %p128 = por %p126, %p127
      %p129 = scmp.ne.s32.totalorder %s118, %s119
      %p130 = scmp.eq.s32.totalorder %s18, 0
      %p131 = por %p129, %p130
      %p132 = scmp.ne.s32.totalorder %s118, %s119
      %p133 = scmp.eq.s32.totalorder %s19, 1
      %p134 = por %p132, %p133
      %p136 = scmp.ne.s32.totalorder %s119, %s135
      %p137 = scmp.eq.s32.totalorder %s19, 0
      %p138 = por %p136, %p137
      %p139 = scmp.le.s32.totalorder 1, %s13
      %p140 = scmp.lt.s32.totalorder %s13, 3
      %p141 = pnand %p139, %p140
      %p142 = pneg %p141
      // Predicated region
      $region9: #{vector_similarity_forward.1} parent=5 // pred_check
        _
      $region10: #{vector_similarity_forward.1} parent=5 // pred_check_branch
        %144 = sbr.rel (%p141) target = $region12
      $region11: #{vector_similarity_forward.1} parent=5 // pred_region
        %s145 = ssub.s32 %s13, 1
        // Predicated region
        $region13: #{vector_similarity_forward.1} parent=11 // pred_check
          %p146 = pneg %p51
        $region14: #{vector_similarity_forward.1} parent=11 // pred_check_branch
          %148 = sbr.rel (%p146) target = $region16
        $region15: #{vector_similarity_forward.1} parent=11 // pred_region
          %s149 = smul.u32 3, %s23
          %s151 = ssub.s32 1536, 1536
          %152 = vsyncadd [#allocation4], %s151
          %s153 = smul.addr %s149, 4
          %s154 = smul.addr %s153, 128
          %s155 = scalar_lea.hbm %s0, %s154
          %s156 = sshll.u32 [#allocation3], 4
          %s157 = int_to_ptr.vmem [resolvable:$true] %s156
          %162 = dma.hbm_to_vmem [thread:$0]  %s155, 1536, %s157, [#allocation4], 512, 512, 32
        $region16: #{vector_similarity_forward.1} parent=11 // pred_fallthru
          _
        // Predicated region
        $region17: #{vector_similarity_forward.1} parent=11 // pred_check
          %p163 = pneg %p77
        $region18: #{vector_similarity_forward.1} parent=11 // pred_check_branch
          %165 = sbr.rel (%p163) target = $region20
        $region19: #{vector_similarity_forward.1} parent=11 // pred_region
          %s166 = smul.u32 3, %s23
          %p167 = scmp.lt.s32.totalorder %s166, 2
          %s168 = scalar_select %p167, %s166, 2
          %s169 = smul.addr %s168, 8
          %s170 = scalar_lea.vmem %s1, %s169
          %s171 = smul.u32 3, %s23
        $region20: #{vector_similarity_forward.1} parent=11 // pred_fallthru
          _
      $region12: #{vector_similarity_forward.1} parent=5 // pred_fallthru
        _
      %p172 = scmp.lt.s32.totalorder %s13, 2
      // Predicated region
      $region21: #{vector_similarity_forward.1} parent=5 // pred_check
        %p173 = pneg %p172
      $region22: #{vector_similarity_forward.1} parent=5 // pred_check_branch
        %175 = sbr.rel (%p173) target = $region24
      $region23: #{vector_similarity_forward.1} parent=5 // pred_region
        // Predicated region
        $region25: #{vector_similarity_forward.1} parent=23 // pred_check
          %p176 = pneg %p97
        $region26: #{vector_similarity_forward.1} parent=23 // pred_check_branch
          %178 = sbr.rel (%p176) target = $region28
        $region27: #{vector_similarity_forward.1} parent=23 // pred_region
          %s179 = sand.u32 %s87, 1
          %s180 = scalar_lea.sflag [#allocation6], %s179
          %s181 = sand.u32 %s87, 1
          %s182 = smul.addr %s181, 2048
          %s183 = scalar_lea.vmem [#allocation5], %s182
          %s184 = smul.u32 64, %s20
          %s185 = ssub.s32 65, %s184
          %p186 = scmp.lt.s32.totalorder %s185, 64
          %s187 = scalar_select %p186, %s185, 64
          %s188 = smul.u32 128, %s187
          %s189 = smul.u32 %s188, 4
          %s191 = ssub.s32 32768, %s189
          %192 = vsyncadd %s180, %s191
          %p193 = scmp.ne.s32.totalorder 0, %s189
          %s194 = smul.addr %s184, 4
          %s195 = smul.addr %s194, 128
          %s196 = scalar_lea.hbm %s2, %s195
          %s197 = smul.u32 32, %s187
          %s198 = sshll.u32 %s183, 4
          %s199 = int_to_ptr.vmem [resolvable:$true] %s198
          %s200 = sshll.u32 %s197, 4
          %204 = dma.hbm_to_vmem [thread:$0]  (%p193), %s196, %s200, %s199, %s180, 512, 512, 32
        $region28: #{vector_similarity_forward.1} parent=23 // pred_fallthru
          _
      $region24: #{vector_similarity_forward.1} parent=5 // pred_fallthru
        _
      %p205 = scmp.le.s32.totalorder 1, %s13
      %p206 = scmp.lt.s32.totalorder %s13, 3
      %p207 = pnand %p205, %p206
      %p208 = pneg %p207
      // Predicated region
      $region29: #{vector_similarity_forward.1} parent=5 // pred_check
        _
      $region30: #{vector_similarity_forward.1} parent=5 // pred_check_branch
        %210 = sbr.rel (%p207) target = $region32
      $region31: #{vector_similarity_forward.1} parent=5 // pred_region
        %s211 = ssub.s32 %s13, 1
        // Predicated region
        $region33: #{vector_similarity_forward.1} parent=31 // pred_check
          %p212 = pneg %p51
        $region34: #{vector_similarity_forward.1} parent=31 // pred_check_branch
          %214 = sbr.rel (%p212) target = $region36
        $region35: #{vector_similarity_forward.1} parent=31 // pred_region
          %215 = dma.done [#allocation4], 1536
        $region36: #{vector_similarity_forward.1} parent=31 // pred_fallthru
          _
        %s216 = sand.u32 %s90, 1
        %s217 = scalar_lea.sflag [#allocation6], %s216
        %s218 = sand.u32 %s90, 1
        %s219 = smul.addr %s218, 2048
        %s220 = scalar_lea.vmem [#allocation5], %s219
        // Predicated region
        $region37: #{vector_similarity_forward.1} parent=31 // pred_check
          %p221 = pneg %p103
        $region38: #{vector_similarity_forward.1} parent=31 // pred_check_branch
          %223 = sbr.rel (%p221) target = $region40
        $region39: #{vector_similarity_forward.1} parent=31 // pred_region
          %224 = dma.done %s217, 32768
        $region40: #{vector_similarity_forward.1} parent=31 // pred_fallthru
          _
        %p225 = pneg %p51
        %p226 = pneg %p48
        %s227 = smul.u32 3, %s23
        %p228 = scmp.lt.s32.totalorder %s227, 2
        %s229 = scalar_select %p228, %s227, 2
        %s230 = smul.addr %s229, 8
        %s231 = scalar_lea.vmem %s1, %s230
        %p232 = pneg %p77
        %p233 = pneg %p74
        %s234 = sand.u32 %s90, 1
        %s235 = scalar_lea.sflag [#allocation6], %s234
        %s236 = sand.u32 %s90, 1
        %s237 = smul.addr %s236, 2048
        %s238 = scalar_lea.vmem [#allocation5], %s237
        %p239 = pneg %p103
        %p240 = pneg %p100
        %p241 = pneg %p131
        %p242 = pneg %p128
        %s243 = sand.u32 %s118, 1
        %s244 = sand.u32 %s118, 1
        %s245 = smul.addr %s244, 48
        %s246 = scalar_lea.vmem [#allocation7], %s245
        %s247 = smul.u32 3, %s23
        %s248 = smul.u32 3, %s23
        %p249 = scmp.lt.s32.totalorder %s248, 2
        %s250 = scalar_select %p249, %s248, 2
        %s251 = smul.addr %s250, 8
        %s252 = scalar_lea.vmem %s1, %s251
        %s253 = smul.u32 3, %s23
        %s254 = smul.u32 64, %s22
        %s255 = ssub.s32 65, %s254
        %p256 = scmp.lt.s32.totalorder %s255, 64
        %s257 = scalar_select %p256, %s255, 64
        %s258 = smul.u32 128, %s257
        %s259 = smul.u32 %s258, 4
        %s260 = smul.u32 3, %s23
        %s261 = smul.u32 4, %s22
        %s262 = ssub.s32 5, %s261
        %p263 = scmp.lt.s32.totalorder %s262, 4
        %s264 = scalar_select %p263, %s262, 4
        %s265 = smul.u32 192, %s264
        %p266 = scmp.eq.s32.totalorder %s23, 0
        // Predicated region
        $region41: #{vector_similarity_forward.1} parent=31 // pred_check
          %p267 = pneg %p266
        $region42: #{vector_similarity_forward.1} parent=31 // pred_check_branch
          %269 = sbr.rel (%p267) target = $region44
        $region43: #{vector_similarity_forward.1} parent=31 // pred_region
          %v270 = vld [vmem:[%s220] sm:$0xff]
          %v271 = vld [vmem:[%s220 + $0x8] sm:$0xff]
          %v272 = vld [vmem:[%s220 + $0x10] sm:$0xff]
          %v273 = vld [vmem:[%s220 + $0x18] sm:$0xff]
          %v274 = vld [vmem:[%s220 + $0x20] sm:$0xff]
          %v275 = vld [vmem:[%s220 + $0x28] sm:$0xff]
          %v276 = vld [vmem:[%s220 + $0x30] sm:$0xff]
          %v277 = vld [vmem:[%s220 + $0x38] sm:$0xff]
          %v278 = vld [vmem:[%s220 + $0x40] sm:$0xff]
          %v279 = vld [vmem:[%s220 + $0x48] sm:$0xff]
          %v280 = vld [vmem:[%s220 + $0x50] sm:$0xff]
          %v281 = vld [vmem:[%s220 + $0x58] sm:$0xff]
          %v282 = vld [vmem:[%s220 + $0x60] sm:$0xff]
          %v283 = vld [vmem:[%s220 + $0x68] sm:$0xff]
          %v284 = vld [vmem:[%s220 + $0x70] sm:$0xff]
          %v285 = vld [vmem:[%s220 + $0x78] sm:$0xff]
          %v286 = vld [vmem:[%s220 + $0x80] sm:$0xff]
          %v287 = vld [vmem:[%s220 + $0x88] sm:$0xff]
          %v288 = vld [vmem:[%s220 + $0x90] sm:$0xff]
          %v289 = vld [vmem:[%s220 + $0x98] sm:$0xff]
          %v290 = vld [vmem:[%s220 + $0xa0] sm:$0xff]
          %v291 = vld [vmem:[%s220 + $0xa8] sm:$0xff]
          %v292 = vld [vmem:[%s220 + $0xb0] sm:$0xff]
          %v293 = vld [vmem:[%s220 + $0xb8] sm:$0xff]
          %v294 = vld [vmem:[%s220 + $0xc0] sm:$0xff]
          %v295 = vld [vmem:[%s220 + $0xc8] sm:$0xff]
          %v296 = vld [vmem:[%s220 + $0xd0] sm:$0xff]
          %v297 = vld [vmem:[%s220 + $0xd8] sm:$0xff]
          %v298 = vld [vmem:[%s220 + $0xe0] sm:$0xff]
          %v299 = vld [vmem:[%s220 + $0xe8] sm:$0xff]
          %v300 = vld [vmem:[%s220 + $0xf0] sm:$0xff]
          %v301 = vld [vmem:[%s220 + $0xf8] sm:$0xff]
          %v302 = vld [vmem:[%s220 + $0x100] sm:$0xff]
          %v303 = vld [vmem:[%s220 + $0x108] sm:$0xff]
          %v304 = vld [vmem:[%s220 + $0x110] sm:$0xff]
          %v305 = vld [vmem:[%s220 + $0x118] sm:$0xff]
          %v306 = vld [vmem:[%s220 + $0x120] sm:$0xff]
          %v307 = vld [vmem:[%s220 + $0x128] sm:$0xff]
          %v308 = vld [vmem:[%s220 + $0x130] sm:$0xff]
          %v309 = vld [vmem:[%s220 + $0x138] sm:$0xff]
          %v310 = vld [vmem:[%s220 + $0x140] sm:$0xff]
          %v311 = vld [vmem:[%s220 + $0x148] sm:$0xff]
          %v312 = vld [vmem:[%s220 + $0x150] sm:$0xff]
          %v313 = vld [vmem:[%s220 + $0x158] sm:$0xff]
          %v314 = vld [vmem:[%s220 + $0x160] sm:$0xff]
          %v315 = vld [vmem:[%s220 + $0x168] sm:$0xff]
          %v316 = vld [vmem:[%s220 + $0x170] sm:$0xff]
          %v317 = vld [vmem:[%s220 + $0x178] sm:$0xff]
          %v318 = vld [vmem:[%s220 + $0x180] sm:$0xff]
          %v319 = vld [vmem:[%s220 + $0x188] sm:$0xff]
          %v320 = vld [vmem:[%s220 + $0x190] sm:$0xff]
          %v321 = vld [vmem:[%s220 + $0x198] sm:$0xff]
          %v322 = vld [vmem:[%s220 + $0x1a0] sm:$0xff]
          %v323 = vld [vmem:[%s220 + $0x1a8] sm:$0xff]
          %v324 = vld [vmem:[%s220 + $0x1b0] sm:$0xff]
          %v325 = vld [vmem:[%s220 + $0x1b8] sm:$0xff]
          %v326 = vld [vmem:[%s220 + $0x1c0] sm:$0xff]
          %v327 = vld [vmem:[%s220 + $0x1c8] sm:$0xff]
          %v328 = vld [vmem:[%s220 + $0x1d0] sm:$0xff]
          %v329 = vld [vmem:[%s220 + $0x1d8] sm:$0xff]
          %v330 = vld [vmem:[%s220 + $0x1e0] sm:$0xff]
          %v331 = vld [vmem:[%s220 + $0x1e8] sm:$0xff]
          %v332 = vld [vmem:[%s220 + $0x1f0] sm:$0xff]
          %v333 = vld [vmem:[%s220 + $0x1f8] sm:$0xff]
          %v334 = vld [vmem:[%s220 + $0x200] sm:$0xff]
          %v335 = vld [vmem:[%s220 + $0x208] sm:$0xff]
          %v336 = vld [vmem:[%s220 + $0x210] sm:$0xff]
          %v337 = vld [vmem:[%s220 + $0x218] sm:$0xff]
          %v338 = vld [vmem:[%s220 + $0x220] sm:$0xff]
          %v339 = vld [vmem:[%s220 + $0x228] sm:$0xff]
          %v340 = vld [vmem:[%s220 + $0x230] sm:$0xff]
          %v341 = vld [vmem:[%s220 + $0x238] sm:$0xff]
          %v342 = vld [vmem:[%s220 + $0x240] sm:$0xff]
          %v343 = vld [vmem:[%s220 + $0x248] sm:$0xff]
          %v344 = vld [vmem:[%s220 + $0x250] sm:$0xff]
          %v345 = vld [vmem:[%s220 + $0x258] sm:$0xff]
          %v346 = vld [vmem:[%s220 + $0x260] sm:$0xff]
          %v347 = vld [vmem:[%s220 + $0x268] sm:$0xff]
          %v348 = vld [vmem:[%s220 + $0x270] sm:$0xff]
          %v349 = vld [vmem:[%s220 + $0x278] sm:$0xff]
          %v350 = vld [vmem:[%s220 + $0x280] sm:$0xff]
          %v351 = vld [vmem:[%s220 + $0x288] sm:$0xff]
          %v352 = vld [vmem:[%s220 + $0x290] sm:$0xff]
          %v353 = vld [vmem:[%s220 + $0x298] sm:$0xff]
          %v354 = vld [vmem:[%s220 + $0x2a0] sm:$0xff]
          %v355 = vld [vmem:[%s220 + $0x2a8] sm:$0xff]
          %v356 = vld [vmem:[%s220 + $0x2b0] sm:$0xff]
          %v357 = vld [vmem:[%s220 + $0x2b8] sm:$0xff]
          %v358 = vld [vmem:[%s220 + $0x2c0] sm:$0xff]
          %v359 = vld [vmem:[%s220 + $0x2c8] sm:$0xff]
          %v360 = vld [vmem:[%s220 + $0x2d0] sm:$0xff]
          %v361 = vld [vmem:[%s220 + $0x2d8] sm:$0xff]
          %v362 = vld [vmem:[%s220 + $0x2e0] sm:$0xff]
          %v363 = vld [vmem:[%s220 + $0x2e8] sm:$0xff]
          %v364 = vld [vmem:[%s220 + $0x2f0] sm:$0xff]
          %v365 = vld [vmem:[%s220 + $0x2f8] sm:$0xff]
          %v366 = vld [vmem:[%s220 + $0x300] sm:$0xff]
          %v367 = vld [vmem:[%s220 + $0x308] sm:$0xff]
          %v368 = vld [vmem:[%s220 + $0x310] sm:$0xff]
          %v369 = vld [vmem:[%s220 + $0x318] sm:$0xff]
          %v370 = vld [vmem:[%s220 + $0x320] sm:$0xff]
          %v371 = vld [vmem:[%s220 + $0x328] sm:$0xff]
          %v372 = vld [vmem:[%s220 + $0x330] sm:$0xff]
          %v373 = vld [vmem:[%s220 + $0x338] sm:$0xff]
          %v374 = vld [vmem:[%s220 + $0x340] sm:$0xff]
          %v375 = vld [vmem:[%s220 + $0x348] sm:$0xff]
          %v376 = vld [vmem:[%s220 + $0x350] sm:$0xff]
          %v377 = vld [vmem:[%s220 + $0x358] sm:$0xff]
          %v378 = vld [vmem:[%s220 + $0x360] sm:$0xff]
          %v379 = vld [vmem:[%s220 + $0x368] sm:$0xff]
          %v380 = vld [vmem:[%s220 + $0x370] sm:$0xff]
          %v381 = vld [vmem:[%s220 + $0x378] sm:$0xff]
          %v382 = vld [vmem:[%s220 + $0x380] sm:$0xff]
          %v383 = vld [vmem:[%s220 + $0x388] sm:$0xff]
          %v384 = vld [vmem:[%s220 + $0x390] sm:$0xff]
          %v385 = vld [vmem:[%s220 + $0x398] sm:$0xff]
          %v386 = vld [vmem:[%s220 + $0x3a0] sm:$0xff]
          %v387 = vld [vmem:[%s220 + $0x3a8] sm:$0xff]
          %v388 = vld [vmem:[%s220 + $0x3b0] sm:$0xff]
          %v389 = vld [vmem:[%s220 + $0x3b8] sm:$0xff]
          %v390 = vld [vmem:[%s220 + $0x3c0] sm:$0xff]
          %v391 = vld [vmem:[%s220 + $0x3c8] sm:$0xff]
          %v392 = vld [vmem:[%s220 + $0x3d0] sm:$0xff]
          %v393 = vld [vmem:[%s220 + $0x3d8] sm:$0xff]
          %v394 = vld [vmem:[%s220 + $0x3e0] sm:$0xff]
          %v395 = vld [vmem:[%s220 + $0x3e8] sm:$0xff]
          %v396 = vld [vmem:[%s220 + $0x3f0] sm:$0xff]
          %v397 = vld [vmem:[%s220 + $0x3f8] sm:$0xff]
          %v398 = vld [vmem:[%s220 + $0x400] sm:$0xff]
          %v399 = vld [vmem:[%s220 + $0x408] sm:$0xff]
          %v400 = vld [vmem:[%s220 + $0x410] sm:$0xff]
          %v401 = vld [vmem:[%s220 + $0x418] sm:$0xff]
          %v402 = vld [vmem:[%s220 + $0x420] sm:$0xff]
          %v403 = vld [vmem:[%s220 + $0x428] sm:$0xff]
          %v404 = vld [vmem:[%s220 + $0x430] sm:$0xff]
          %v405 = vld [vmem:[%s220 + $0x438] sm:$0xff]
          %v406 = vld [vmem:[%s220 + $0x440] sm:$0xff]
          %v407 = vld [vmem:[%s220 + $0x448] sm:$0xff]
          %v408 = vld [vmem:[%s220 + $0x450] sm:$0xff]
          %v409 = vld [vmem:[%s220 + $0x458] sm:$0xff]
          %v410 = vld [vmem:[%s220 + $0x460] sm:$0xff]
          %v411 = vld [vmem:[%s220 + $0x468] sm:$0xff]
          %v412 = vld [vmem:[%s220 + $0x470] sm:$0xff]
          %v413 = vld [vmem:[%s220 + $0x478] sm:$0xff]
          %v414 = vld [vmem:[%s220 + $0x480] sm:$0xff]
          %v415 = vld [vmem:[%s220 + $0x488] sm:$0xff]
          %v416 = vld [vmem:[%s220 + $0x490] sm:$0xff]
          %v417 = vld [vmem:[%s220 + $0x498] sm:$0xff]
          %v418 = vld [vmem:[%s220 + $0x4a0] sm:$0xff]
          %v419 = vld [vmem:[%s220 + $0x4a8] sm:$0xff]
          %v420 = vld [vmem:[%s220 + $0x4b0] sm:$0xff]
          %v421 = vld [vmem:[%s220 + $0x4b8] sm:$0xff]
          %v422 = vld [vmem:[%s220 + $0x4c0] sm:$0xff]
          %v423 = vld [vmem:[%s220 + $0x4c8] sm:$0xff]
          %v424 = vld [vmem:[%s220 + $0x4d0] sm:$0xff]
          %v425 = vld [vmem:[%s220 + $0x4d8] sm:$0xff]
          %v426 = vld [vmem:[%s220 + $0x4e0] sm:$0xff]
          %v427 = vld [vmem:[%s220 + $0x4e8] sm:$0xff]
          %v428 = vld [vmem:[%s220 + $0x4f0] sm:$0xff]
          %v429 = vld [vmem:[%s220 + $0x4f8] sm:$0xff]
          %v430 = vld [vmem:[%s220 + $0x500] sm:$0xff]
          %v431 = vld [vmem:[%s220 + $0x508] sm:$0xff]
          %v432 = vld [vmem:[%s220 + $0x510] sm:$0xff]
          %v433 = vld [vmem:[%s220 + $0x518] sm:$0xff]
          %v434 = vld [vmem:[%s220 + $0x520] sm:$0xff]
          %v435 = vld [vmem:[%s220 + $0x528] sm:$0xff]
          %v436 = vld [vmem:[%s220 + $0x530] sm:$0xff]
          %v437 = vld [vmem:[%s220 + $0x538] sm:$0xff]
          %v438 = vld [vmem:[%s220 + $0x540] sm:$0xff]
          %v439 = vld [vmem:[%s220 + $0x548] sm:$0xff]
          %v440 = vld [vmem:[%s220 + $0x550] sm:$0xff]
          %v441 = vld [vmem:[%s220 + $0x558] sm:$0xff]
          %v442 = vld [vmem:[%s220 + $0x560] sm:$0xff]
          %v443 = vld [vmem:[%s220 + $0x568] sm:$0xff]
          %v444 = vld [vmem:[%s220 + $0x570] sm:$0xff]
          %v445 = vld [vmem:[%s220 + $0x578] sm:$0xff]
          %v446 = vld [vmem:[%s220 + $0x580] sm:$0xff]
          %v447 = vld [vmem:[%s220 + $0x588] sm:$0xff]
          %v448 = vld [vmem:[%s220 + $0x590] sm:$0xff]
          %v449 = vld [vmem:[%s220 + $0x598] sm:$0xff]
          %v450 = vld [vmem:[%s220 + $0x5a0] sm:$0xff]
          %v451 = vld [vmem:[%s220 + $0x5a8] sm:$0xff]
          %v452 = vld [vmem:[%s220 + $0x5b0] sm:$0xff]
          %v453 = vld [vmem:[%s220 + $0x5b8] sm:$0xff]
          %v454 = vld [vmem:[%s220 + $0x5c0] sm:$0xff]
          %v455 = vld [vmem:[%s220 + $0x5c8] sm:$0xff]
          %v456 = vld [vmem:[%s220 + $0x5d0] sm:$0xff]
          %v457 = vld [vmem:[%s220 + $0x5d8] sm:$0xff]
          %v458 = vld [vmem:[%s220 + $0x5e0] sm:$0xff]
          %v459 = vld [vmem:[%s220 + $0x5e8] sm:$0xff]
          %v460 = vld [vmem:[%s220 + $0x5f0] sm:$0xff]
          %v461 = vld [vmem:[%s220 + $0x5f8] sm:$0xff]
          %v462 = vld [vmem:[%s220 + $0x600] sm:$0xff]
          %v463 = vld [vmem:[%s220 + $0x608] sm:$0xff]
          %v464 = vld [vmem:[%s220 + $0x610] sm:$0xff]
          %v465 = vld [vmem:[%s220 + $0x618] sm:$0xff]
          %v466 = vld [vmem:[%s220 + $0x620] sm:$0xff]
          %v467 = vld [vmem:[%s220 + $0x628] sm:$0xff]
          %v468 = vld [vmem:[%s220 + $0x630] sm:$0xff]
          %v469 = vld [vmem:[%s220 + $0x638] sm:$0xff]
          %v470 = vld [vmem:[%s220 + $0x640] sm:$0xff]
          %v471 = vld [vmem:[%s220 + $0x648] sm:$0xff]
          %v472 = vld [vmem:[%s220 + $0x650] sm:$0xff]
          %v473 = vld [vmem:[%s220 + $0x658] sm:$0xff]
          %v474 = vld [vmem:[%s220 + $0x660] sm:$0xff]
          %v475 = vld [vmem:[%s220 + $0x668] sm:$0xff]
          %v476 = vld [vmem:[%s220 + $0x670] sm:$0xff]
          %v477 = vld [vmem:[%s220 + $0x678] sm:$0xff]
          %v478 = vld [vmem:[%s220 + $0x680] sm:$0xff]
          %v479 = vld [vmem:[%s220 + $0x688] sm:$0xff]
          %v480 = vld [vmem:[%s220 + $0x690] sm:$0xff]
          %v481 = vld [vmem:[%s220 + $0x698] sm:$0xff]
          %v482 = vld [vmem:[%s220 + $0x6a0] sm:$0xff]
          %v483 = vld [vmem:[%s220 + $0x6a8] sm:$0xff]
          %v484 = vld [vmem:[%s220 + $0x6b0] sm:$0xff]
          %v485 = vld [vmem:[%s220 + $0x6b8] sm:$0xff]
          %v486 = vld [vmem:[%s220 + $0x6c0] sm:$0xff]
          %v487 = vld [vmem:[%s220 + $0x6c8] sm:$0xff]
          %v488 = vld [vmem:[%s220 + $0x6d0] sm:$0xff]
          %v489 = vld [vmem:[%s220 + $0x6d8] sm:$0xff]
          %v490 = vld [vmem:[%s220 + $0x6e0] sm:$0xff]
          %v491 = vld [vmem:[%s220 + $0x6e8] sm:$0xff]
          %v492 = vld [vmem:[%s220 + $0x6f0] sm:$0xff]
          %v493 = vld [vmem:[%s220 + $0x6f8] sm:$0xff]
          %v494 = vld [vmem:[%s220 + $0x700] sm:$0xff]
          %v495 = vld [vmem:[%s220 + $0x708] sm:$0xff]
          %v496 = vld [vmem:[%s220 + $0x710] sm:$0xff]
          %v497 = vld [vmem:[%s220 + $0x718] sm:$0xff]
          %v498 = vld [vmem:[%s220 + $0x720] sm:$0xff]
          %v499 = vld [vmem:[%s220 + $0x728] sm:$0xff]
          %v500 = vld [vmem:[%s220 + $0x730] sm:$0xff]
          %v501 = vld [vmem:[%s220 + $0x738] sm:$0xff]
          %v502 = vld [vmem:[%s220 + $0x740] sm:$0xff]
          %v503 = vld [vmem:[%s220 + $0x748] sm:$0xff]
          %v504 = vld [vmem:[%s220 + $0x750] sm:$0xff]
          %v505 = vld [vmem:[%s220 + $0x758] sm:$0xff]
          %v506 = vld [vmem:[%s220 + $0x760] sm:$0xff]
          %v507 = vld [vmem:[%s220 + $0x768] sm:$0xff]
          %v508 = vld [vmem:[%s220 + $0x770] sm:$0xff]
          %v509 = vld [vmem:[%s220 + $0x778] sm:$0xff]
          %v510 = vld [vmem:[%s220 + $0x780] sm:$0xff]
          %v511 = vld [vmem:[%s220 + $0x788] sm:$0xff]
          %v512 = vld [vmem:[%s220 + $0x790] sm:$0xff]
          %v513 = vld [vmem:[%s220 + $0x798] sm:$0xff]
          %v514 = vld [vmem:[%s220 + $0x7a0] sm:$0xff]
          %v515 = vld [vmem:[%s220 + $0x7a8] sm:$0xff]
          %v516 = vld [vmem:[%s220 + $0x7b0] sm:$0xff]
          %v517 = vld [vmem:[%s220 + $0x7b8] sm:$0xff]
          %v518 = vld [vmem:[%s220 + $0x7c0] sm:$0xff]
          %v519 = vld [vmem:[%s220 + $0x7c8] sm:$0xff]
          %v520 = vld [vmem:[%s220 + $0x7d0] sm:$0xff]
          %v521 = vld [vmem:[%s220 + $0x7d8] sm:$0xff]
          %v522 = vld [vmem:[%s220 + $0x7e0] sm:$0xff]
          %v523 = vld [vmem:[%s220 + $0x7e8] sm:$0xff]
          %v524 = vld [vmem:[%s220 + $0x7f0] sm:$0xff]
          %v525 = vld [vmem:[%s220 + $0x7f8] sm:$0xff]
          %v526 = vmul.f32 %v270, %v270
          %v527 = vmul.f32 %v271, %v271
          %v528 = vmul.f32 %v272, %v272
          %v529 = vmul.f32 %v273, %v273
          %v530 = vmul.f32 %v274, %v274
          %v531 = vmul.f32 %v275, %v275
          %v532 = vmul.f32 %v276, %v276
          %v533 = vmul.f32 %v277, %v277
          %v534 = vmul.f32 %v278, %v278
          %v535 = vmul.f32 %v279, %v279
          %v536 = vmul.f32 %v280, %v280
          %v537 = vmul.f32 %v281, %v281
          %v538 = vmul.f32 %v282, %v282
          %v539 = vmul.f32 %v283, %v283
          %v540 = vmul.f32 %v284, %v284
          %v541 = vmul.f32 %v285, %v285
          %v542 = vmul.f32 %v286, %v286
          %v543 = vmul.f32 %v287, %v287
          %v544 = vmul.f32 %v288, %v288
          %v545 = vmul.f32 %v289, %v289
          %v546 = vmul.f32 %v290, %v290
          %v547 = vmul.f32 %v291, %v291
          %v548 = vmul.f32 %v292, %v292
          %v549 = vmul.f32 %v293, %v293
          %v550 = vmul.f32 %v294, %v294
          %v551 = vmul.f32 %v295, %v295
          %v552 = vmul.f32 %v296, %v296
          %v553 = vmul.f32 %v297, %v297
          %v554 = vmul.f32 %v298, %v298
          %v555 = vmul.f32 %v299, %v299
          %v556 = vmul.f32 %v300, %v300
          %v557 = vmul.f32 %v301, %v301
          %v558 = vmul.f32 %v302, %v302
          %v559 = vmul.f32 %v303, %v303
          %v560 = vmul.f32 %v304, %v304
          %v561 = vmul.f32 %v305, %v305
          %v562 = vmul.f32 %v306, %v306
          %v563 = vmul.f32 %v307, %v307
          %v564 = vmul.f32 %v308, %v308
          %v565 = vmul.f32 %v309, %v309
          %v566 = vmul.f32 %v310, %v310
          %v567 = vmul.f32 %v311, %v311
          %v568 = vmul.f32 %v312, %v312
          %v569 = vmul.f32 %v313, %v313
          %v570 = vmul.f32 %v314, %v314
          %v571 = vmul.f32 %v315, %v315
          %v572 = vmul.f32 %v316, %v316
          %v573 = vmul.f32 %v317, %v317
          %v574 = vmul.f32 %v318, %v318
          %v575 = vmul.f32 %v319, %v319
          %v576 = vmul.f32 %v320, %v320
          %v577 = vmul.f32 %v321, %v321
          %v578 = vmul.f32 %v322, %v322
          %v579 = vmul.f32 %v323, %v323
          %v580 = vmul.f32 %v324, %v324
          %v581 = vmul.f32 %v325, %v325
          %v582 = vmul.f32 %v326, %v326
          %v583 = vmul.f32 %v327, %v327
          %v584 = vmul.f32 %v328, %v328
          %v585 = vmul.f32 %v329, %v329
          %v586 = vmul.f32 %v330, %v330
          %v587 = vmul.f32 %v331, %v331
          %v588 = vmul.f32 %v332, %v332
          %v589 = vmul.f32 %v333, %v333
          %v590 = vmul.f32 %v334, %v334
          %v591 = vmul.f32 %v335, %v335
          %v592 = vmul.f32 %v336, %v336
          %v593 = vmul.f32 %v337, %v337
          %v594 = vmul.f32 %v338, %v338
          %v595 = vmul.f32 %v339, %v339
          %v596 = vmul.f32 %v340, %v340
          %v597 = vmul.f32 %v341, %v341
          %v598 = vmul.f32 %v342, %v342
          %v599 = vmul.f32 %v343, %v343
          %v600 = vmul.f32 %v344, %v344
          %v601 = vmul.f32 %v345, %v345
          %v602 = vmul.f32 %v346, %v346
          %v603 = vmul.f32 %v347, %v347
          %v604 = vmul.f32 %v348, %v348
          %v605 = vmul.f32 %v349, %v349
          %v606 = vmul.f32 %v350, %v350
          %v607 = vmul.f32 %v351, %v351
          %v608 = vmul.f32 %v352, %v352
          %v609 = vmul.f32 %v353, %v353
          %v610 = vmul.f32 %v354, %v354
          %v611 = vmul.f32 %v355, %v355
          %v612 = vmul.f32 %v356, %v356
          %v613 = vmul.f32 %v357, %v357
          %v614 = vmul.f32 %v358, %v358
          %v615 = vmul.f32 %v359, %v359
          %v616 = vmul.f32 %v360, %v360
          %v617 = vmul.f32 %v361, %v361
          %v618 = vmul.f32 %v362, %v362
          %v619 = vmul.f32 %v363, %v363
          %v620 = vmul.f32 %v364, %v364
          %v621 = vmul.f32 %v365, %v365
          %v622 = vmul.f32 %v366, %v366
          %v623 = vmul.f32 %v367, %v367
          %v624 = vmul.f32 %v368, %v368
          %v625 = vmul.f32 %v369, %v369
          %v626 = vmul.f32 %v370, %v370
          %v627 = vmul.f32 %v371, %v371
          %v628 = vmul.f32 %v372, %v372
          %v629 = vmul.f32 %v373, %v373
          %v630 = vmul.f32 %v374, %v374
          %v631 = vmul.f32 %v375, %v375
          %v632 = vmul.f32 %v376, %v376
          %v633 = vmul.f32 %v377, %v377
          %v634 = vmul.f32 %v378, %v378
          %v635 = vmul.f32 %v379, %v379
          %v636 = vmul.f32 %v380, %v380
          %v637 = vmul.f32 %v381, %v381
          %v638 = vmul.f32 %v382, %v382
          %v639 = vmul.f32 %v383, %v383
          %v640 = vmul.f32 %v384, %v384
          %v641 = vmul.f32 %v385, %v385
          %v642 = vmul.f32 %v386, %v386
          %v643 = vmul.f32 %v387, %v387
          %v644 = vmul.f32 %v388, %v388
          %v645 = vmul.f32 %v389, %v389
          %v646 = vmul.f32 %v390, %v390
          %v647 = vmul.f32 %v391, %v391
          %v648 = vmul.f32 %v392, %v392
          %v649 = vmul.f32 %v393, %v393
          %v650 = vmul.f32 %v394, %v394
          %v651 = vmul.f32 %v395, %v395
          %v652 = vmul.f32 %v396, %v396
          %v653 = vmul.f32 %v397, %v397
          %v654 = vmul.f32 %v398, %v398
          %v655 = vmul.f32 %v399, %v399
          %v656 = vmul.f32 %v400, %v400
          %v657 = vmul.f32 %v401, %v401
          %v658 = vmul.f32 %v402, %v402
          %v659 = vmul.f32 %v403, %v403
          %v660 = vmul.f32 %v404, %v404
          %v661 = vmul.f32 %v405, %v405
          %v662 = vmul.f32 %v406, %v406
          %v663 = vmul.f32 %v407, %v407
          %v664 = vmul.f32 %v408, %v408
          %v665 = vmul.f32 %v409, %v409
          %v666 = vmul.f32 %v410, %v410
          %v667 = vmul.f32 %v411, %v411
          %v668 = vmul.f32 %v412, %v412
          %v669 = vmul.f32 %v413, %v413
          %v670 = vmul.f32 %v414, %v414
          %v671 = vmul.f32 %v415, %v415
          %v672 = vmul.f32 %v416, %v416
          %v673 = vmul.f32 %v417, %v417
          %v674 = vmul.f32 %v418, %v418
          %v675 = vmul.f32 %v419, %v419
          %v676 = vmul.f32 %v420, %v420
          %v677 = vmul.f32 %v421, %v421
          %v678 = vmul.f32 %v422, %v422
          %v679 = vmul.f32 %v423, %v423
          %v680 = vmul.f32 %v424, %v424
          %v681 = vmul.f32 %v425, %v425
          %v682 = vmul.f32 %v426, %v426
          %v683 = vmul.f32 %v427, %v427
          %v684 = vmul.f32 %v428, %v428
          %v685 = vmul.f32 %v429, %v429
          %v686 = vmul.f32 %v430, %v430
          %v687 = vmul.f32 %v431, %v431
          %v688 = vmul.f32 %v432, %v432
          %v689 = vmul.f32 %v433, %v433
          %v690 = vmul.f32 %v434, %v434
          %v691 = vmul.f32 %v435, %v435
          %v692 = vmul.f32 %v436, %v436
          %v693 = vmul.f32 %v437, %v437
          %v694 = vmul.f32 %v438, %v438
          %v695 = vmul.f32 %v439, %v439
          %v696 = vmul.f32 %v440, %v440
          %v697 = vmul.f32 %v441, %v441
          %v698 = vmul.f32 %v442, %v442
          %v699 = vmul.f32 %v443, %v443
          %v700 = vmul.f32 %v444, %v444
          %v701 = vmul.f32 %v445, %v445
          %v702 = vmul.f32 %v446, %v446
          %v703 = vmul.f32 %v447, %v447
          %v704 = vmul.f32 %v448, %v448
          %v705 = vmul.f32 %v449, %v449
          %v706 = vmul.f32 %v450, %v450
          %v707 = vmul.f32 %v451, %v451
          %v708 = vmul.f32 %v452, %v452
          %v709 = vmul.f32 %v453, %v453
          %v710 = vmul.f32 %v454, %v454
          %v711 = vmul.f32 %v455, %v455
          %v712 = vmul.f32 %v456, %v456
          %v713 = vmul.f32 %v457, %v457
          %v714 = vmul.f32 %v458, %v458
          %v715 = vmul.f32 %v459, %v459
          %v716 = vmul.f32 %v460, %v460
          %v717 = vmul.f32 %v461, %v461
          %v718 = vmul.f32 %v462, %v462
          %v719 = vmul.f32 %v463, %v463
          %v720 = vmul.f32 %v464, %v464
          %v721 = vmul.f32 %v465, %v465
          %v722 = vmul.f32 %v466, %v466
          %v723 = vmul.f32 %v467, %v467
          %v724 = vmul.f32 %v468, %v468
          %v725 = vmul.f32 %v469, %v469
          %v726 = vmul.f32 %v470, %v470
          %v727 = vmul.f32 %v471, %v471
          %v728 = vmul.f32 %v472, %v472
          %v729 = vmul.f32 %v473, %v473
          %v730 = vmul.f32 %v474, %v474
          %v731 = vmul.f32 %v475, %v475
          %v732 = vmul.f32 %v476, %v476
          %v733 = vmul.f32 %v477, %v477
          %v734 = vmul.f32 %v478, %v478
          %v735 = vmul.f32 %v479, %v479
          %v736 = vmul.f32 %v480, %v480
          %v737 = vmul.f32 %v481, %v481
          %v738 = vmul.f32 %v482, %v482
          %v739 = vmul.f32 %v483, %v483
          %v740 = vmul.f32 %v484, %v484
          %v741 = vmul.f32 %v485, %v485
          %v742 = vmul.f32 %v486, %v486
          %v743 = vmul.f32 %v487, %v487
          %v744 = vmul.f32 %v488, %v488
          %v745 = vmul.f32 %v489, %v489
          %v746 = vmul.f32 %v490, %v490
          %v747 = vmul.f32 %v491, %v491
          %v748 = vmul.f32 %v492, %v492
          %v749 = vmul.f32 %v493, %v493
          %v750 = vmul.f32 %v494, %v494
          %v751 = vmul.f32 %v495, %v495
          %v752 = vmul.f32 %v496, %v496
          %v753 = vmul.f32 %v497, %v497
          %v754 = vmul.f32 %v498, %v498
          %v755 = vmul.f32 %v499, %v499
          %v756 = vmul.f32 %v500, %v500
          %v757 = vmul.f32 %v501, %v501
          %v758 = vmul.f32 %v502, %v502
          %v759 = vmul.f32 %v503, %v503
          %v760 = vmul.f32 %v504, %v504
          %v761 = vmul.f32 %v505, %v505
          %v762 = vmul.f32 %v506, %v506
          %v763 = vmul.f32 %v507, %v507
          %v764 = vmul.f32 %v508, %v508
          %v765 = vmul.f32 %v509, %v509
          %v766 = vmul.f32 %v510, %v510
          %v767 = vmul.f32 %v511, %v511
          %v768 = vmul.f32 %v512, %v512
          %v769 = vmul.f32 %v513, %v513
          %v770 = vmul.f32 %v514, %v514
          %v771 = vmul.f32 %v515, %v515
          %v772 = vmul.f32 %v516, %v516
          %v773 = vmul.f32 %v517, %v517
          %v774 = vmul.f32 %v518, %v518
          %v775 = vmul.f32 %v519, %v519
          %v776 = vmul.f32 %v520, %v520
          %v777 = vmul.f32 %v521, %v521
          %v778 = vmul.f32 %v522, %v522
          %v779 = vmul.f32 %v523, %v523
          %v780 = vmul.f32 %v524, %v524
          %v781 = vmul.f32 %v525, %v525
          %v782 = vadd.f32 %v526, %v527
          %v783 = vadd.f32 %v782, %v528
          %v784 = vadd.f32 %v783, %v529
          %785 = vadd.xlane.f32.xlu0 %v784
          %v786 = vpop.xlane.xlu0 %785
          %v787 = vadd.f32 %v530, %v531
          %v788 = vadd.f32 %v787, %v532
          %v789 = vadd.f32 %v788, %v533
          %790 = vadd.xlane.f32.xlu0 %v789
          %v791 = vpop.xlane.xlu0 %790
          %v792 = vadd.f32 %v534, %v535
          %v793 = vadd.f32 %v792, %v536
          %v794 = vadd.f32 %v793, %v537
          %795 = vadd.xlane.f32.xlu0 %v794
          %v796 = vpop.xlane.xlu0 %795
          %v797 = vadd.f32 %v538, %v539
          %v798 = vadd.f32 %v797, %v540
          %v799 = vadd.f32 %v798, %v541
          %800 = vadd.xlane.f32.xlu0 %v799
          %v801 = vpop.xlane.xlu0 %800
          %v802 = vadd.f32 %v542, %v543
          %v803 = vadd.f32 %v802, %v544
          %v804 = vadd.f32 %v803, %v545
          %805 = vadd.xlane.f32.xlu0 %v804
          %v806 = vpop.xlane.xlu0 %805
          %v807 = vadd.f32 %v546, %v547
          %v808 = vadd.f32 %v807, %v548
          %v809 = vadd.f32 %v808, %v549
          %810 = vadd.xlane.f32.xlu0 %v809
          %v811 = vpop.xlane.xlu0 %810
          %v812 = vadd.f32 %v550, %v551
          %v813 = vadd.f32 %v812, %v552
          %v814 = vadd.f32 %v813, %v553
          %815 = vadd.xlane.f32.xlu0 %v814
          %v816 = vpop.xlane.xlu0 %815
          %v817 = vadd.f32 %v554, %v555
          %v818 = vadd.f32 %v817, %v556
          %v819 = vadd.f32 %v818, %v557
          %820 = vadd.xlane.f32.xlu0 %v819
          %v821 = vpop.xlane.xlu0 %820
          %v822 = vadd.f32 %v558, %v559
          %v823 = vadd.f32 %v822, %v560
          %v824 = vadd.f32 %v823, %v561
          %825 = vadd.xlane.f32.xlu0 %v824
          %v826 = vpop.xlane.xlu0 %825
          %v827 = vadd.f32 %v562, %v563
          %v828 = vadd.f32 %v827, %v564
          %v829 = vadd.f32 %v828, %v565
          %830 = vadd.xlane.f32.xlu0 %v829
          %v831 = vpop.xlane.xlu0 %830
          %v832 = vadd.f32 %v566, %v567
          %v833 = vadd.f32 %v832, %v568
          %v834 = vadd.f32 %v833, %v569
          %835 = vadd.xlane.f32.xlu0 %v834
          %v836 = vpop.xlane.xlu0 %835
          %v837 = vadd.f32 %v570, %v571
          %v838 = vadd.f32 %v837, %v572
          %v839 = vadd.f32 %v838, %v573
          %840 = vadd.xlane.f32.xlu0 %v839
          %v841 = vpop.xlane.xlu0 %840
          %v842 = vadd.f32 %v574, %v575
          %v843 = vadd.f32 %v842, %v576
          %v844 = vadd.f32 %v843, %v577
          %845 = vadd.xlane.f32.xlu0 %v844
          %v846 = vpop.xlane.xlu0 %845
          %v847 = vadd.f32 %v578, %v579
          %v848 = vadd.f32 %v847, %v580
          %v849 = vadd.f32 %v848, %v581
          %850 = vadd.xlane.f32.xlu0 %v849
          %v851 = vpop.xlane.xlu0 %850
          %v852 = vadd.f32 %v582, %v583
          %v853 = vadd.f32 %v852, %v584
          %v854 = vadd.f32 %v853, %v585
          %855 = vadd.xlane.f32.xlu0 %v854
          %v856 = vpop.xlane.xlu0 %855
          %v857 = vadd.f32 %v586, %v587
          %v858 = vadd.f32 %v857, %v588
          %v859 = vadd.f32 %v858, %v589
          %860 = vadd.xlane.f32.xlu0 %v859
          %v861 = vpop.xlane.xlu0 %860
          %v862 = vadd.f32 %v590, %v591
          %v863 = vadd.f32 %v862, %v592
          %v864 = vadd.f32 %v863, %v593
          %865 = vadd.xlane.f32.xlu0 %v864
          %v866 = vpop.xlane.xlu0 %865
          %v867 = vadd.f32 %v594, %v595
          %v868 = vadd.f32 %v867, %v596
          %v869 = vadd.f32 %v868, %v597
          %870 = vadd.xlane.f32.xlu0 %v869
          %v871 = vpop.xlane.xlu0 %870
          %v872 = vadd.f32 %v598, %v599
          %v873 = vadd.f32 %v872, %v600
          %v874 = vadd.f32 %v873, %v601
          %875 = vadd.xlane.f32.xlu0 %v874
          %v876 = vpop.xlane.xlu0 %875
          %v877 = vadd.f32 %v602, %v603
          %v878 = vadd.f32 %v877, %v604
          %v879 = vadd.f32 %v878, %v605
          %880 = vadd.xlane.f32.xlu0 %v879
          %v881 = vpop.xlane.xlu0 %880
          %v882 = vadd.f32 %v606, %v607
          %v883 = vadd.f32 %v882, %v608
          %v884 = vadd.f32 %v883, %v609
          %885 = vadd.xlane.f32.xlu0 %v884
          %v886 = vpop.xlane.xlu0 %885
          %v887 = vadd.f32 %v610, %v611
          %v888 = vadd.f32 %v887, %v612
          %v889 = vadd.f32 %v888, %v613
          %890 = vadd.xlane.f32.xlu0 %v889
          %v891 = vpop.xlane.xlu0 %890
          %v892 = vadd.f32 %v614, %v615
          %v893 = vadd.f32 %v892, %v616
          %v894 = vadd.f32 %v893, %v617
          %895 = vadd.xlane.f32.xlu0 %v894
          %v896 = vpop.xlane.xlu0 %895
          %v897 = vadd.f32 %v618, %v619
          %v898 = vadd.f32 %v897, %v620
          %v899 = vadd.f32 %v898, %v621
          %900 = vadd.xlane.f32.xlu0 %v899
          %v901 = vpop.xlane.xlu0 %900
          %v902 = vadd.f32 %v622, %v623
          %v903 = vadd.f32 %v902, %v624
          %v904 = vadd.f32 %v903, %v625
          %905 = vadd.xlane.f32.xlu0 %v904
          %v906 = vpop.xlane.xlu0 %905
          %v907 = vadd.f32 %v626, %v627
          %v908 = vadd.f32 %v907, %v628
          %v909 = vadd.f32 %v908, %v629
          %910 = vadd.xlane.f32.xlu0 %v909
          %v911 = vpop.xlane.xlu0 %910
          %v912 = vadd.f32 %v630, %v631
          %v913 = vadd.f32 %v912, %v632
          %v914 = vadd.f32 %v913, %v633
          %915 = vadd.xlane.f32.xlu0 %v914
          %v916 = vpop.xlane.xlu0 %915
          %v917 = vadd.f32 %v634, %v635
          %v918 = vadd.f32 %v917, %v636
          %v919 = vadd.f32 %v918, %v637
          %920 = vadd.xlane.f32.xlu0 %v919
          %v921 = vpop.xlane.xlu0 %920
          %v922 = vadd.f32 %v638, %v639
          %v923 = vadd.f32 %v922, %v640
          %v924 = vadd.f32 %v923, %v641
          %925 = vadd.xlane.f32.xlu0 %v924
          %v926 = vpop.xlane.xlu0 %925
          %v927 = vadd.f32 %v642, %v643
          %v928 = vadd.f32 %v927, %v644
          %v929 = vadd.f32 %v928, %v645
          %930 = vadd.xlane.f32.xlu0 %v929
          %v931 = vpop.xlane.xlu0 %930
          %v932 = vadd.f32 %v646, %v647
          %v933 = vadd.f32 %v932, %v648
          %v934 = vadd.f32 %v933, %v649
          %935 = vadd.xlane.f32.xlu0 %v934
          %v936 = vpop.xlane.xlu0 %935
          %v937 = vadd.f32 %v650, %v651
          %v938 = vadd.f32 %v937, %v652
          %v939 = vadd.f32 %v938, %v653
          %940 = vadd.xlane.f32.xlu0 %v939
          %v941 = vpop.xlane.xlu0 %940
          %v942 = vadd.f32 %v654, %v655
          %v943 = vadd.f32 %v942, %v656
          %v944 = vadd.f32 %v943, %v657
          %945 = vadd.xlane.f32.xlu0 %v944
          %v946 = vpop.xlane.xlu0 %945
          %v947 = vadd.f32 %v658, %v659
          %v948 = vadd.f32 %v947, %v660
          %v949 = vadd.f32 %v948, %v661
          %950 = vadd.xlane.f32.xlu0 %v949
          %v951 = vpop.xlane.xlu0 %950
          %v952 = vadd.f32 %v662, %v663
          %v953 = vadd.f32 %v952, %v664
          %v954 = vadd.f32 %v953, %v665
          %955 = vadd.xlane.f32.xlu0 %v954
          %v956 = vpop.xlane.xlu0 %955
          %v957 = vadd.f32 %v666, %v667
          %v958 = vadd.f32 %v957, %v668
          %v959 = vadd.f32 %v958, %v669
          %960 = vadd.xlane.f32.xlu0 %v959
          %v961 = vpop.xlane.xlu0 %960
          %v962 = vadd.f32 %v670, %v671
          %v963 = vadd.f32 %v962, %v672
          %v964 = vadd.f32 %v963, %v673
          %965 = vadd.xlane.f32.xlu0 %v964
          %v966 = vpop.xlane.xlu0 %965
          %v967 = vadd.f32 %v674, %v675
          %v968 = vadd.f32 %v967, %v676
          %v969 = vadd.f32 %v968, %v677
          %970 = vadd.xlane.f32.xlu0 %v969
          %v971 = vpop.xlane.xlu0 %970
          %v972 = vadd.f32 %v678, %v679
          %v973 = vadd.f32 %v972, %v680
          %v974 = vadd.f32 %v973, %v681
          %975 = vadd.xlane.f32.xlu0 %v974
          %v976 = vpop.xlane.xlu0 %975
          %v977 = vadd.f32 %v682, %v683
          %v978 = vadd.f32 %v977, %v684
          %v979 = vadd.f32 %v978, %v685
          %980 = vadd.xlane.f32.xlu0 %v979
          %v981 = vpop.xlane.xlu0 %980
          %v982 = vadd.f32 %v686, %v687
          %v983 = vadd.f32 %v982, %v688
          %v984 = vadd.f32 %v983, %v689
          %985 = vadd.xlane.f32.xlu0 %v984
          %v986 = vpop.xlane.xlu0 %985
          %v987 = vadd.f32 %v690, %v691
          %v988 = vadd.f32 %v987, %v692
          %v989 = vadd.f32 %v988, %v693
          %990 = vadd.xlane.f32.xlu0 %v989
          %v991 = vpop.xlane.xlu0 %990
          %v992 = vadd.f32 %v694, %v695
          %v993 = vadd.f32 %v992, %v696
          %v994 = vadd.f32 %v993, %v697
          %995 = vadd.xlane.f32.xlu0 %v994
          %v996 = vpop.xlane.xlu0 %995
          %v997 = vadd.f32 %v698, %v699
          %v998 = vadd.f32 %v997, %v700
          %v999 = vadd.f32 %v998, %v701
          %1000 = vadd.xlane.f32.xlu0 %v999
          %v1001 = vpop.xlane.xlu0 %1000
          %v1002 = vadd.f32 %v702, %v703
          %v1003 = vadd.f32 %v1002, %v704
          %v1004 = vadd.f32 %v1003, %v705
          %1005 = vadd.xlane.f32.xlu0 %v1004
          %v1006 = vpop.xlane.xlu0 %1005
          %v1007 = vadd.f32 %v706, %v707
          %v1008 = vadd.f32 %v1007, %v708
          %v1009 = vadd.f32 %v1008, %v709
          %1010 = vadd.xlane.f32.xlu0 %v1009
          %v1011 = vpop.xlane.xlu0 %1010
          %v1012 = vadd.f32 %v710, %v711
          %v1013 = vadd.f32 %v1012, %v712
          %v1014 = vadd.f32 %v1013, %v713
          %1015 = vadd.xlane.f32.xlu0 %v1014
          %v1016 = vpop.xlane.xlu0 %1015
          %v1017 = vadd.f32 %v714, %v715
          %v1018 = vadd.f32 %v1017, %v716
          %v1019 = vadd.f32 %v1018, %v717
          %1020 = vadd.xlane.f32.xlu0 %v1019
          %v1021 = vpop.xlane.xlu0 %1020
          %v1022 = vadd.f32 %v718, %v719
          %v1023 = vadd.f32 %v1022, %v720
          %v1024 = vadd.f32 %v1023, %v721
          %1025 = vadd.xlane.f32.xlu0 %v1024
          %v1026 = vpop.xlane.xlu0 %1025
          %v1027 = vadd.f32 %v722, %v723
          %v1028 = vadd.f32 %v1027, %v724
          %v1029 = vadd.f32 %v1028, %v725
          %1030 = vadd.xlane.f32.xlu0 %v1029
          %v1031 = vpop.xlane.xlu0 %1030
          %v1032 = vadd.f32 %v726, %v727
          %v1033 = vadd.f32 %v1032, %v728
          %v1034 = vadd.f32 %v1033, %v729
          %1035 = vadd.xlane.f32.xlu0 %v1034
          %v1036 = vpop.xlane.xlu0 %1035
          %v1037 = vadd.f32 %v730, %v731
          %v1038 = vadd.f32 %v1037, %v732
          %v1039 = vadd.f32 %v1038, %v733
          %1040 = vadd.xlane.f32.xlu0 %v1039
          %v1041 = vpop.xlane.xlu0 %1040
          %v1042 = vadd.f32 %v734, %v735
          %v1043 = vadd.f32 %v1042, %v736
          %v1044 = vadd.f32 %v1043, %v737
          %1045 = vadd.xlane.f32.xlu0 %v1044
          %v1046 = vpop.xlane.xlu0 %1045
          %v1047 = vadd.f32 %v738, %v739
          %v1048 = vadd.f32 %v1047, %v740
          %v1049 = vadd.f32 %v1048, %v741
          %1050 = vadd.xlane.f32.xlu0 %v1049
          %v1051 = vpop.xlane.xlu0 %1050
          %v1052 = vadd.f32 %v742, %v743
          %v1053 = vadd.f32 %v1052, %v744
          %v1054 = vadd.f32 %v1053, %v745
          %1055 = vadd.xlane.f32.xlu0 %v1054
          %v1056 = vpop.xlane.xlu0 %1055
          %v1057 = vadd.f32 %v746, %v747
          %v1058 = vadd.f32 %v1057, %v748
          %v1059 = vadd.f32 %v1058, %v749
          %1060 = vadd.xlane.f32.xlu0 %v1059
          %v1061 = vpop.xlane.xlu0 %1060
          %v1062 = vadd.f32 %v750, %v751
          %v1063 = vadd.f32 %v1062, %v752
          %v1064 = vadd.f32 %v1063, %v753
          %1065 = vadd.xlane.f32.xlu0 %v1064
          %v1066 = vpop.xlane.xlu0 %1065
          %v1067 = vadd.f32 %v754, %v755
          %v1068 = vadd.f32 %v1067, %v756
          %v1069 = vadd.f32 %v1068, %v757
          %1070 = vadd.xlane.f32.xlu0 %v1069
          %v1071 = vpop.xlane.xlu0 %1070
          %v1072 = vadd.f32 %v758, %v759
          %v1073 = vadd.f32 %v1072, %v760
          %v1074 = vadd.f32 %v1073, %v761
          %1075 = vadd.xlane.f32.xlu0 %v1074
          %v1076 = vpop.xlane.xlu0 %1075
          %v1077 = vadd.f32 %v762, %v763
          %v1078 = vadd.f32 %v1077, %v764
          %v1079 = vadd.f32 %v1078, %v765
          %1080 = vadd.xlane.f32.xlu0 %v1079
          %v1081 = vpop.xlane.xlu0 %1080
          %v1082 = vadd.f32 %v766, %v767
          %v1083 = vadd.f32 %v1082, %v768
          %v1084 = vadd.f32 %v1083, %v769
          %1085 = vadd.xlane.f32.xlu0 %v1084
          %v1086 = vpop.xlane.xlu0 %1085
          %v1087 = vadd.f32 %v770, %v771
          %v1088 = vadd.f32 %v1087, %v772
          %v1089 = vadd.f32 %v1088, %v773
          %1090 = vadd.xlane.f32.xlu0 %v1089
          %v1091 = vpop.xlane.xlu0 %1090
          %v1092 = vadd.f32 %v774, %v775
          %v1093 = vadd.f32 %v1092, %v776
          %v1094 = vadd.f32 %v1093, %v777
          %1095 = vadd.xlane.f32.xlu0 %v1094
          %v1096 = vpop.xlane.xlu0 %1095
          %v1097 = vadd.f32 %v778, %v779
          %v1098 = vadd.f32 %v1097, %v780
          %v1099 = vadd.f32 %v1098, %v781
          %1100 = vadd.xlane.f32.xlu0 %v1099
          %v1101 = vpop.xlane.xlu0 %1100
          %v1102 = vmax.f32 %v786, 1e-24
          %v1103 = vmax.f32 %v791, 1e-24
          %v1104 = vmax.f32 %v796, 1e-24
          %v1105 = vmax.f32 %v801, 1e-24
          %v1106 = vmax.f32 %v806, 1e-24
          %v1107 = vmax.f32 %v811, 1e-24
          %v1108 = vmax.f32 %v816, 1e-24
          %v1109 = vmax.f32 %v821, 1e-24
          %v1110 = vmax.f32 %v826, 1e-24
          %v1111 = vmax.f32 %v831, 1e-24
          %v1112 = vmax.f32 %v836, 1e-24
          %v1113 = vmax.f32 %v841, 1e-24
          %v1114 = vmax.f32 %v846, 1e-24
          %v1115 = vmax.f32 %v851, 1e-24
          %v1116 = vmax.f32 %v856, 1e-24
          %v1117 = vmax.f32 %v861, 1e-24
          %v1118 = vmax.f32 %v866, 1e-24
          %v1119 = vmax.f32 %v871, 1e-24
          %v1120 = vmax.f32 %v876, 1e-24
          %v1121 = vmax.f32 %v881, 1e-24
          %v1122 = vmax.f32 %v886, 1e-24
          %v1123 = vmax.f32 %v891, 1e-24
          %v1124 = vmax.f32 %v896, 1e-24
          %v1125 = vmax.f32 %v901, 1e-24
          %v1126 = vmax.f32 %v906, 1e-24
          %v1127 = vmax.f32 %v911, 1e-24
          %v1128 = vmax.f32 %v916, 1e-24
          %v1129 = vmax.f32 %v921, 1e-24
          %v1130 = vmax.f32 %v926, 1e-24
          %v1131 = vmax.f32 %v931, 1e-24
          %v1132 = vmax.f32 %v936, 1e-24
          %v1133 = vmax.f32 %v941, 1e-24
          %v1134 = vmax.f32 %v946, 1e-24
          %v1135 = vmax.f32 %v951, 1e-24
          %v1136 = vmax.f32 %v956, 1e-24
          %v1137 = vmax.f32 %v961, 1e-24
          %v1138 = vmax.f32 %v966, 1e-24
          %v1139 = vmax.f32 %v971, 1e-24
          %v1140 = vmax.f32 %v976, 1e-24
          %v1141 = vmax.f32 %v981, 1e-24
          %v1142 = vmax.f32 %v986, 1e-24
          %v1143 = vmax.f32 %v991, 1e-24
          %v1144 = vmax.f32 %v996, 1e-24
          %v1145 = vmax.f32 %v1001, 1e-24
          %v1146 = vmax.f32 %v1006, 1e-24
          %v1147 = vmax.f32 %v1011, 1e-24
          %v1148 = vmax.f32 %v1016, 1e-24
          %v1149 = vmax.f32 %v1021, 1e-24
          %v1150 = vmax.f32 %v1026, 1e-24
          %v1151 = vmax.f32 %v1031, 1e-24
          %v1152 = vmax.f32 %v1036, 1e-24
          %v1153 = vmax.f32 %v1041, 1e-24
          %v1154 = vmax.f32 %v1046, 1e-24
          %v1155 = vmax.f32 %v1051, 1e-24
          %v1156 = vmax.f32 %v1056, 1e-24
          %v1157 = vmax.f32 %v1061, 1e-24
          %v1158 = vmax.f32 %v1066, 1e-24
          %v1159 = vmax.f32 %v1071, 1e-24
          %v1160 = vmax.f32 %v1076, 1e-24
          %v1161 = vmax.f32 %v1081, 1e-24
          %v1162 = vmax.f32 %v1086, 1e-24
          %v1163 = vmax.f32 %v1091, 1e-24
          %v1164 = vmax.f32 %v1096, 1e-24
          %v1165 = vmax.f32 %v1101, 1e-24
          %v1166 = vrsqrt.pop %v1102
          %v1167 = vrsqrt.pop %v1103
          %v1168 = vrsqrt.pop %v1104
          %v1169 = vrsqrt.pop %v1105
          %v1170 = vrsqrt.pop %v1106
          %v1171 = vrsqrt.pop %v1107
          %v1172 = vrsqrt.pop %v1108
          %v1173 = vrsqrt.pop %v1109
          %v1174 = vrsqrt.pop %v1110
          %v1175 = vrsqrt.pop %v1111
          %v1176 = vrsqrt.pop %v1112
          %v1177 = vrsqrt.pop %v1113
          %v1178 = vrsqrt.pop %v1114
          %v1179 = vrsqrt.pop %v1115
          %v1180 = vrsqrt.pop %v1116
          %v1181 = vrsqrt.pop %v1117
          %v1182 = vrsqrt.pop %v1118
          %v1183 = vrsqrt.pop %v1119
          %v1184 = vrsqrt.pop %v1120
          %v1185 = vrsqrt.pop %v1121
          %v1186 = vrsqrt.pop %v1122
          %v1187 = vrsqrt.pop %v1123
          %v1188 = vrsqrt.pop %v1124
          %v1189 = vrsqrt.pop %v1125
          %v1190 = vrsqrt.pop %v1126
          %v1191 = vrsqrt.pop %v1127
          %v1192 = vrsqrt.pop %v1128
          %v1193 = vrsqrt.pop %v1129
          %v1194 = vrsqrt.pop %v1130
          %v1195 = vrsqrt.pop %v1131
          %v1196 = vrsqrt.pop %v1132
          %v1197 = vrsqrt.pop %v1133
          %v1198 = vrsqrt.pop %v1134
          %v1199 = vrsqrt.pop %v1135
          %v1200 = vrsqrt.pop %v1136
          %v1201 = vrsqrt.pop %v1137
          %v1202 = vrsqrt.pop %v1138
          %v1203 = vrsqrt.pop %v1139
          %v1204 = vrsqrt.pop %v1140
          %v1205 = vrsqrt.pop %v1141
          %v1206 = vrsqrt.pop %v1142
          %v1207 = vrsqrt.pop %v1143
          %v1208 = vrsqrt.pop %v1144
          %v1209 = vrsqrt.pop %v1145
          %v1210 = vrsqrt.pop %v1146
          %v1211 = vrsqrt.pop %v1147
          %v1212 = vrsqrt.pop %v1148
          %v1213 = vrsqrt.pop %v1149
          %v1214 = vrsqrt.pop %v1150
          %v1215 = vrsqrt.pop %v1151
          %v1216 = vrsqrt.pop %v1152
          %v1217 = vrsqrt.pop %v1153
          %v1218 = vrsqrt.pop %v1154
          %v1219 = vrsqrt.pop %v1155
          %v1220 = vrsqrt.pop %v1156
          %v1221 = vrsqrt.pop %v1157
          %v1222 = vrsqrt.pop %v1158
          %v1223 = vrsqrt.pop %v1159
          %v1224 = vrsqrt.pop %v1160
          %v1225 = vrsqrt.pop %v1161
          %v1226 = vrsqrt.pop %v1162
          %v1227 = vrsqrt.pop %v1163
          %v1228 = vrsqrt.pop %v1164
          %v1229 = vrsqrt.pop %v1165
          %vm1230 = vcmask 7168
          %1231 = vst.msk [vmem:[#allocation2] sm:$0xff] %vm1230, %v1166
          %1232 = vst.msk [vmem:[#allocation2 + $0x8] sm:$0xff] %vm1230, %v1167
          %1233 = vst.msk [vmem:[#allocation2 + $0x10] sm:$0xff] %vm1230, %v1168
          %1234 = vst.msk [vmem:[#allocation2 + $0x18] sm:$0xff] %vm1230, %v1169
          %1235 = vst.msk [vmem:[#allocation2 + $0x20] sm:$0xff] %vm1230, %v1170
          %1236 = vst.msk [vmem:[#allocation2 + $0x28] sm:$0xff] %vm1230, %v1171
          %1237 = vst.msk [vmem:[#allocation2 + $0x30] sm:$0xff] %vm1230, %v1172
          %1238 = vst.msk [vmem:[#allocation2 + $0x38] sm:$0xff] %vm1230, %v1173
          %1239 = vst.msk [vmem:[#allocation2 + $0x40] sm:$0xff] %vm1230, %v1174
          %1240 = vst.msk [vmem:[#allocation2 + $0x48] sm:$0xff] %vm1230, %v1175
          %1241 = vst.msk [vmem:[#allocation2 + $0x50] sm:$0xff] %vm1230, %v1176
          %1242 = vst.msk [vmem:[#allocation2 + $0x58] sm:$0xff] %vm1230, %v1177
          %1243 = vst.msk [vmem:[#allocation2 + $0x60] sm:$0xff] %vm1230, %v1178
          %1244 = vst.msk [vmem:[#allocation2 + $0x68] sm:$0xff] %vm1230, %v1179
          %1245 = vst.msk [vmem:[#allocation2 + $0x70] sm:$0xff] %vm1230, %v1180
          %1246 = vst.msk [vmem:[#allocation2 + $0x78] sm:$0xff] %vm1230, %v1181
          %1247 = vst.msk [vmem:[#allocation2 + $0x80] sm:$0xff] %vm1230, %v1182
          %1248 = vst.msk [vmem:[#allocation2 + $0x88] sm:$0xff] %vm1230, %v1183
          %1249 = vst.msk [vmem:[#allocation2 + $0x90] sm:$0xff] %vm1230, %v1184
          %1250 = vst.msk [vmem:[#allocation2 + $0x98] sm:$0xff] %vm1230, %v1185
          %1251 = vst.msk [vmem:[#allocation2 + $0xa0] sm:$0xff] %vm1230, %v1186
          %1252 = vst.msk [vmem:[#allocation2 + $0xa8] sm:$0xff] %vm1230, %v1187
          %1253 = vst.msk [vmem:[#allocation2 + $0xb0] sm:$0xff] %vm1230, %v1188
          %1254 = vst.msk [vmem:[#allocation2 + $0xb8] sm:$0xff] %vm1230, %v1189
          %1255 = vst.msk [vmem:[#allocation2 + $0xc0] sm:$0xff] %vm1230, %v1190
          %1256 = vst.msk [vmem:[#allocation2 + $0xc8] sm:$0xff] %vm1230, %v1191
          %1257 = vst.msk [vmem:[#allocation2 + $0xd0] sm:$0xff] %vm1230, %v1192
          %1258 = vst.msk [vmem:[#allocation2 + $0xd8] sm:$0xff] %vm1230, %v1193
          %1259 = vst.msk [vmem:[#allocation2 + $0xe0] sm:$0xff] %vm1230, %v1194
          %1260 = vst.msk [vmem:[#allocation2 + $0xe8] sm:$0xff] %vm1230, %v1195
          %1261 = vst.msk [vmem:[#allocation2 + $0xf0] sm:$0xff] %vm1230, %v1196
          %1262 = vst.msk [vmem:[#allocation2 + $0xf8] sm:$0xff] %vm1230, %v1197
          %1263 = vst.msk [vmem:[#allocation2 + $0x100] sm:$0xff] %vm1230, %v1198
          %1264 = vst.msk [vmem:[#allocation2 + $0x108] sm:$0xff] %vm1230, %v1199
          %1265 = vst.msk [vmem:[#allocation2 + $0x110] sm:$0xff] %vm1230, %v1200
          %1266 = vst.msk [vmem:[#allocation2 + $0x118] sm:$0xff] %vm1230, %v1201
          %1267 = vst.msk [vmem:[#allocation2 + $0x120] sm:$0xff] %vm1230, %v1202
          %1268 = vst.msk [vmem:[#allocation2 + $0x128] sm:$0xff] %vm1230, %v1203
          %1269 = vst.msk [vmem:[#allocation2 + $0x130] sm:$0xff] %vm1230, %v1204
          %1270 = vst.msk [vmem:[#allocation2 + $0x138] sm:$0xff] %vm1230, %v1205
          %1271 = vst.msk [vmem:[#allocation2 + $0x140] sm:$0xff] %vm1230, %v1206
          %1272 = vst.msk [vmem:[#allocation2 + $0x148] sm:$0xff] %vm1230, %v1207
          %1273 = vst.msk [vmem:[#allocation2 + $0x150] sm:$0xff] %vm1230, %v1208
          %1274 = vst.msk [vmem:[#allocation2 + $0x158] sm:$0xff] %vm1230, %v1209
          %1275 = vst.msk [vmem:[#allocation2 + $0x160] sm:$0xff] %vm1230, %v1210
          %1276 = vst.msk [vmem:[#allocation2 + $0x168] sm:$0xff] %vm1230, %v1211
          %1277 = vst.msk [vmem:[#allocation2 + $0x170] sm:$0xff] %vm1230, %v1212
          %1278 = vst.msk [vmem:[#allocation2 + $0x178] sm:$0xff] %vm1230, %v1213
          %1279 = vst.msk [vmem:[#allocation2 + $0x180] sm:$0xff] %vm1230, %v1214
          %1280 = vst.msk [vmem:[#allocation2 + $0x188] sm:$0xff] %vm1230, %v1215
          %1281 = vst.msk [vmem:[#allocation2 + $0x190] sm:$0xff] %vm1230, %v1216
          %1282 = vst.msk [vmem:[#allocation2 + $0x198] sm:$0xff] %vm1230, %v1217
          %1283 = vst.msk [vmem:[#allocation2 + $0x1a0] sm:$0xff] %vm1230, %v1218
          %1284 = vst.msk [vmem:[#allocation2 + $0x1a8] sm:$0xff] %vm1230, %v1219
          %1285 = vst.msk [vmem:[#allocation2 + $0x1b0] sm:$0xff] %vm1230, %v1220
          %1286 = vst.msk [vmem:[#allocation2 + $0x1b8] sm:$0xff] %vm1230, %v1221
          %1287 = vst.msk [vmem:[#allocation2 + $0x1c0] sm:$0xff] %vm1230, %v1222
          %1288 = vst.msk [vmem:[#allocation2 + $0x1c8] sm:$0xff] %vm1230, %v1223
          %1289 = vst.msk [vmem:[#allocation2 + $0x1d0] sm:$0xff] %vm1230, %v1224
          %1290 = vst.msk [vmem:[#allocation2 + $0x1d8] sm:$0xff] %vm1230, %v1225
          %1291 = vst.msk [vmem:[#allocation2 + $0x1e0] sm:$0xff] %vm1230, %v1226
          %1292 = vst.msk [vmem:[#allocation2 + $0x1e8] sm:$0xff] %vm1230, %v1227
          %1293 = vst.msk [vmem:[#allocation2 + $0x1f0] sm:$0xff] %vm1230, %v1228
          %1294 = vst.msk [vmem:[#allocation2 + $0x1f8] sm:$0xff] %vm1230, %v1229
        $region44: #{vector_similarity_forward.1} parent=31 // pred_fallthru
          _
        %v1295 = vld [vmem:[#allocation3] sm:$0xff]
        %v1296 = vld [vmem:[#allocation3 + $0x8] sm:$0xff]
        %v1297 = vld [vmem:[#allocation3 + $0x10] sm:$0xff]
        %v1298 = vld [vmem:[#allocation3 + $0x18] sm:$0xff]
        %v1299 = vld [vmem:[#allocation3 + $0x20] sm:$0xff]
        %v1300 = vld [vmem:[#allocation3 + $0x28] sm:$0xff]
        %v1301 = vld [vmem:[#allocation3 + $0x30] sm:$0xff]
        %v1302 = vld [vmem:[#allocation3 + $0x38] sm:$0xff]
        %v1303 = vld [vmem:[#allocation3 + $0x40] sm:$0xff]
        %v1304 = vld [vmem:[#allocation3 + $0x48] sm:$0xff]
        %v1305 = vld [vmem:[#allocation3 + $0x50] sm:$0xff]
        %v1306 = vld [vmem:[#allocation3 + $0x58] sm:$0xff]
        %v1307 = vld [vmem:[%s252] sm:$0xff]
        %v1308 = vld [vmem:[%s252 + $0x8] sm:$0xff]
        %v1309 = vld [vmem:[%s252 + $0x10] sm:$0xff]
        %1311 = vset.pattern.permute.xlu0 0
        %1312 = vperm.xlu0 %1311, %v1307
        %v1313 = vpop.permute.xlu0 %1312
        %1316 = vset.pattern.permute.xlu0 0
        %1317 = vperm.xlu0 %1316, %v1308
        %v1318 = vpop.permute.xlu0 %1317
        %1321 = vset.pattern.permute.xlu0 0
        %1322 = vperm.xlu0 %1321, %v1309
        %v1323 = vpop.permute.xlu0 %1322
        %v1325 = vmul.f32 %v1295, %v1313
        %v1326 = vmul.f32 %v1296, %v1313
        %v1327 = vmul.f32 %v1297, %v1313
        %v1328 = vmul.f32 %v1298, %v1313
        %v1329 = vmul.f32 %v1299, %v1318
        %v1330 = vmul.f32 %v1300, %v1318
        %v1331 = vmul.f32 %v1301, %v1318
        %v1332 = vmul.f32 %v1302, %v1318
        %v1333 = vmul.f32 %v1303, %v1323
        %v1334 = vmul.f32 %v1304, %v1323
        %v1335 = vmul.f32 %v1305, %v1323
        %v1336 = vmul.f32 %v1306, %v1323
        %v1337 = vld [vmem:[%s220] sm:$0xff]
        %v1338 = vld [vmem:[%s220 + $0x8] sm:$0xff]
        %v1339 = vld [vmem:[%s220 + $0x10] sm:$0xff]
        %v1340 = vld [vmem:[%s220 + $0x18] sm:$0xff]
        %v1341 = vld [vmem:[%s220 + $0x20] sm:$0xff]
        %v1342 = vld [vmem:[%s220 + $0x28] sm:$0xff]
        %v1343 = vld [vmem:[%s220 + $0x30] sm:$0xff]
        %v1344 = vld [vmem:[%s220 + $0x38] sm:$0xff]
        %v1345 = vld [vmem:[%s220 + $0x40] sm:$0xff]
        %v1346 = vld [vmem:[%s220 + $0x48] sm:$0xff]
        %v1347 = vld [vmem:[%s220 + $0x50] sm:$0xff]
        %v1348 = vld [vmem:[%s220 + $0x58] sm:$0xff]
        %v1349 = vld [vmem:[%s220 + $0x60] sm:$0xff]
        %v1350 = vld [vmem:[%s220 + $0x68] sm:$0xff]
        %v1351 = vld [vmem:[%s220 + $0x70] sm:$0xff]
        %v1352 = vld [vmem:[%s220 + $0x78] sm:$0xff]
        %v1353 = vld [vmem:[%s220 + $0x80] sm:$0xff]
        %v1354 = vld [vmem:[%s220 + $0x88] sm:$0xff]
        %v1355 = vld [vmem:[%s220 + $0x90] sm:$0xff]
        %v1356 = vld [vmem:[%s220 + $0x98] sm:$0xff]
        %v1357 = vld [vmem:[%s220 + $0xa0] sm:$0xff]
        %v1358 = vld [vmem:[%s220 + $0xa8] sm:$0xff]
        %v1359 = vld [vmem:[%s220 + $0xb0] sm:$0xff]
        %v1360 = vld [vmem:[%s220 + $0xb8] sm:$0xff]
        %v1361 = vld [vmem:[%s220 + $0xc0] sm:$0xff]
        %v1362 = vld [vmem:[%s220 + $0xc8] sm:$0xff]
        %v1363 = vld [vmem:[%s220 + $0xd0] sm:$0xff]
        %v1364 = vld [vmem:[%s220 + $0xd8] sm:$0xff]
        %v1365 = vld [vmem:[%s220 + $0xe0] sm:$0xff]
        %v1366 = vld [vmem:[%s220 + $0xe8] sm:$0xff]
        %v1367 = vld [vmem:[%s220 + $0xf0] sm:$0xff]
        %v1368 = vld [vmem:[%s220 + $0xf8] sm:$0xff]
        %v1369 = vld [vmem:[%s220 + $0x100] sm:$0xff]
        %v1370 = vld [vmem:[%s220 + $0x108] sm:$0xff]
        %v1371 = vld [vmem:[%s220 + $0x110] sm:$0xff]
        %v1372 = vld [vmem:[%s220 + $0x118] sm:$0xff]
        %v1373 = vld [vmem:[%s220 + $0x120] sm:$0xff]
        %v1374 = vld [vmem:[%s220 + $0x128] sm:$0xff]
        %v1375 = vld [vmem:[%s220 + $0x130] sm:$0xff]
        %v1376 = vld [vmem:[%s220 + $0x138] sm:$0xff]
        %v1377 = vld [vmem:[%s220 + $0x140] sm:$0xff]
        %v1378 = vld [vmem:[%s220 + $0x148] sm:$0xff]
        %v1379 = vld [vmem:[%s220 + $0x150] sm:$0xff]
        %v1380 = vld [vmem:[%s220 + $0x158] sm:$0xff]
        %v1381 = vld [vmem:[%s220 + $0x160] sm:$0xff]
        %v1382 = vld [vmem:[%s220 + $0x168] sm:$0xff]
        %v1383 = vld [vmem:[%s220 + $0x170] sm:$0xff]
        %v1384 = vld [vmem:[%s220 + $0x178] sm:$0xff]
        %v1385 = vld [vmem:[%s220 + $0x180] sm:$0xff]
        %v1386 = vld [vmem:[%s220 + $0x188] sm:$0xff]
        %v1387 = vld [vmem:[%s220 + $0x190] sm:$0xff]
        %v1388 = vld [vmem:[%s220 + $0x198] sm:$0xff]
        %v1389 = vld [vmem:[%s220 + $0x1a0] sm:$0xff]
        %v1390 = vld [vmem:[%s220 + $0x1a8] sm:$0xff]
        %v1391 = vld [vmem:[%s220 + $0x1b0] sm:$0xff]
        %v1392 = vld [vmem:[%s220 + $0x1b8] sm:$0xff]
        %v1393 = vld [vmem:[%s220 + $0x1c0] sm:$0xff]
        %v1394 = vld [vmem:[%s220 + $0x1c8] sm:$0xff]
        %v1395 = vld [vmem:[%s220 + $0x1d0] sm:$0xff]
        %v1396 = vld [vmem:[%s220 + $0x1d8] sm:$0xff]
        %v1397 = vld [vmem:[%s220 + $0x1e0] sm:$0xff]
        %v1398 = vld [vmem:[%s220 + $0x1e8] sm:$0xff]
        %v1399 = vld [vmem:[%s220 + $0x1f0] sm:$0xff]
        %v1400 = vld [vmem:[%s220 + $0x1f8] sm:$0xff]
        %v1401 = vld [vmem:[%s220 + $0x200] sm:$0xff]
        %v1402 = vld [vmem:[%s220 + $0x208] sm:$0xff]
        %v1403 = vld [vmem:[%s220 + $0x210] sm:$0xff]
        %v1404 = vld [vmem:[%s220 + $0x218] sm:$0xff]
        %v1405 = vld [vmem:[%s220 + $0x220] sm:$0xff]
        %v1406 = vld [vmem:[%s220 + $0x228] sm:$0xff]
        %v1407 = vld [vmem:[%s220 + $0x230] sm:$0xff]
        %v1408 = vld [vmem:[%s220 + $0x238] sm:$0xff]
        %v1409 = vld [vmem:[%s220 + $0x240] sm:$0xff]
        %v1410 = vld [vmem:[%s220 + $0x248] sm:$0xff]
        %v1411 = vld [vmem:[%s220 + $0x250] sm:$0xff]
        %v1412 = vld [vmem:[%s220 + $0x258] sm:$0xff]
        %v1413 = vld [vmem:[%s220 + $0x260] sm:$0xff]
        %v1414 = vld [vmem:[%s220 + $0x268] sm:$0xff]
        %v1415 = vld [vmem:[%s220 + $0x270] sm:$0xff]
        %v1416 = vld [vmem:[%s220 + $0x278] sm:$0xff]
        %v1417 = vld [vmem:[%s220 + $0x280] sm:$0xff]
        %v1418 = vld [vmem:[%s220 + $0x288] sm:$0xff]
        %v1419 = vld [vmem:[%s220 + $0x290] sm:$0xff]
        %v1420 = vld [vmem:[%s220 + $0x298] sm:$0xff]
        %v1421 = vld [vmem:[%s220 + $0x2a0] sm:$0xff]
        %v1422 = vld [vmem:[%s220 + $0x2a8] sm:$0xff]
        %v1423 = vld [vmem:[%s220 + $0x2b0] sm:$0xff]
        %v1424 = vld [vmem:[%s220 + $0x2b8] sm:$0xff]
        %v1425 = vld [vmem:[%s220 + $0x2c0] sm:$0xff]
        %v1426 = vld [vmem:[%s220 + $0x2c8] sm:$0xff]
        %v1427 = vld [vmem:[%s220 + $0x2d0] sm:$0xff]
        %v1428 = vld [vmem:[%s220 + $0x2d8] sm:$0xff]
        %v1429 = vld [vmem:[%s220 + $0x2e0] sm:$0xff]
        %v1430 = vld [vmem:[%s220 + $0x2e8] sm:$0xff]
        %v1431 = vld [vmem:[%s220 + $0x2f0] sm:$0xff]
        %v1432 = vld [vmem:[%s220 + $0x2f8] sm:$0xff]
        %v1433 = vld [vmem:[%s220 + $0x300] sm:$0xff]
        %v1434 = vld [vmem:[%s220 + $0x308] sm:$0xff]
        %v1435 = vld [vmem:[%s220 + $0x310] sm:$0xff]
        %v1436 = vld [vmem:[%s220 + $0x318] sm:$0xff]
        %v1437 = vld [vmem:[%s220 + $0x320] sm:$0xff]
        %v1438 = vld [vmem:[%s220 + $0x328] sm:$0xff]
        %v1439 = vld [vmem:[%s220 + $0x330] sm:$0xff]
        %v1440 = vld [vmem:[%s220 + $0x338] sm:$0xff]
        %v1441 = vld [vmem:[%s220 + $0x340] sm:$0xff]
        %v1442 = vld [vmem:[%s220 + $0x348] sm:$0xff]
        %v1443 = vld [vmem:[%s220 + $0x350] sm:$0xff]
        %v1444 = vld [vmem:[%s220 + $0x358] sm:$0xff]
        %v1445 = vld [vmem:[%s220 + $0x360] sm:$0xff]
        %v1446 = vld [vmem:[%s220 + $0x368] sm:$0xff]
        %v1447 = vld [vmem:[%s220 + $0x370] sm:$0xff]
        %v1448 = vld [vmem:[%s220 + $0x378] sm:$0xff]
        %v1449 = vld [vmem:[%s220 + $0x380] sm:$0xff]
        %v1450 = vld [vmem:[%s220 + $0x388] sm:$0xff]
        %v1451 = vld [vmem:[%s220 + $0x390] sm:$0xff]
        %v1452 = vld [vmem:[%s220 + $0x398] sm:$0xff]
        %v1453 = vld [vmem:[%s220 + $0x3a0] sm:$0xff]
        %v1454 = vld [vmem:[%s220 + $0x3a8] sm:$0xff]
        %v1455 = vld [vmem:[%s220 + $0x3b0] sm:$0xff]
        %v1456 = vld [vmem:[%s220 + $0x3b8] sm:$0xff]
        %v1457 = vld [vmem:[%s220 + $0x3c0] sm:$0xff]
        %v1458 = vld [vmem:[%s220 + $0x3c8] sm:$0xff]
        %v1459 = vld [vmem:[%s220 + $0x3d0] sm:$0xff]
        %v1460 = vld [vmem:[%s220 + $0x3d8] sm:$0xff]
        %v1461 = vld [vmem:[%s220 + $0x3e0] sm:$0xff]
        %v1462 = vld [vmem:[%s220 + $0x3e8] sm:$0xff]
        %v1463 = vld [vmem:[%s220 + $0x3f0] sm:$0xff]
        %v1464 = vld [vmem:[%s220 + $0x3f8] sm:$0xff]
        %v1465 = vld [vmem:[%s220 + $0x400] sm:$0xff]
        %v1466 = vld [vmem:[%s220 + $0x408] sm:$0xff]
        %v1467 = vld [vmem:[%s220 + $0x410] sm:$0xff]
        %v1468 = vld [vmem:[%s220 + $0x418] sm:$0xff]
        %v1469 = vld [vmem:[%s220 + $0x420] sm:$0xff]
        %v1470 = vld [vmem:[%s220 + $0x428] sm:$0xff]
        %v1471 = vld [vmem:[%s220 + $0x430] sm:$0xff]
        %v1472 = vld [vmem:[%s220 + $0x438] sm:$0xff]
        %v1473 = vld [vmem:[%s220 + $0x440] sm:$0xff]
        %v1474 = vld [vmem:[%s220 + $0x448] sm:$0xff]
        %v1475 = vld [vmem:[%s220 + $0x450] sm:$0xff]
        %v1476 = vld [vmem:[%s220 + $0x458] sm:$0xff]
        %v1477 = vld [vmem:[%s220 + $0x460] sm:$0xff]
        %v1478 = vld [vmem:[%s220 + $0x468] sm:$0xff]
        %v1479 = vld [vmem:[%s220 + $0x470] sm:$0xff]
        %v1480 = vld [vmem:[%s220 + $0x478] sm:$0xff]
        %v1481 = vld [vmem:[%s220 + $0x480] sm:$0xff]
        %v1482 = vld [vmem:[%s220 + $0x488] sm:$0xff]
        %v1483 = vld [vmem:[%s220 + $0x490] sm:$0xff]
        %v1484 = vld [vmem:[%s220 + $0x498] sm:$0xff]
        %v1485 = vld [vmem:[%s220 + $0x4a0] sm:$0xff]
        %v1486 = vld [vmem:[%s220 + $0x4a8] sm:$0xff]
        %v1487 = vld [vmem:[%s220 + $0x4b0] sm:$0xff]
        %v1488 = vld [vmem:[%s220 + $0x4b8] sm:$0xff]
        %v1489 = vld [vmem:[%s220 + $0x4c0] sm:$0xff]
        %v1490 = vld [vmem:[%s220 + $0x4c8] sm:$0xff]
        %v1491 = vld [vmem:[%s220 + $0x4d0] sm:$0xff]
        %v1492 = vld [vmem:[%s220 + $0x4d8] sm:$0xff]
        %v1493 = vld [vmem:[%s220 + $0x4e0] sm:$0xff]
        %v1494 = vld [vmem:[%s220 + $0x4e8] sm:$0xff]
        %v1495 = vld [vmem:[%s220 + $0x4f0] sm:$0xff]
        %v1496 = vld [vmem:[%s220 + $0x4f8] sm:$0xff]
        %v1497 = vld [vmem:[%s220 + $0x500] sm:$0xff]
        %v1498 = vld [vmem:[%s220 + $0x508] sm:$0xff]
        %v1499 = vld [vmem:[%s220 + $0x510] sm:$0xff]
        %v1500 = vld [vmem:[%s220 + $0x518] sm:$0xff]
        %v1501 = vld [vmem:[%s220 + $0x520] sm:$0xff]
        %v1502 = vld [vmem:[%s220 + $0x528] sm:$0xff]
        %v1503 = vld [vmem:[%s220 + $0x530] sm:$0xff]
        %v1504 = vld [vmem:[%s220 + $0x538] sm:$0xff]
        %v1505 = vld [vmem:[%s220 + $0x540] sm:$0xff]
        %v1506 = vld [vmem:[%s220 + $0x548] sm:$0xff]
        %v1507 = vld [vmem:[%s220 + $0x550] sm:$0xff]
        %v1508 = vld [vmem:[%s220 + $0x558] sm:$0xff]
        %v1509 = vld [vmem:[%s220 + $0x560] sm:$0xff]
        %v1510 = vld [vmem:[%s220 + $0x568] sm:$0xff]
        %v1511 = vld [vmem:[%s220 + $0x570] sm:$0xff]
        %v1512 = vld [vmem:[%s220 + $0x578] sm:$0xff]
        %v1513 = vld [vmem:[%s220 + $0x580] sm:$0xff]
        %v1514 = vld [vmem:[%s220 + $0x588] sm:$0xff]
        %v1515 = vld [vmem:[%s220 + $0x590] sm:$0xff]
        %v1516 = vld [vmem:[%s220 + $0x598] sm:$0xff]
        %v1517 = vld [vmem:[%s220 + $0x5a0] sm:$0xff]
        %v1518 = vld [vmem:[%s220 + $0x5a8] sm:$0xff]
        %v1519 = vld [vmem:[%s220 + $0x5b0] sm:$0xff]
        %v1520 = vld [vmem:[%s220 + $0x5b8] sm:$0xff]
        %v1521 = vld [vmem:[%s220 + $0x5c0] sm:$0xff]
        %v1522 = vld [vmem:[%s220 + $0x5c8] sm:$0xff]
        %v1523 = vld [vmem:[%s220 + $0x5d0] sm:$0xff]
        %v1524 = vld [vmem:[%s220 + $0x5d8] sm:$0xff]
        %v1525 = vld [vmem:[%s220 + $0x5e0] sm:$0xff]
        %v1526 = vld [vmem:[%s220 + $0x5e8] sm:$0xff]
        %v1527 = vld [vmem:[%s220 + $0x5f0] sm:$0xff]
        %v1528 = vld [vmem:[%s220 + $0x5f8] sm:$0xff]
        %v1529 = vld [vmem:[%s220 + $0x600] sm:$0xff]
        %v1530 = vld [vmem:[%s220 + $0x608] sm:$0xff]
        %v1531 = vld [vmem:[%s220 + $0x610] sm:$0xff]
        %v1532 = vld [vmem:[%s220 + $0x618] sm:$0xff]
        %v1533 = vld [vmem:[%s220 + $0x620] sm:$0xff]
        %v1534 = vld [vmem:[%s220 + $0x628] sm:$0xff]
        %v1535 = vld [vmem:[%s220 + $0x630] sm:$0xff]
        %v1536 = vld [vmem:[%s220 + $0x638] sm:$0xff]
        %v1537 = vld [vmem:[%s220 + $0x640] sm:$0xff]
        %v1538 = vld [vmem:[%s220 + $0x648] sm:$0xff]
        %v1539 = vld [vmem:[%s220 + $0x650] sm:$0xff]
        %v1540 = vld [vmem:[%s220 + $0x658] sm:$0xff]
        %v1541 = vld [vmem:[%s220 + $0x660] sm:$0xff]
        %v1542 = vld [vmem:[%s220 + $0x668] sm:$0xff]
        %v1543 = vld [vmem:[%s220 + $0x670] sm:$0xff]
        %v1544 = vld [vmem:[%s220 + $0x678] sm:$0xff]
        %v1545 = vld [vmem:[%s220 + $0x680] sm:$0xff]
        %v1546 = vld [vmem:[%s220 + $0x688] sm:$0xff]
        %v1547 = vld [vmem:[%s220 + $0x690] sm:$0xff]
        %v1548 = vld [vmem:[%s220 + $0x698] sm:$0xff]
        %v1549 = vld [vmem:[%s220 + $0x6a0] sm:$0xff]
        %v1550 = vld [vmem:[%s220 + $0x6a8] sm:$0xff]
        %v1551 = vld [vmem:[%s220 + $0x6b0] sm:$0xff]
        %v1552 = vld [vmem:[%s220 + $0x6b8] sm:$0xff]
        %v1553 = vld [vmem:[%s220 + $0x6c0] sm:$0xff]
        %v1554 = vld [vmem:[%s220 + $0x6c8] sm:$0xff]
        %v1555 = vld [vmem:[%s220 + $0x6d0] sm:$0xff]
        %v1556 = vld [vmem:[%s220 + $0x6d8] sm:$0xff]
        %v1557 = vld [vmem:[%s220 + $0x6e0] sm:$0xff]
        %v1558 = vld [vmem:[%s220 + $0x6e8] sm:$0xff]
        %v1559 = vld [vmem:[%s220 + $0x6f0] sm:$0xff]
        %v1560 = vld [vmem:[%s220 + $0x6f8] sm:$0xff]
        %v1561 = vld [vmem:[%s220 + $0x700] sm:$0xff]
        %v1562 = vld [vmem:[%s220 + $0x708] sm:$0xff]
        %v1563 = vld [vmem:[%s220 + $0x710] sm:$0xff]
        %v1564 = vld [vmem:[%s220 + $0x718] sm:$0xff]
        %v1565 = vld [vmem:[%s220 + $0x720] sm:$0xff]
        %v1566 = vld [vmem:[%s220 + $0x728] sm:$0xff]
        %v1567 = vld [vmem:[%s220 + $0x730] sm:$0xff]
        %v1568 = vld [vmem:[%s220 + $0x738] sm:$0xff]
        %v1569 = vld [vmem:[%s220 + $0x740] sm:$0xff]
        %v1570 = vld [vmem:[%s220 + $0x748] sm:$0xff]
        %v1571 = vld [vmem:[%s220 + $0x750] sm:$0xff]
        %v1572 = vld [vmem:[%s220 + $0x758] sm:$0xff]
        %v1573 = vld [vmem:[%s220 + $0x760] sm:$0xff]
        %v1574 = vld [vmem:[%s220 + $0x768] sm:$0xff]
        %v1575 = vld [vmem:[%s220 + $0x770] sm:$0xff]
        %v1576 = vld [vmem:[%s220 + $0x778] sm:$0xff]
        %v1577 = vld [vmem:[%s220 + $0x780] sm:$0xff]
        %v1578 = vld [vmem:[%s220 + $0x788] sm:$0xff]
        %v1579 = vld [vmem:[%s220 + $0x790] sm:$0xff]
        %v1580 = vld [vmem:[%s220 + $0x798] sm:$0xff]
        %v1581 = vld [vmem:[%s220 + $0x7a0] sm:$0xff]
        %v1582 = vld [vmem:[%s220 + $0x7a8] sm:$0xff]
        %v1583 = vld [vmem:[%s220 + $0x7b0] sm:$0xff]
        %v1584 = vld [vmem:[%s220 + $0x7b8] sm:$0xff]
        %v1585 = vld [vmem:[%s220 + $0x7c0] sm:$0xff]
        %v1586 = vld [vmem:[%s220 + $0x7c8] sm:$0xff]
        %v1587 = vld [vmem:[%s220 + $0x7d0] sm:$0xff]
        %v1588 = vld [vmem:[%s220 + $0x7d8] sm:$0xff]
        %v1589 = vld [vmem:[%s220 + $0x7e0] sm:$0xff]
        %v1590 = vld [vmem:[%s220 + $0x7e8] sm:$0xff]
        %v1591 = vld [vmem:[%s220 + $0x7f0] sm:$0xff]
        %v1592 = vld [vmem:[%s220 + $0x7f8] sm:$0xff]
        %v1593 = vld [vmem:[#allocation2] sm:$0xff]
        %v1594 = vld [vmem:[#allocation2 + $0x8] sm:$0xff]
        %v1595 = vld [vmem:[#allocation2 + $0x10] sm:$0xff]
        %v1596 = vld [vmem:[#allocation2 + $0x18] sm:$0xff]
        %v1597 = vld [vmem:[#allocation2 + $0x20] sm:$0xff]
        %v1598 = vld [vmem:[#allocation2 + $0x28] sm:$0xff]
        %v1599 = vld [vmem:[#allocation2 + $0x30] sm:$0xff]
        %v1600 = vld [vmem:[#allocation2 + $0x38] sm:$0xff]
        %v1601 = vld [vmem:[#allocation2 + $0x40] sm:$0xff]
        %v1602 = vld [vmem:[#allocation2 + $0x48] sm:$0xff]
        %v1603 = vld [vmem:[#allocation2 + $0x50] sm:$0xff]
        %v1604 = vld [vmem:[#allocation2 + $0x58] sm:$0xff]
        %v1605 = vld [vmem:[#allocation2 + $0x60] sm:$0xff]
        %v1606 = vld [vmem:[#allocation2 + $0x68] sm:$0xff]
        %v1607 = vld [vmem:[#allocation2 + $0x70] sm:$0xff]
        %v1608 = vld [vmem:[#allocation2 + $0x78] sm:$0xff]
        %v1609 = vld [vmem:[#allocation2 + $0x80] sm:$0xff]
        %v1610 = vld [vmem:[#allocation2 + $0x88] sm:$0xff]
        %v1611 = vld [vmem:[#allocation2 + $0x90] sm:$0xff]
        %v1612 = vld [vmem:[#allocation2 + $0x98] sm:$0xff]
        %v1613 = vld [vmem:[#allocation2 + $0xa0] sm:$0xff]
        %v1614 = vld [vmem:[#allocation2 + $0xa8] sm:$0xff]
        %v1615 = vld [vmem:[#allocation2 + $0xb0] sm:$0xff]
        %v1616 = vld [vmem:[#allocation2 + $0xb8] sm:$0xff]
        %v1617 = vld [vmem:[#allocation2 + $0xc0] sm:$0xff]
        %v1618 = vld [vmem:[#allocation2 + $0xc8] sm:$0xff]
        %v1619 = vld [vmem:[#allocation2 + $0xd0] sm:$0xff]
        %v1620 = vld [vmem:[#allocation2 + $0xd8] sm:$0xff]
        %v1621 = vld [vmem:[#allocation2 + $0xe0] sm:$0xff]
        %v1622 = vld [vmem:[#allocation2 + $0xe8] sm:$0xff]
        %v1623 = vld [vmem:[#allocation2 + $0xf0] sm:$0xff]
        %v1624 = vld [vmem:[#allocation2 + $0xf8] sm:$0xff]
        %v1625 = vld [vmem:[#allocation2 + $0x100] sm:$0xff]
        %v1626 = vld [vmem:[#allocation2 + $0x108] sm:$0xff]
        %v1627 = vld [vmem:[#allocation2 + $0x110] sm:$0xff]
        %v1628 = vld [vmem:[#allocation2 + $0x118] sm:$0xff]
        %v1629 = vld [vmem:[#allocation2 + $0x120] sm:$0xff]
        %v1630 = vld [vmem:[#allocation2 + $0x128] sm:$0xff]
        %v1631 = vld [vmem:[#allocation2 + $0x130] sm:$0xff]
        %v1632 = vld [vmem:[#allocation2 + $0x138] sm:$0xff]
        %v1633 = vld [vmem:[#allocation2 + $0x140] sm:$0xff]
        %v1634 = vld [vmem:[#allocation2 + $0x148] sm:$0xff]
        %v1635 = vld [vmem:[#allocation2 + $0x150] sm:$0xff]
        %v1636 = vld [vmem:[#allocation2 + $0x158] sm:$0xff]
        %v1637 = vld [vmem:[#allocation2 + $0x160] sm:$0xff]
        %v1638 = vld [vmem:[#allocation2 + $0x168] sm:$0xff]
        %v1639 = vld [vmem:[#allocation2 + $0x170] sm:$0xff]
        %v1640 = vld [vmem:[#allocation2 + $0x178] sm:$0xff]
        %v1641 = vld [vmem:[#allocation2 + $0x180] sm:$0xff]
        %v1642 = vld [vmem:[#allocation2 + $0x188] sm:$0xff]
        %v1643 = vld [vmem:[#allocation2 + $0x190] sm:$0xff]
        %v1644 = vld [vmem:[#allocation2 + $0x198] sm:$0xff]
        %v1645 = vld [vmem:[#allocation2 + $0x1a0] sm:$0xff]
        %v1646 = vld [vmem:[#allocation2 + $0x1a8] sm:$0xff]
        %v1647 = vld [vmem:[#allocation2 + $0x1b0] sm:$0xff]
        %v1648 = vld [vmem:[#allocation2 + $0x1b8] sm:$0xff]
        %v1649 = vld [vmem:[#allocation2 + $0x1c0] sm:$0xff]
        %v1650 = vld [vmem:[#allocation2 + $0x1c8] sm:$0xff]
        %v1651 = vld [vmem:[#allocation2 + $0x1d0] sm:$0xff]
        %v1652 = vld [vmem:[#allocation2 + $0x1d8] sm:$0xff]
        %v1653 = vld [vmem:[#allocation2 + $0x1e0] sm:$0xff]
        %v1654 = vld [vmem:[#allocation2 + $0x1e8] sm:$0xff]
        %v1655 = vld [vmem:[#allocation2 + $0x1f0] sm:$0xff]
        %v1656 = vld [vmem:[#allocation2 + $0x1f8] sm:$0xff]
        %1658 = vset.pattern.permute.xlu0 0
        %1659 = vperm.xlu0 %1658, %v1593
        %v1660 = vpop.permute.xlu0 %1659
        %1663 = vset.pattern.permute.xlu0 0
        %1664 = vperm.xlu0 %1663, %v1594
        %v1665 = vpop.permute.xlu0 %1664
        %1668 = vset.pattern.permute.xlu0 0
        %1669 = vperm.xlu0 %1668, %v1595
        %v1670 = vpop.permute.xlu0 %1669
        %1673 = vset.pattern.permute.xlu0 0
        %1674 = vperm.xlu0 %1673, %v1596
        %v1675 = vpop.permute.xlu0 %1674
        %1678 = vset.pattern.permute.xlu0 0
        %1679 = vperm.xlu0 %1678, %v1597
        %v1680 = vpop.permute.xlu0 %1679
        %1683 = vset.pattern.permute.xlu0 0
        %1684 = vperm.xlu0 %1683, %v1598
        %v1685 = vpop.permute.xlu0 %1684
        %1688 = vset.pattern.permute.xlu0 0
        %1689 = vperm.xlu0 %1688, %v1599
        %v1690 = vpop.permute.xlu0 %1689
        %1693 = vset.pattern.permute.xlu0 0
        %1694 = vperm.xlu0 %1693, %v1600
        %v1695 = vpop.permute.xlu0 %1694
        %1698 = vset.pattern.permute.xlu0 0
        %1699 = vperm.xlu0 %1698, %v1601
        %v1700 = vpop.permute.xlu0 %1699
        %1703 = vset.pattern.permute.xlu0 0
        %1704 = vperm.xlu0 %1703, %v1602
        %v1705 = vpop.permute.xlu0 %1704
        %1708 = vset.pattern.permute.xlu0 0
        %1709 = vperm.xlu0 %1708, %v1603
        %v1710 = vpop.permute.xlu0 %1709
        %1713 = vset.pattern.permute.xlu0 0
        %1714 = vperm.xlu0 %1713, %v1604
        %v1715 = vpop.permute.xlu0 %1714
        %1718 = vset.pattern.permute.xlu0 0
        %1719 = vperm.xlu0 %1718, %v1605
        %v1720 = vpop.permute.xlu0 %1719
        %1723 = vset.pattern.permute.xlu0 0
        %1724 = vperm.xlu0 %1723, %v1606
        %v1725 = vpop.permute.xlu0 %1724
        %1728 = vset.pattern.permute.xlu0 0
        %1729 = vperm.xlu0 %1728, %v1607
        %v1730 = vpop.permute.xlu0 %1729
        %1733 = vset.pattern.permute.xlu0 0
        %1734 = vperm.xlu0 %1733, %v1608
        %v1735 = vpop.permute.xlu0 %1734
        %1738 = vset.pattern.permute.xlu0 0
        %1739 = vperm.xlu0 %1738, %v1609
        %v1740 = vpop.permute.xlu0 %1739
        %1743 = vset.pattern.permute.xlu0 0
        %1744 = vperm.xlu0 %1743, %v1610
        %v1745 = vpop.permute.xlu0 %1744
        %1748 = vset.pattern.permute.xlu0 0
        %1749 = vperm.xlu0 %1748, %v1611
        %v1750 = vpop.permute.xlu0 %1749
        %1753 = vset.pattern.permute.xlu0 0
        %1754 = vperm.xlu0 %1753, %v1612
        %v1755 = vpop.permute.xlu0 %1754
        %1758 = vset.pattern.permute.xlu0 0
        %1759 = vperm.xlu0 %1758, %v1613
        %v1760 = vpop.permute.xlu0 %1759
        %1763 = vset.pattern.permute.xlu0 0
        %1764 = vperm.xlu0 %1763, %v1614
        %v1765 = vpop.permute.xlu0 %1764
        %1768 = vset.pattern.permute.xlu0 0
        %1769 = vperm.xlu0 %1768, %v1615
        %v1770 = vpop.permute.xlu0 %1769
        %1773 = vset.pattern.permute.xlu0 0
        %1774 = vperm.xlu0 %1773, %v1616
        %v1775 = vpop.permute.xlu0 %1774
        %1778 = vset.pattern.permute.xlu0 0
        %1779 = vperm.xlu0 %1778, %v1617
        %v1780 = vpop.permute.xlu0 %1779
        %1783 = vset.pattern.permute.xlu0 0
        %1784 = vperm.xlu0 %1783, %v1618
        %v1785 = vpop.permute.xlu0 %1784
        %1788 = vset.pattern.permute.xlu0 0
        %1789 = vperm.xlu0 %1788, %v1619
        %v1790 = vpop.permute.xlu0 %1789
        %1793 = vset.pattern.permute.xlu0 0
        %1794 = vperm.xlu0 %1793, %v1620
        %v1795 = vpop.permute.xlu0 %1794
        %1798 = vset.pattern.permute.xlu0 0
        %1799 = vperm.xlu0 %1798, %v1621
        %v1800 = vpop.permute.xlu0 %1799
        %1803 = vset.pattern.permute.xlu0 0
        %1804 = vperm.xlu0 %1803, %v1622
        %v1805 = vpop.permute.xlu0 %1804
        %1808 = vset.pattern.permute.xlu0 0
        %1809 = vperm.xlu0 %1808, %v1623
        %v1810 = vpop.permute.xlu0 %1809
        %1813 = vset.pattern.permute.xlu0 0
        %1814 = vperm.xlu0 %1813, %v1624
        %v1815 = vpop.permute.xlu0 %1814
        %1818 = vset.pattern.permute.xlu0 0
        %1819 = vperm.xlu0 %1818, %v1625
        %v1820 = vpop.permute.xlu0 %1819
        %1823 = vset.pattern.permute.xlu0 0
        %1824 = vperm.xlu0 %1823, %v1626
        %v1825 = vpop.permute.xlu0 %1824
        %1828 = vset.pattern.permute.xlu0 0
        %1829 = vperm.xlu0 %1828, %v1627
        %v1830 = vpop.permute.xlu0 %1829
        %1833 = vset.pattern.permute.xlu0 0
        %1834 = vperm.xlu0 %1833, %v1628
        %v1835 = vpop.permute.xlu0 %1834
        %1838 = vset.pattern.permute.xlu0 0
        %1839 = vperm.xlu0 %1838, %v1629
        %v1840 = vpop.permute.xlu0 %1839
        %1843 = vset.pattern.permute.xlu0 0
        %1844 = vperm.xlu0 %1843, %v1630
        %v1845 = vpop.permute.xlu0 %1844
        %1848 = vset.pattern.permute.xlu0 0
        %1849 = vperm.xlu0 %1848, %v1631
        %v1850 = vpop.permute.xlu0 %1849
        %1853 = vset.pattern.permute.xlu0 0
        %1854 = vperm.xlu0 %1853, %v1632
        %v1855 = vpop.permute.xlu0 %1854
        %1858 = vset.pattern.permute.xlu0 0
        %1859 = vperm.xlu0 %1858, %v1633
        %v1860 = vpop.permute.xlu0 %1859
        %1863 = vset.pattern.permute.xlu0 0
        %1864 = vperm.xlu0 %1863, %v1634
        %v1865 = vpop.permute.xlu0 %1864
        %1868 = vset.pattern.permute.xlu0 0
        %1869 = vperm.xlu0 %1868, %v1635
        %v1870 = vpop.permute.xlu0 %1869
        %1873 = vset.pattern.permute.xlu0 0
        %1874 = vperm.xlu0 %1873, %v1636
        %v1875 = vpop.permute.xlu0 %1874
        %1878 = vset.pattern.permute.xlu0 0
        %1879 = vperm.xlu0 %1878, %v1637
        %v1880 = vpop.permute.xlu0 %1879
        %1883 = vset.pattern.permute.xlu0 0
        %1884 = vperm.xlu0 %1883, %v1638
        %v1885 = vpop.permute.xlu0 %1884
        %1888 = vset.pattern.permute.xlu0 0
        %1889 = vperm.xlu0 %1888, %v1639
        %v1890 = vpop.permute.xlu0 %1889
        %1893 = vset.pattern.permute.xlu0 0
        %1894 = vperm.xlu0 %1893, %v1640
        %v1895 = vpop.permute.xlu0 %1894
        %1898 = vset.pattern.permute.xlu0 0
        %1899 = vperm.xlu0 %1898, %v1641
        %v1900 = vpop.permute.xlu0 %1899
        %1903 = vset.pattern.permute.xlu0 0
        %1904 = vperm.xlu0 %1903, %v1642
        %v1905 = vpop.permute.xlu0 %1904
        %1908 = vset.pattern.permute.xlu0 0
        %1909 = vperm.xlu0 %1908, %v1643
        %v1910 = vpop.permute.xlu0 %1909
        %1913 = vset.pattern.permute.xlu0 0
        %1914 = vperm.xlu0 %1913, %v1644
        %v1915 = vpop.permute.xlu0 %1914
        %1918 = vset.pattern.permute.xlu0 0
        %1919 = vperm.xlu0 %1918, %v1645
        %v1920 = vpop.permute.xlu0 %1919
        %1923 = vset.pattern.permute.xlu0 0
        %1924 = vperm.xlu0 %1923, %v1646
        %v1925 = vpop.permute.xlu0 %1924
        %1928 = vset.pattern.permute.xlu0 0
        %1929 = vperm.xlu0 %1928, %v1647
        %v1930 = vpop.permute.xlu0 %1929
        %1933 = vset.pattern.permute.xlu0 0
        %1934 = vperm.xlu0 %1933, %v1648
        %v1935 = vpop.permute.xlu0 %1934
        %1938 = vset.pattern.permute.xlu0 0
        %1939 = vperm.xlu0 %1938, %v1649
        %v1940 = vpop.permute.xlu0 %1939
        %1943 = vset.pattern.permute.xlu0 0
        %1944 = vperm.xlu0 %1943, %v1650
        %v1945 = vpop.permute.xlu0 %1944
        %1948 = vset.pattern.permute.xlu0 0
        %1949 = vperm.xlu0 %1948, %v1651
        %v1950 = vpop.permute.xlu0 %1949
        %1953 = vset.pattern.permute.xlu0 0
        %1954 = vperm.xlu0 %1953, %v1652
        %v1955 = vpop.permute.xlu0 %1954
        %1958 = vset.pattern.permute.xlu0 0
        %1959 = vperm.xlu0 %1958, %v1653
        %v1960 = vpop.permute.xlu0 %1959
        %1963 = vset.pattern.permute.xlu0 0
        %1964 = vperm.xlu0 %1963, %v1654
        %v1965 = vpop.permute.xlu0 %1964
        %1968 = vset.pattern.permute.xlu0 0
        %1969 = vperm.xlu0 %1968, %v1655
        %v1970 = vpop.permute.xlu0 %1969
        %1973 = vset.pattern.permute.xlu0 0
        %1974 = vperm.xlu0 %1973, %v1656
        %v1975 = vpop.permute.xlu0 %1974
        %v1977 = vmul.f32 %v1337, %v1660
        %v1978 = vmul.f32 %v1338, %v1660
        %v1979 = vmul.f32 %v1339, %v1660
        %v1980 = vmul.f32 %v1340, %v1660
        %v1981 = vmul.f32 %v1341, %v1665
        %v1982 = vmul.f32 %v1342, %v1665
        %v1983 = vmul.f32 %v1343, %v1665
        %v1984 = vmul.f32 %v1344, %v1665
        %v1985 = vmul.f32 %v1345, %v1670
        %v1986 = vmul.f32 %v1346, %v1670
        %v1987 = vmul.f32 %v1347, %v1670
        %v1988 = vmul.f32 %v1348, %v1670
        %v1989 = vmul.f32 %v1349, %v1675
        %v1990 = vmul.f32 %v1350, %v1675
        %v1991 = vmul.f32 %v1351, %v1675
        %v1992 = vmul.f32 %v1352, %v1675
        %v1993 = vmul.f32 %v1353, %v1680
        %v1994 = vmul.f32 %v1354, %v1680
        %v1995 = vmul.f32 %v1355, %v1680
        %v1996 = vmul.f32 %v1356, %v1680
        %v1997 = vmul.f32 %v1357, %v1685
        %v1998 = vmul.f32 %v1358, %v1685
        %v1999 = vmul.f32 %v1359, %v1685
        %v2000 = vmul.f32 %v1360, %v1685
        %v2001 = vmul.f32 %v1361, %v1690
        %v2002 = vmul.f32 %v1362, %v1690
        %v2003 = vmul.f32 %v1363, %v1690
        %v2004 = vmul.f32 %v1364, %v1690
        %v2005 = vmul.f32 %v1365, %v1695
        %v2006 = vmul.f32 %v1366, %v1695
        %v2007 = vmul.f32 %v1367, %v1695
        %v2008 = vmul.f32 %v1368, %v1695
        %v2009 = vmul.f32 %v1369, %v1700
        %v2010 = vmul.f32 %v1370, %v1700
        %v2011 = vmul.f32 %v1371, %v1700
        %v2012 = vmul.f32 %v1372, %v1700
        %v2013 = vmul.f32 %v1373, %v1705
        %v2014 = vmul.f32 %v1374, %v1705
        %v2015 = vmul.f32 %v1375, %v1705
        %v2016 = vmul.f32 %v1376, %v1705
        %v2017 = vmul.f32 %v1377, %v1710
        %v2018 = vmul.f32 %v1378, %v1710
        %v2019 = vmul.f32 %v1379, %v1710
        %v2020 = vmul.f32 %v1380, %v1710
        %v2021 = vmul.f32 %v1381, %v1715
        %v2022 = vmul.f32 %v1382, %v1715
        %v2023 = vmul.f32 %v1383, %v1715
        %v2024 = vmul.f32 %v1384, %v1715
        %v2025 = vmul.f32 %v1385, %v1720
        %v2026 = vmul.f32 %v1386, %v1720
        %v2027 = vmul.f32 %v1387, %v1720
        %v2028 = vmul.f32 %v1388, %v1720
        %v2029 = vmul.f32 %v1389, %v1725
        %v2030 = vmul.f32 %v1390, %v1725
        %v2031 = vmul.f32 %v1391, %v1725
        %v2032 = vmul.f32 %v1392, %v1725
        %v2033 = vmul.f32 %v1393, %v1730
        %v2034 = vmul.f32 %v1394, %v1730
        %v2035 = vmul.f32 %v1395, %v1730
        %v2036 = vmul.f32 %v1396, %v1730
        %v2037 = vmul.f32 %v1397, %v1735
        %v2038 = vmul.f32 %v1398, %v1735
        %v2039 = vmul.f32 %v1399, %v1735
        %v2040 = vmul.f32 %v1400, %v1735
        %v2041 = vmul.f32 %v1401, %v1740
        %v2042 = vmul.f32 %v1402, %v1740
        %v2043 = vmul.f32 %v1403, %v1740
        %v2044 = vmul.f32 %v1404, %v1740
        %v2045 = vmul.f32 %v1405, %v1745
        %v2046 = vmul.f32 %v1406, %v1745
        %v2047 = vmul.f32 %v1407, %v1745
        %v2048 = vmul.f32 %v1408, %v1745
        %v2049 = vmul.f32 %v1409, %v1750
        %v2050 = vmul.f32 %v1410, %v1750
        %v2051 = vmul.f32 %v1411, %v1750
        %v2052 = vmul.f32 %v1412, %v1750
        %v2053 = vmul.f32 %v1413, %v1755
        %v2054 = vmul.f32 %v1414, %v1755
        %v2055 = vmul.f32 %v1415, %v1755
        %v2056 = vmul.f32 %v1416, %v1755
        %v2057 = vmul.f32 %v1417, %v1760
        %v2058 = vmul.f32 %v1418, %v1760
        %v2059 = vmul.f32 %v1419, %v1760
        %v2060 = vmul.f32 %v1420, %v1760
        %v2061 = vmul.f32 %v1421, %v1765
        %v2062 = vmul.f32 %v1422, %v1765
        %v2063 = vmul.f32 %v1423, %v1765
        %v2064 = vmul.f32 %v1424, %v1765
        %v2065 = vmul.f32 %v1425, %v1770
        %v2066 = vmul.f32 %v1426, %v1770
        %v2067 = vmul.f32 %v1427, %v1770
        %v2068 = vmul.f32 %v1428, %v1770
        %v2069 = vmul.f32 %v1429, %v1775
        %v2070 = vmul.f32 %v1430, %v1775
        %v2071 = vmul.f32 %v1431, %v1775
        %v2072 = vmul.f32 %v1432, %v1775
        %v2073 = vmul.f32 %v1433, %v1780
        %v2074 = vmul.f32 %v1434, %v1780
        %v2075 = vmul.f32 %v1435, %v1780
        %v2076 = vmul.f32 %v1436, %v1780
        %v2077 = vmul.f32 %v1437, %v1785
        %v2078 = vmul.f32 %v1438, %v1785
        %v2079 = vmul.f32 %v1439, %v1785
        %v2080 = vmul.f32 %v1440, %v1785
        %v2081 = vmul.f32 %v1441, %v1790
        %v2082 = vmul.f32 %v1442, %v1790
        %v2083 = vmul.f32 %v1443, %v1790
        %v2084 = vmul.f32 %v1444, %v1790
        %v2085 = vmul.f32 %v1445, %v1795
        %v2086 = vmul.f32 %v1446, %v1795
        %v2087 = vmul.f32 %v1447, %v1795
        %v2088 = vmul.f32 %v1448, %v1795
        %v2089 = vmul.f32 %v1449, %v1800
        %v2090 = vmul.f32 %v1450, %v1800
        %v2091 = vmul.f32 %v1451, %v1800
        %v2092 = vmul.f32 %v1452, %v1800
        %v2093 = vmul.f32 %v1453, %v1805
        %v2094 = vmul.f32 %v1454, %v1805
        %v2095 = vmul.f32 %v1455, %v1805
        %v2096 = vmul.f32 %v1456, %v1805
        %v2097 = vmul.f32 %v1457, %v1810
        %v2098 = vmul.f32 %v1458, %v1810
        %v2099 = vmul.f32 %v1459, %v1810
        %v2100 = vmul.f32 %v1460, %v1810
        %v2101 = vmul.f32 %v1461, %v1815
        %v2102 = vmul.f32 %v1462, %v1815
        %v2103 = vmul.f32 %v1463, %v1815
        %v2104 = vmul.f32 %v1464, %v1815
        %v2105 = vmul.f32 %v1465, %v1820
        %v2106 = vmul.f32 %v1466, %v1820
        %v2107 = vmul.f32 %v1467, %v1820
        %v2108 = vmul.f32 %v1468, %v1820
        %v2109 = vmul.f32 %v1469, %v1825
        %v2110 = vmul.f32 %v1470, %v1825
        %v2111 = vmul.f32 %v1471, %v1825
        %v2112 = vmul.f32 %v1472, %v1825
        %v2113 = vmul.f32 %v1473, %v1830
        %v2114 = vmul.f32 %v1474, %v1830
        %v2115 = vmul.f32 %v1475, %v1830
        %v2116 = vmul.f32 %v1476, %v1830
        %v2117 = vmul.f32 %v1477, %v1835
        %v2118 = vmul.f32 %v1478, %v1835
        %v2119 = vmul.f32 %v1479, %v1835
        %v2120 = vmul.f32 %v1480, %v1835
        %v2121 = vmul.f32 %v1481, %v1840
        %v2122 = vmul.f32 %v1482, %v1840
        %v2123 = vmul.f32 %v1483, %v1840
        %v2124 = vmul.f32 %v1484, %v1840
        %v2125 = vmul.f32 %v1485, %v1845
        %v2126 = vmul.f32 %v1486, %v1845
        %v2127 = vmul.f32 %v1487, %v1845
        %v2128 = vmul.f32 %v1488, %v1845
        %v2129 = vmul.f32 %v1489, %v1850
        %v2130 = vmul.f32 %v1490, %v1850
        %v2131 = vmul.f32 %v1491, %v1850
        %v2132 = vmul.f32 %v1492, %v1850
        %v2133 = vmul.f32 %v1493, %v1855
        %v2134 = vmul.f32 %v1494, %v1855
        %v2135 = vmul.f32 %v1495, %v1855
        %v2136 = vmul.f32 %v1496, %v1855
        %v2137 = vmul.f32 %v1497, %v1860
        %v2138 = vmul.f32 %v1498, %v1860
        %v2139 = vmul.f32 %v1499, %v1860
        %v2140 = vmul.f32 %v1500, %v1860
        %v2141 = vmul.f32 %v1501, %v1865
        %v2142 = vmul.f32 %v1502, %v1865
        %v2143 = vmul.f32 %v1503, %v1865
        %v2144 = vmul.f32 %v1504, %v1865
        %v2145 = vmul.f32 %v1505, %v1870
        %v2146 = vmul.f32 %v1506, %v1870
        %v2147 = vmul.f32 %v1507, %v1870
        %v2148 = vmul.f32 %v1508, %v1870
        %v2149 = vmul.f32 %v1509, %v1875
        %v2150 = vmul.f32 %v1510, %v1875
        %v2151 = vmul.f32 %v1511, %v1875
        %v2152 = vmul.f32 %v1512, %v1875
        %v2153 = vmul.f32 %v1513, %v1880
        %v2154 = vmul.f32 %v1514, %v1880
        %v2155 = vmul.f32 %v1515, %v1880
        %v2156 = vmul.f32 %v1516, %v1880
        %v2157 = vmul.f32 %v1517, %v1885
        %v2158 = vmul.f32 %v1518, %v1885
        %v2159 = vmul.f32 %v1519, %v1885
        %v2160 = vmul.f32 %v1520, %v1885
        %v2161 = vmul.f32 %v1521, %v1890
        %v2162 = vmul.f32 %v1522, %v1890
        %v2163 = vmul.f32 %v1523, %v1890
        %v2164 = vmul.f32 %v1524, %v1890
        %v2165 = vmul.f32 %v1525, %v1895
        %v2166 = vmul.f32 %v1526, %v1895
        %v2167 = vmul.f32 %v1527, %v1895
        %v2168 = vmul.f32 %v1528, %v1895
        %v2169 = vmul.f32 %v1529, %v1900
        %v2170 = vmul.f32 %v1530, %v1900
        %v2171 = vmul.f32 %v1531, %v1900
        %v2172 = vmul.f32 %v1532, %v1900
        %v2173 = vmul.f32 %v1533, %v1905
        %v2174 = vmul.f32 %v1534, %v1905
        %v2175 = vmul.f32 %v1535, %v1905
        %v2176 = vmul.f32 %v1536, %v1905
        %v2177 = vmul.f32 %v1537, %v1910
        %v2178 = vmul.f32 %v1538, %v1910
        %v2179 = vmul.f32 %v1539, %v1910
        %v2180 = vmul.f32 %v1540, %v1910
        %v2181 = vmul.f32 %v1541, %v1915
        %v2182 = vmul.f32 %v1542, %v1915
        %v2183 = vmul.f32 %v1543, %v1915
        %v2184 = vmul.f32 %v1544, %v1915
        %v2185 = vmul.f32 %v1545, %v1920
        %v2186 = vmul.f32 %v1546, %v1920
        %v2187 = vmul.f32 %v1547, %v1920
        %v2188 = vmul.f32 %v1548, %v1920
        %v2189 = vmul.f32 %v1549, %v1925
        %v2190 = vmul.f32 %v1550, %v1925
        %v2191 = vmul.f32 %v1551, %v1925
        %v2192 = vmul.f32 %v1552, %v1925
        %v2193 = vmul.f32 %v1553, %v1930
        %v2194 = vmul.f32 %v1554, %v1930
        %v2195 = vmul.f32 %v1555, %v1930
        %v2196 = vmul.f32 %v1556, %v1930
        %v2197 = vmul.f32 %v1557, %v1935
        %v2198 = vmul.f32 %v1558, %v1935
        %v2199 = vmul.f32 %v1559, %v1935
        %v2200 = vmul.f32 %v1560, %v1935
        %v2201 = vmul.f32 %v1561, %v1940
        %v2202 = vmul.f32 %v1562, %v1940
        %v2203 = vmul.f32 %v1563, %v1940
        %v2204 = vmul.f32 %v1564, %v1940
        %v2205 = vmul.f32 %v1565, %v1945
        %v2206 = vmul.f32 %v1566, %v1945
        %v2207 = vmul.f32 %v1567, %v1945
        %v2208 = vmul.f32 %v1568, %v1945
        %v2209 = vmul.f32 %v1569, %v1950
        %v2210 = vmul.f32 %v1570, %v1950
        %v2211 = vmul.f32 %v1571, %v1950
        %v2212 = vmul.f32 %v1572, %v1950
        %v2213 = vmul.f32 %v1573, %v1955
        %v2214 = vmul.f32 %v1574, %v1955
        %v2215 = vmul.f32 %v1575, %v1955
        %v2216 = vmul.f32 %v1576, %v1955
        %v2217 = vmul.f32 %v1577, %v1960
        %v2218 = vmul.f32 %v1578, %v1960
        %v2219 = vmul.f32 %v1579, %v1960
        %v2220 = vmul.f32 %v1580, %v1960
        %v2221 = vmul.f32 %v1581, %v1965
        %v2222 = vmul.f32 %v1582, %v1965
        %v2223 = vmul.f32 %v1583, %v1965
        %v2224 = vmul.f32 %v1584, %v1965
        %v2225 = vmul.f32 %v1585, %v1970
        %v2226 = vmul.f32 %v1586, %v1970
        %v2227 = vmul.f32 %v1587, %v1970
        %v2228 = vmul.f32 %v1588, %v1970
        %v2229 = vmul.f32 %v1589, %v1975
        %v2230 = vmul.f32 %v1590, %v1975
        %v2231 = vmul.f32 %v1591, %v1975
        %v2232 = vmul.f32 %v1592, %v1975
        %2233 = vmatprep.subr.mxu0 %v2038
        %2234 = vmatpush1.xpose.msra.mxu0 %v2037
        %2235 = vmatprep.subr.mxu0 %v2034
        %2236 = vmatpush1.xpose.msra.mxu0 %v2033
        %2237 = vmatprep.subr.mxu0 %v2030
        %2238 = vmatpush1.xpose.msra.mxu0 %v2029
        %2239 = vmatprep.subr.mxu0 %v2026
        %2240 = vmatpush1.xpose.msra.mxu0 %v2025
        %2241 = vmatprep.subr.mxu0 %v2022
        %2242 = vmatpush1.xpose.msra.mxu0 %v2021
        %2243 = vmatprep.subr.mxu0 %v2018
        %2244 = vmatpush1.xpose.msra.mxu0 %v2017
        %2245 = vmatprep.subr.mxu0 %v2014
        %2246 = vmatpush1.xpose.msra.mxu0 %v2013
        %2247 = vmatprep.subr.mxu0 %v2010
        %2248 = vmatpush1.xpose.msra.mxu0 %v2009
        %2249 = vmatprep.subr.mxu0 %v2006
        %2250 = vmatpush1.xpose.msra.mxu0 %v2005
        %2251 = vmatprep.subr.mxu0 %v2002
        %2252 = vmatpush1.xpose.msra.mxu0 %v2001
        %2253 = vmatprep.subr.mxu0 %v1998
        %2254 = vmatpush1.xpose.msra.mxu0 %v1997
        %2255 = vmatprep.subr.mxu0 %v1994
        %2256 = vmatpush1.xpose.msra.mxu0 %v1993
        %2257 = vmatprep.subr.mxu0 %v1990
        %2258 = vmatpush1.xpose.msra.mxu0 %v1989
        %2259 = vmatprep.subr.mxu0 %v1986
        %2260 = vmatpush1.xpose.msra.mxu0 %v1985
        %2261 = vmatprep.subr.mxu0 %v1982
        %2262 = vmatpush1.xpose.msra.mxu0 %v1981
        %2263 = vmatprep.subr.mxu0 %v1978
        %2264 = vmatpush1.xpose.msra.mxu0 %v1977
        %2265 = vmatprep.subr.mxu0 %v2102
        %2266 = vmatpush2.xpose.msra.mxu0 %v2101
        %2267 = vmatprep.subr.mxu0 %v2098
        %2268 = vmatpush2.xpose.msra.mxu0 %v2097
        %2269 = vmatprep.subr.mxu0 %v2094
        %2270 = vmatpush2.xpose.msra.mxu0 %v2093
        %2271 = vmatprep.subr.mxu0 %v2090
        %2272 = vmatpush2.xpose.msra.mxu0 %v2089
        %2273 = vmatprep.subr.mxu0 %v2086
        %2274 = vmatpush2.xpose.msra.mxu0 %v2085
        %2275 = vmatprep.subr.mxu0 %v2082
        %2276 = vmatpush2.xpose.msra.mxu0 %v2081
        %2277 = vmatprep.subr.mxu0 %v2078
        %2278 = vmatpush2.xpose.msra.mxu0 %v2077
        %2279 = vmatprep.subr.mxu0 %v2074
        %2280 = vmatpush2.xpose.msra.mxu0 %v2073
        %2281 = vmatprep.subr.mxu0 %v2070
        %2282 = vmatpush2.xpose.msra.mxu0 %v2069
        %2283 = vmatprep.subr.mxu0 %v2066
        %2284 = vmatpush2.xpose.msra.mxu0 %v2065
        %2285 = vmatprep.subr.mxu0 %v2062
        %2286 = vmatpush2.xpose.msra.mxu0 %v2061
        %2287 = vmatprep.subr.mxu0 %v2058
        %2288 = vmatpush2.xpose.msra.mxu0 %v2057
        %2289 = vmatprep.subr.mxu0 %v2054
        %2290 = vmatpush2.xpose.msra.mxu0 %v2053
        %2291 = vmatprep.subr.mxu0 %v2050
        %2292 = vmatpush2.xpose.msra.mxu0 %v2049
        %2293 = vmatprep.subr.mxu0 %v2046
        %2294 = vmatpush2.xpose.msra.mxu0 %v2045
        %2295 = vmatprep.subr.mxu0 %v2042
        %2296 = vmatpush2.xpose.msra.mxu0 %v2041
        %2297 = vmatprep.mubr.f32.mxu0 %v1326
        %2298 = vmatmul.mubr.f32.gmra.mxu0 %v1325
        %v2299 = vpop.f32.mrf.mxu0
        %v2300 = vadd.f32 0.0, %v2299
        %v2301 = vpop.f32.mrf.mxu0
        %v2302 = vadd.f32 0.0, %v2301
        %2303 = vmatprep.mubr.f32.mxu0 %v1330
        %2304 = vmatmul.mubr.f32.gmra.mxu0 %v1329
        %v2305 = vpop.f32.mrf.mxu0
        %v2306 = vadd.f32 0.0, %v2305
        %v2307 = vpop.f32.mrf.mxu0
        %v2308 = vadd.f32 0.0, %v2307
        %2309 = vmatprep.mubr.f32.mxu0 %v1334
        %2310 = vmatmul.mubr.f32.gmra.mxu0 %v1333
        %v2311 = vpop.f32.mrf.mxu0
        %v2312 = vadd.f32 0.0, %v2311
        %v2313 = vpop.f32.mrf.mxu0
        %v2314 = vadd.f32 0.0, %v2313
        %2315 = vdwg.mxu0
        %2316 = vmatprep.subr.mxu0 %v2040
        %2317 = vmatpush1.xpose.msra.mxu0 %v2039
        %2318 = vmatprep.subr.mxu0 %v2036
        %2319 = vmatpush1.xpose.msra.mxu0 %v2035
        %2320 = vmatprep.subr.mxu0 %v2032
        %2321 = vmatpush1.xpose.msra.mxu0 %v2031
        %2322 = vmatprep.subr.mxu0 %v2028
        %2323 = vmatpush1.xpose.msra.mxu0 %v2027
        %2324 = vmatprep.subr.mxu0 %v2024
        %2325 = vmatpush1.xpose.msra.mxu0 %v2023
        %2326 = vmatprep.subr.mxu0 %v2020
        %2327 = vmatpush1.xpose.msra.mxu0 %v2019
        %2328 = vmatprep.subr.mxu0 %v2016
        %2329 = vmatpush1.xpose.msra.mxu0 %v2015
        %2330 = vmatprep.subr.mxu0 %v2012
        %2331 = vmatpush1.xpose.msra.mxu0 %v2011
        %2332 = vmatprep.subr.mxu0 %v2008
        %2333 = vmatpush1.xpose.msra.mxu0 %v2007
        %2334 = vmatprep.subr.mxu0 %v2004
        %2335 = vmatpush1.xpose.msra.mxu0 %v2003
        %2336 = vmatprep.subr.mxu0 %v2000
        %2337 = vmatpush1.xpose.msra.mxu0 %v1999
        %2338 = vmatprep.subr.mxu0 %v1996
        %2339 = vmatpush1.xpose.msra.mxu0 %v1995
        %2340 = vmatprep.subr.mxu0 %v1992
        %2341 = vmatpush1.xpose.msra.mxu0 %v1991
        %2342 = vmatprep.subr.mxu0 %v1988
        %2343 = vmatpush1.xpose.msra.mxu0 %v1987
        %2344 = vmatprep.subr.mxu0 %v1984
        %2345 = vmatpush1.xpose.msra.mxu0 %v1983
        %2346 = vmatprep.subr.mxu0 %v1980
        %2347 = vmatpush1.xpose.msra.mxu0 %v1979
        %2348 = vmatprep.subr.mxu0 %v2104
        %2349 = vmatpush2.xpose.msra.mxu0 %v2103
        %2350 = vmatprep.subr.mxu0 %v2100
        %2351 = vmatpush2.xpose.msra.mxu0 %v2099
        %2352 = vmatprep.subr.mxu0 %v2096
        %2353 = vmatpush2.xpose.msra.mxu0 %v2095
        %2354 = vmatprep.subr.mxu0 %v2092
        %2355 = vmatpush2.xpose.msra.mxu0 %v2091
        %2356 = vmatprep.subr.mxu0 %v2088
        %2357 = vmatpush2.xpose.msra.mxu0 %v2087
        %2358 = vmatprep.subr.mxu0 %v2084
        %2359 = vmatpush2.xpose.msra.mxu0 %v2083
        %2360 = vmatprep.subr.mxu0 %v2080
        %2361 = vmatpush2.xpose.msra.mxu0 %v2079
        %2362 = vmatprep.subr.mxu0 %v2076
        %2363 = vmatpush2.xpose.msra.mxu0 %v2075
        %2364 = vmatprep.subr.mxu0 %v2072
        %2365 = vmatpush2.xpose.msra.mxu0 %v2071
        %2366 = vmatprep.subr.mxu0 %v2068
        %2367 = vmatpush2.xpose.msra.mxu0 %v2067
        %2368 = vmatprep.subr.mxu0 %v2064
        %2369 = vmatpush2.xpose.msra.mxu0 %v2063
        %2370 = vmatprep.subr.mxu0 %v2060
        %2371 = vmatpush2.xpose.msra.mxu0 %v2059
        %2372 = vmatprep.subr.mxu0 %v2056
        %2373 = vmatpush2.xpose.msra.mxu0 %v2055
        %2374 = vmatprep.subr.mxu0 %v2052
        %2375 = vmatpush2.xpose.msra.mxu0 %v2051
        %2376 = vmatprep.subr.mxu0 %v2048
        %2377 = vmatpush2.xpose.msra.mxu0 %v2047
        %2378 = vmatprep.subr.mxu0 %v2044
        %2379 = vmatpush2.xpose.msra.mxu0 %v2043
        %2380 = vmatprep.mubr.f32.mxu0 %v1328
        %2381 = vmatmul.mubr.f32.gmra.mxu0 %v1327
        %v2382 = vpop.f32.mrf.mxu0
        %v2383 = vadd.f32 %v2300, %v2382
        %v2384 = vpop.f32.mrf.mxu0
        %v2385 = vadd.f32 %v2302, %v2384
        %2386 = vmatprep.mubr.f32.mxu0 %v1332
        %2387 = vmatmul.mubr.f32.gmra.mxu0 %v1331
        %v2388 = vpop.f32.mrf.mxu0
        %v2389 = vadd.f32 %v2306, %v2388
        %v2390 = vpop.f32.mrf.mxu0
        %v2391 = vadd.f32 %v2308, %v2390
        %2392 = vmatprep.mubr.f32.mxu0 %v1336
        %2393 = vmatmul.mubr.f32.gmra.mxu0 %v1335
        %v2394 = vpop.f32.mrf.mxu0
        %v2395 = vadd.f32 %v2312, %v2394
        %v2396 = vpop.f32.mrf.mxu0
        %v2397 = vadd.f32 %v2314, %v2396
        %2398 = vdwg.mxu0
        %2399 = vmatprep.subr.mxu0 %v2166
        %2400 = vmatpush1.xpose.msra.mxu0 %v2165
        %2401 = vmatprep.subr.mxu0 %v2162
        %2402 = vmatpush1.xpose.msra.mxu0 %v2161
        %2403 = vmatprep.subr.mxu0 %v2158
        %2404 = vmatpush1.xpose.msra.mxu0 %v2157
        %2405 = vmatprep.subr.mxu0 %v2154
        %2406 = vmatpush1.xpose.msra.mxu0 %v2153
        %2407 = vmatprep.subr.mxu0 %v2150
        %2408 = vmatpush1.xpose.msra.mxu0 %v2149
        %2409 = vmatprep.subr.mxu0 %v2146
        %2410 = vmatpush1.xpose.msra.mxu0 %v2145
        %2411 = vmatprep.subr.mxu0 %v2142
        %2412 = vmatpush1.xpose.msra.mxu0 %v2141
        %2413 = vmatprep.subr.mxu0 %v2138
        %2414 = vmatpush1.xpose.msra.mxu0 %v2137
        %2415 = vmatprep.subr.mxu0 %v2134
        %2416 = vmatpush1.xpose.msra.mxu0 %v2133
        %2417 = vmatprep.subr.mxu0 %v2130
        %2418 = vmatpush1.xpose.msra.mxu0 %v2129
        %2419 = vmatprep.subr.mxu0 %v2126
        %2420 = vmatpush1.xpose.msra.mxu0 %v2125
        %2421 = vmatprep.subr.mxu0 %v2122
        %2422 = vmatpush1.xpose.msra.mxu0 %v2121
        %2423 = vmatprep.subr.mxu0 %v2118
        %2424 = vmatpush1.xpose.msra.mxu0 %v2117
        %2425 = vmatprep.subr.mxu0 %v2114
        %2426 = vmatpush1.xpose.msra.mxu0 %v2113
        %2427 = vmatprep.subr.mxu0 %v2110
        %2428 = vmatpush1.xpose.msra.mxu0 %v2109
        %2429 = vmatprep.subr.mxu0 %v2106
        %2430 = vmatpush1.xpose.msra.mxu0 %v2105
        %2431 = vmatprep.subr.mxu0 %v2230
        %2432 = vmatpush2.xpose.msra.mxu0 %v2229
        %2433 = vmatprep.subr.mxu0 %v2226
        %2434 = vmatpush2.xpose.msra.mxu0 %v2225
        %2435 = vmatprep.subr.mxu0 %v2222
        %2436 = vmatpush2.xpose.msra.mxu0 %v2221
        %2437 = vmatprep.subr.mxu0 %v2218
        %2438 = vmatpush2.xpose.msra.mxu0 %v2217
        %2439 = vmatprep.subr.mxu0 %v2214
        %2440 = vmatpush2.xpose.msra.mxu0 %v2213
        %2441 = vmatprep.subr.mxu0 %v2210
        %2442 = vmatpush2.xpose.msra.mxu0 %v2209
        %2443 = vmatprep.subr.mxu0 %v2206
        %2444 = vmatpush2.xpose.msra.mxu0 %v2205
        %2445 = vmatprep.subr.mxu0 %v2202
        %2446 = vmatpush2.xpose.msra.mxu0 %v2201
        %2447 = vmatprep.subr.mxu0 %v2198
        %2448 = vmatpush2.xpose.msra.mxu0 %v2197
        %2449 = vmatprep.subr.mxu0 %v2194
        %2450 = vmatpush2.xpose.msra.mxu0 %v2193
        %2451 = vmatprep.subr.mxu0 %v2190
        %2452 = vmatpush2.xpose.msra.mxu0 %v2189
        %2453 = vmatprep.subr.mxu0 %v2186
        %2454 = vmatpush2.xpose.msra.mxu0 %v2185
        %2455 = vmatprep.subr.mxu0 %v2182
        %2456 = vmatpush2.xpose.msra.mxu0 %v2181
        %2457 = vmatprep.subr.mxu0 %v2178
        %2458 = vmatpush2.xpose.msra.mxu0 %v2177
        %2459 = vmatprep.subr.mxu0 %v2174
        %2460 = vmatpush2.xpose.msra.mxu0 %v2173
        %2461 = vmatprep.subr.mxu0 %v2170
        %2462 = vmatpush2.xpose.msra.mxu0 %v2169
        %2463 = vmatprep.mubr.f32.mxu0 %v1326
        %2464 = vmatmul.mubr.f32.gmra.mxu0 %v1325
        %v2465 = vpop.f32.mrf.mxu0
        %v2466 = vadd.f32 0.0, %v2465
        %v2467 = vpop.f32.mrf.mxu0
        %v2468 = vadd.f32 0.0, %v2467
        %2469 = vmatprep.mubr.f32.mxu0 %v1330
        %2470 = vmatmul.mubr.f32.gmra.mxu0 %v1329
        %v2471 = vpop.f32.mrf.mxu0
        %v2472 = vadd.f32 0.0, %v2471
        %v2473 = vpop.f32.mrf.mxu0
        %v2474 = vadd.f32 0.0, %v2473
        %2475 = vmatprep.mubr.f32.mxu0 %v1334
        %2476 = vmatmul.mubr.f32.gmra.mxu0 %v1333
        %v2477 = vpop.f32.mrf.mxu0
        %v2478 = vadd.f32 0.0, %v2477
        %v2479 = vpop.f32.mrf.mxu0
        %v2480 = vadd.f32 0.0, %v2479
        %2481 = vdwg.mxu0
        %2482 = vmatprep.subr.mxu0 %v2168
        %2483 = vmatpush1.xpose.msra.mxu0 %v2167
        %2484 = vmatprep.subr.mxu0 %v2164
        %2485 = vmatpush1.xpose.msra.mxu0 %v2163
        %2486 = vmatprep.subr.mxu0 %v2160
        %2487 = vmatpush1.xpose.msra.mxu0 %v2159
        %2488 = vmatprep.subr.mxu0 %v2156
        %2489 = vmatpush1.xpose.msra.mxu0 %v2155
        %2490 = vmatprep.subr.mxu0 %v2152
        %2491 = vmatpush1.xpose.msra.mxu0 %v2151
        %2492 = vmatprep.subr.mxu0 %v2148
        %2493 = vmatpush1.xpose.msra.mxu0 %v2147
        %2494 = vmatprep.subr.mxu0 %v2144
        %2495 = vmatpush1.xpose.msra.mxu0 %v2143
        %2496 = vmatprep.subr.mxu0 %v2140
        %2497 = vmatpush1.xpose.msra.mxu0 %v2139
        %2498 = vmatprep.subr.mxu0 %v2136
        %2499 = vmatpush1.xpose.msra.mxu0 %v2135
        %2500 = vmatprep.subr.mxu0 %v2132
        %2501 = vmatpush1.xpose.msra.mxu0 %v2131
        %2502 = vmatprep.subr.mxu0 %v2128
        %2503 = vmatpush1.xpose.msra.mxu0 %v2127
        %2504 = vmatprep.subr.mxu0 %v2124
        %2505 = vmatpush1.xpose.msra.mxu0 %v2123
        %2506 = vmatprep.subr.mxu0 %v2120
        %2507 = vmatpush1.xpose.msra.mxu0 %v2119
        %2508 = vmatprep.subr.mxu0 %v2116
        %2509 = vmatpush1.xpose.msra.mxu0 %v2115
        %2510 = vmatprep.subr.mxu0 %v2112
        %2511 = vmatpush1.xpose.msra.mxu0 %v2111
        %2512 = vmatprep.subr.mxu0 %v2108
        %2513 = vmatpush1.xpose.msra.mxu0 %v2107
        %2514 = vmatprep.subr.mxu0 %v2232
        %2515 = vmatpush2.xpose.msra.mxu0 %v2231
        %2516 = vmatprep.subr.mxu0 %v2228
        %2517 = vmatpush2.xpose.msra.mxu0 %v2227
        %2518 = vmatprep.subr.mxu0 %v2224
        %2519 = vmatpush2.xpose.msra.mxu0 %v2223
        %2520 = vmatprep.subr.mxu0 %v2220
        %2521 = vmatpush2.xpose.msra.mxu0 %v2219
        %2522 = vmatprep.subr.mxu0 %v2216
        %2523 = vmatpush2.xpose.msra.mxu0 %v2215
        %2524 = vmatprep.subr.mxu0 %v2212
        %2525 = vmatpush2.xpose.msra.mxu0 %v2211
        %2526 = vmatprep.subr.mxu0 %v2208
        %2527 = vmatpush2.xpose.msra.mxu0 %v2207
        %2528 = vmatprep.subr.mxu0 %v2204
        %2529 = vmatpush2.xpose.msra.mxu0 %v2203
        %2530 = vmatprep.subr.mxu0 %v2200
        %2531 = vmatpush2.xpose.msra.mxu0 %v2199
        %2532 = vmatprep.subr.mxu0 %v2196
        %2533 = vmatpush2.xpose.msra.mxu0 %v2195
        %2534 = vmatprep.subr.mxu0 %v2192
        %2535 = vmatpush2.xpose.msra.mxu0 %v2191
        %2536 = vmatprep.subr.mxu0 %v2188
        %2537 = vmatpush2.xpose.msra.mxu0 %v2187
        %2538 = vmatprep.subr.mxu0 %v2184
        %2539 = vmatpush2.xpose.msra.mxu0 %v2183
        %2540 = vmatprep.subr.mxu0 %v2180
        %2541 = vmatpush2.xpose.msra.mxu0 %v2179
        %2542 = vmatprep.subr.mxu0 %v2176
        %2543 = vmatpush2.xpose.msra.mxu0 %v2175
        %2544 = vmatprep.subr.mxu0 %v2172
        %2545 = vmatpush2.xpose.msra.mxu0 %v2171
        %2546 = vmatprep.mubr.f32.mxu0 %v1328
        %2547 = vmatmul.mubr.f32.gmra.mxu0 %v1327
        %v2548 = vpop.f32.mrf.mxu0
        %v2549 = vadd.f32 %v2466, %v2548
        %v2550 = vpop.f32.mrf.mxu0
        %v2551 = vadd.f32 %v2468, %v2550
        %2552 = vmatprep.mubr.f32.mxu0 %v1332
        %2553 = vmatmul.mubr.f32.gmra.mxu0 %v1331
        %v2554 = vpop.f32.mrf.mxu0
        %v2555 = vadd.f32 %v2472, %v2554
        %v2556 = vpop.f32.mrf.mxu0
        %v2557 = vadd.f32 %v2474, %v2556
        %2558 = vmatprep.mubr.f32.mxu0 %v1336
        %2559 = vmatmul.mubr.f32.gmra.mxu0 %v1335
        %v2560 = vpop.f32.mrf.mxu0
        %v2561 = vadd.f32 %v2478, %v2560
        %v2562 = vpop.f32.mrf.mxu0
        %v2563 = vadd.f32 %v2480, %v2562
        %2564 = vdwg.mxu0
        %v2565 = vpack.c.bf16 %v2389, %v2383
        %v2566 = vpack.c.bf16 %v2391, %v2385
        %v2567 = vpack.c.bf16 %v2555, %v2549
        %v2568 = vpack.c.bf16 %v2557, %v2551
        %v2569 = vpack.c.bf16 %v2395, %v2395
        %v2570 = vpack.c.bf16 %v2397, %v2397
        %v2571 = vpack.c.bf16 %v2561, %v2561
        %v2572 = vpack.c.bf16 %v2563, %v2563
        %v2581 = vunpack.c.l.b16 %v2565
        %v2582 = vunpack.c.l.b16 %v2566
        %v2583 = vunpack.c.l.b16 %v2567
        %v2584 = vunpack.c.l.b16 %v2568
        %v2585 = vunpack.c.h.b16 %v2565
        %v2586 = vunpack.c.h.b16 %v2566
        %v2587 = vunpack.c.h.b16 %v2567
        %v2588 = vunpack.c.h.b16 %v2568
        %v2589 = vunpack.c.l.b16 %v2569
        %v2590 = vunpack.c.l.b16 %v2570
        %v2591 = vunpack.c.l.b16 %v2571
        %v2592 = vunpack.c.l.b16 %v2572
        %v2593 = vpack.c.b16 %v2582, %v2581
        %v2594 = vpack.c.b16 %v2584, %v2583
        %v2595 = vpack.c.b16 %v2586, %v2585
        %v2596 = vpack.c.b16 %v2588, %v2587
        %v2597 = vpack.c.b16 %v2590, %v2589
        %v2598 = vpack.c.b16 %v2592, %v2591
        %2605 = vst [vmem:[%s246] sm:$0xff] %v2593
        %2606 = vst [vmem:[%s246 + $0x8] sm:$0xff] %v2594
        %2607 = vst [vmem:[%s246 + $0x10] sm:$0xff] %v2595
        %2608 = vst [vmem:[%s246 + $0x18] sm:$0xff] %v2596
        %2609 = vst [vmem:[%s246 + $0x20] sm:$0xff] %v2597
        %2610 = vst [vmem:[%s246 + $0x28] sm:$0xff] %v2598
        %s2611 = sand.u32 %s118, 1
        %s2612 = sand.u32 %s118, 1
        %s2613 = smul.addr %s2612, 48
        %s2614 = scalar_lea.vmem [#allocation7], %s2613
        // Predicated region
        $region45: #{vector_similarity_forward.1} parent=31 // pred_check
          %p2615 = pneg %p128
        $region46: #{vector_similarity_forward.1} parent=31 // pred_check_branch
          %2617 = sbr.rel (%p2615) target = $region48
        $region47: #{vector_similarity_forward.1} parent=31 // pred_region
          %s2618 = smul.u32 3, %s23
          %s2619 = smul.u32 4, %s22
          %s2620 = ssub.s32 5, %s2619
          %p2621 = scmp.lt.s32.totalorder %s2620, 4
          %s2622 = scalar_select %p2621, %s2620, 4
          %s2623 = smul.u32 192, %s2622
          %p2624 = scmp.ne.s32.totalorder 0, %s2623
          %s2625 = smul.addr %s2618, 5
          %s2626 = sadd.s32 %s2619, %s2625
          %s2627 = smul.addr %s2626, 4
          %s2628 = scalar_lea.vmem %s3, %s2627
          %s2629 = smul.u32 %s2622, 4
          // Predicated region
          $region49: #{vector_similarity_forward.1} parent=47 // pred_check
            %p2630 = pneg %p2624
          $region50: #{vector_similarity_forward.1} parent=47 // pred_check_branch
            %2632 = sbr.rel (%p2630) target = $region52
          $region51: #{vector_similarity_forward.1} parent=47 // pred_region
            %p2633 = scmp.lt.u32.totalorder %s2629, 8
            %p2634 = pneg %p2633
            // Predicated region
            $region53: #{vector_similarity_forward.1} parent=51 // pred_check
              _
            $region54: #{vector_similarity_forward.1} parent=51 // pred_check_branch
              %2636 = sbr.rel (%p2633) target = $region56
            $region55: #{vector_similarity_forward.1} parent=51 // pred_region
              %s2656 = sand.u32 %s2629, 7
              %p2657 = scmp.eq.s32.totalorder %s2656, 0
              // Predicated region
              $region68: #{vector_similarity_forward.1} parent=55 // pred_check
                %p2658 = pneg %p2657
              $region69: #{vector_similarity_forward.1} parent=55 // pred_check_branch
                %2660 = sbr.rel (%p2658) target = $region71
              $region70: #{vector_similarity_forward.1} parent=55 // pred_region
                %s2661 = sshrl.u32 %s2629, 3
                %s2662 = sdiv.u32.pop %s2661, 24
                %s2663 = srem.u32.pop %s2661, 24
                // While loop
                $region72: #{vector_similarity_forward.1} parent=70 // loop_pre_header
                  _
                $region73: #{vector_similarity_forward.1} parent=70 // loop_header
                  %s2667 = sphi 0, %s2669
                  %p2668 = scmp.ge.s32.totalorder %s2667, %s2662
                  %s2672 = sphi 0, %s2821
                  %s2673 = sphi %s2614, %s2824
                  %s2674 = sphi %s2628, %s2825
                $region74: #{vector_similarity_forward.1} parent=70 // loop_header_branch
                  %2671 = sbr.rel (%p2668) target = $region78
                $region75: #{vector_similarity_forward.1} parent=70 // loop_body
                  %v2675 = vld [vmem:[%s2673] sm:$0xff]
                  %2676 = vst [vmem:[%s2674] sm:$0xff] %v2675
                  %v2677 = vld [vmem:[%s2673 + $0x8] sm:$0xff]
                  %2678 = vst [vmem:[%s2674 + $0x8] sm:$0xff] %v2677
                  %v2679 = vld [vmem:[%s2673 + $0x10] sm:$0xff]
                  %2680 = vst [vmem:[%s2674 + $0x10] sm:$0xff] %v2679
                  %v2681 = vld [vmem:[%s2673 + $0x18] sm:$0xff]
                  %2682 = vst [vmem:[%s2674 + $0x18] sm:$0xff] %v2681
                  %v2683 = vld [vmem:[%s2673 + $0x20] sm:$0xff]
                  %2684 = vst [vmem:[%s2674 + $0x20] sm:$0xff] %v2683
                  %v2685 = vld [vmem:[%s2673 + $0x28] sm:$0xff]
                  %2686 = vst [vmem:[%s2674 + $0x28] sm:$0xff] %v2685
                  %v2687 = vld [vmem:[%s2673 + $0x30] sm:$0xff]
                  %2688 = vst [vmem:[%s2674 + $0x30] sm:$0xff] %v2687
                  %v2689 = vld [vmem:[%s2673 + $0x38] sm:$0xff]
                  %2690 = vst [vmem:[%s2674 + $0x38] sm:$0xff] %v2689
                  %v2691 = vld [vmem:[%s2673 + $0x40] sm:$0xff]
                  %2692 = vst [vmem:[%s2674 + $0x40] sm:$0xff] %v2691
                  %v2693 = vld [vmem:[%s2673 + $0x48] sm:$0xff]
                  %2694 = vst [vmem:[%s2674 + $0x48] sm:$0xff] %v2693
                  %v2695 = vld [vmem:[%s2673 + $0x50] sm:$0xff]
                  %2696 = vst [vmem:[%s2674 + $0x50] sm:$0xff] %v2695
                  %v2697 = vld [vmem:[%s2673 + $0x58] sm:$0xff]
                  %2698 = vst [vmem:[%s2674 + $0x58] sm:$0xff] %v2697
                  %v2699 = vld [vmem:[%s2673 + $0x60] sm:$0xff]
                  %2700 = vst [vmem:[%s2674 + $0x60] sm:$0xff] %v2699
                  %v2701 = vld [vmem:[%s2673 + $0x68] sm:$0xff]
                  %2702 = vst [vmem:[%s2674 + $0x68] sm:$0xff] %v2701
                  %v2703 = vld [vmem:[%s2673 + $0x70] sm:$0xff]
                  %2704 = vst [vmem:[%s2674 + $0x70] sm:$0xff] %v2703
                  %v2705 = vld [vmem:[%s2673 + $0x78] sm:$0xff]
                  %2706 = vst [vmem:[%s2674 + $0x78] sm:$0xff] %v2705
                  %v2707 = vld [vmem:[%s2673 + $0x80] sm:$0xff]
                  %2708 = vst [vmem:[%s2674 + $0x80] sm:$0xff] %v2707
                  %v2709 = vld [vmem:[%s2673 + $0x88] sm:$0xff]
                  %2710 = vst [vmem:[%s2674 + $0x88] sm:$0xff] %v2709
                  %v2711 = vld [vmem:[%s2673 + $0x90] sm:$0xff]
                  %2712 = vst [vmem:[%s2674 + $0x90] sm:$0xff] %v2711
                  %v2713 = vld [vmem:[%s2673 + $0x98] sm:$0xff]
                  %2714 = vst [vmem:[%s2674 + $0x98] sm:$0xff] %v2713
                  %v2715 = vld [vmem:[%s2673 + $0xa0] sm:$0xff]
                  %2716 = vst [vmem:[%s2674 + $0xa0] sm:$0xff] %v2715
                  %v2717 = vld [vmem:[%s2673 + $0xa8] sm:$0xff]
                  %2718 = vst [vmem:[%s2674 + $0xa8] sm:$0xff] %v2717
                  %v2719 = vld [vmem:[%s2673 + $0xb0] sm:$0xff]
                  %2720 = vst [vmem:[%s2674 + $0xb0] sm:$0xff] %v2719
                  %v2721 = vld [vmem:[%s2673 + $0xb8] sm:$0xff]
                  %2722 = vst [vmem:[%s2674 + $0xb8] sm:$0xff] %v2721
                  %v2723 = vld [vmem:[%s2673 + $0x10] sm:$0xff]
                  %2724 = vst [vmem:[%s2674 + $0x14] sm:$0xff] %v2723
                  %v2725 = vld [vmem:[%s2673 + $0x18] sm:$0xff]
                  %2726 = vst [vmem:[%s2674 + $0x1c] sm:$0xff] %v2725
                  %v2727 = vld [vmem:[%s2673 + $0x20] sm:$0xff]
                  %2728 = vst [vmem:[%s2674 + $0x24] sm:$0xff] %v2727
                  %v2729 = vld [vmem:[%s2673 + $0x28] sm:$0xff]
                  %2730 = vst [vmem:[%s2674 + $0x2c] sm:$0xff] %v2729
                  %v2731 = vld [vmem:[%s2673 + $0x30] sm:$0xff]
                  %2732 = vst [vmem:[%s2674 + $0x34] sm:$0xff] %v2731
                  %v2733 = vld [vmem:[%s2673 + $0x38] sm:$0xff]
                  %2734 = vst [vmem:[%s2674 + $0x3c] sm:$0xff] %v2733
                  %v2735 = vld [vmem:[%s2673 + $0x40] sm:$0xff]
                  %2736 = vst [vmem:[%s2674 + $0x44] sm:$0xff] %v2735
                  %v2737 = vld [vmem:[%s2673 + $0x48] sm:$0xff]
                  %2738 = vst [vmem:[%s2674 + $0x4c] sm:$0xff] %v2737
                  %v2739 = vld [vmem:[%s2673 + $0x50] sm:$0xff]
                  %2740 = vst [vmem:[%s2674 + $0x54] sm:$0xff] %v2739
                  %v2741 = vld [vmem:[%s2673 + $0x58] sm:$0xff]
                  %2742 = vst [vmem:[%s2674 + $0x5c] sm:$0xff] %v2741
                  %v2743 = vld [vmem:[%s2673 + $0x60] sm:$0xff]
                  %2744 = vst [vmem:[%s2674 + $0x64] sm:$0xff] %v2743
                  %v2745 = vld [vmem:[%s2673 + $0x68] sm:$0xff]
                  %2746 = vst [vmem:[%s2674 + $0x6c] sm:$0xff] %v2745
                  %v2747 = vld [vmem:[%s2673 + $0x70] sm:$0xff]
                  %2748 = vst [vmem:[%s2674 + $0x74] sm:$0xff] %v2747
                  %v2749 = vld [vmem:[%s2673 + $0x78] sm:$0xff]
                  %2750 = vst [vmem:[%s2674 + $0x7c] sm:$0xff] %v2749
                  %v2751 = vld [vmem:[%s2673 + $0x80] sm:$0xff]
                  %2752 = vst [vmem:[%s2674 + $0x84] sm:$0xff] %v2751
                  %v2753 = vld [vmem:[%s2673 + $0x88] sm:$0xff]
                  %2754 = vst [vmem:[%s2674 + $0x8c] sm:$0xff] %v2753
                  %v2755 = vld [vmem:[%s2673 + $0x90] sm:$0xff]
                  %2756 = vst [vmem:[%s2674 + $0x94] sm:$0xff] %v2755
                  %v2757 = vld [vmem:[%s2673 + $0x98] sm:$0xff]
                  %2758 = vst [vmem:[%s2674 + $0x9c] sm:$0xff] %v2757
                  %v2759 = vld [vmem:[%s2673 + $0xa0] sm:$0xff]
                  %2760 = vst [vmem:[%s2674 + $0xa4] sm:$0xff] %v2759
                  %v2761 = vld [vmem:[%s2673 + $0xa8] sm:$0xff]
                  %2762 = vst [vmem:[%s2674 + $0xac] sm:$0xff] %v2761
                  %v2763 = vld [vmem:[%s2673 + $0xb0] sm:$0xff]
                  %2764 = vst [vmem:[%s2674 + $0xb4] sm:$0xff] %v2763
                  %v2765 = vld [vmem:[%s2673 + $0xb8] sm:$0xff]
                  %2766 = vst [vmem:[%s2674 + $0xbc] sm:$0xff] %v2765
                  %v2767 = vld [vmem:[%s2673 + $0xc0] sm:$0xff]
                  %2768 = vst [vmem:[%s2674 + $0xc4] sm:$0xff] %v2767
                  %v2769 = vld [vmem:[%s2673 + $0xc8] sm:$0xff]
                  %2770 = vst [vmem:[%s2674 + $0xcc] sm:$0xff] %v2769
                  %v2771 = vld [vmem:[%s2673 + $0x20] sm:$0xff]
                  %2772 = vst [vmem:[%s2674 + $0x28] sm:$0xff] %v2771
                  %v2773 = vld [vmem:[%s2673 + $0x28] sm:$0xff]
                  %2774 = vst [vmem:[%s2674 + $0x30] sm:$0xff] %v2773
                  %v2775 = vld [vmem:[%s2673 + $0x30] sm:$0xff]
                  %2776 = vst [vmem:[%s2674 + $0x38] sm:$0xff] %v2775
                  %v2777 = vld [vmem:[%s2673 + $0x38] sm:$0xff]
                  %2778 = vst [vmem:[%s2674 + $0x40] sm:$0xff] %v2777
                  %v2779 = vld [vmem:[%s2673 + $0x40] sm:$0xff]
                  %2780 = vst [vmem:[%s2674 + $0x48] sm:$0xff] %v2779
                  %v2781 = vld [vmem:[%s2673 + $0x48] sm:$0xff]
                  %2782 = vst [vmem:[%s2674 + $0x50] sm:$0xff] %v2781
                  %v2783 = vld [vmem:[%s2673 + $0x50] sm:$0xff]
                  %2784 = vst [vmem:[%s2674 + $0x58] sm:$0xff] %v2783
                  %v2785 = vld [vmem:[%s2673 + $0x58] sm:$0xff]
                  %2786 = vst [vmem:[%s2674 + $0x60] sm:$0xff] %v2785
                  %v2787 = vld [vmem:[%s2673 + $0x60] sm:$0xff]
                  %2788 = vst [vmem:[%s2674 + $0x68] sm:$0xff] %v2787
                  %v2789 = vld [vmem:[%s2673 + $0x68] sm:$0xff]
                  %2790 = vst [vmem:[%s2674 + $0x70] sm:$0xff] %v2789
                  %v2791 = vld [vmem:[%s2673 + $0x70] sm:$0xff]
                  %2792 = vst [vmem:[%s2674 + $0x78] sm:$0xff] %v2791
                  %v2793 = vld [vmem:[%s2673 + $0x78] sm:$0xff]
                  %2794 = vst [vmem:[%s2674 + $0x80] sm:$0xff] %v2793
                  %v2795 = vld [vmem:[%s2673 + $0x80] sm:$0xff]
                  %2796 = vst [vmem:[%s2674 + $0x88] sm:$0xff] %v2795
                  %v2797 = vld [vmem:[%s2673 + $0x88] sm:$0xff]
                  %2798 = vst [vmem:[%s2674 + $0x90] sm:$0xff] %v2797
                  %v2799 = vld [vmem:[%s2673 + $0x90] sm:$0xff]
                  %2800 = vst [vmem:[%s2674 + $0x98] sm:$0xff] %v2799
                  %v2801 = vld [vmem:[%s2673 + $0x98] sm:$0xff]
                  %2802 = vst [vmem:[%s2674 + $0xa0] sm:$0xff] %v2801
                  %v2803 = vld [vmem:[%s2673 + $0xa0] sm:$0xff]
                  %2804 = vst [vmem:[%s2674 + $0xa8] sm:$0xff] %v2803
                  %v2805 = vld [vmem:[%s2673 + $0xa8] sm:$0xff]
                  %2806 = vst [vmem:[%s2674 + $0xb0] sm:$0xff] %v2805
                  %v2807 = vld [vmem:[%s2673 + $0xb0] sm:$0xff]
                  %2808 = vst [vmem:[%s2674 + $0xb8] sm:$0xff] %v2807
                  %v2809 = vld [vmem:[%s2673 + $0xb8] sm:$0xff]
                  %2810 = vst [vmem:[%s2674 + $0xc0] sm:$0xff] %v2809
                  %v2811 = vld [vmem:[%s2673 + $0xc0] sm:$0xff]
                  %2812 = vst [vmem:[%s2674 + $0xc8] sm:$0xff] %v2811
                  %v2813 = vld [vmem:[%s2673 + $0xc8] sm:$0xff]
                  %2814 = vst [vmem:[%s2674 + $0xd0] sm:$0xff] %v2813
                  %v2815 = vld [vmem:[%s2673 + $0xd0] sm:$0xff]
                  %2816 = vst [vmem:[%s2674 + $0xd8] sm:$0xff] %v2815
                  %v2817 = vld [vmem:[%s2673 + $0xd8] sm:$0xff]
                  %2818 = vst [vmem:[%s2674 + $0xe0] sm:$0xff] %v2817
                  %s2819 = sadd.s32 1, %s2672
                  %p2820 = scmp.ge.s32.totalorder %s2819, %s2662
                  %s2821 = scalar_select %p2820, 0, %s2819
                  %s2822 = smul.u32 %s2821, 192
                  %s2823 = smul.u32 %s2821, 192
                  %s2824 = scalar_lea.vmem %s2614, %s2822 [#allocation7]
                  %s2825 = scalar_lea.vmem %s2628, %s2823
                $region76: #{vector_similarity_forward.1} parent=70 // loop_footer
                  %s2669 = sadd.s32 %s2667, 1
                $region77: #{vector_similarity_forward.1} parent=70 // loop_footer_branch
                  %2666 = sbr.rel target = $region73
                $region78: #{vector_similarity_forward.1} parent=70 // loop_exit
                  _
                %s2826 = sdiv.u32.pop %s2661, 24
                %s2827 = srem.u32.pop %s2661, 24
                %s2828 = smul.u32 %s2826, 24
                %s2829 = smul.u32 128, %s2828
                %s2830 = sshra.s32 %s2829, 4
                %s2831 = scalar_lea.vmem %s2614, %s2830 [#allocation7]
                %s2832 = smul.u32 128, %s2828
                %s2833 = sshra.s32 %s2832, 4
                %s2834 = scalar_lea.vmem %s2628, %s2833
                // While loop
                $region79: #{vector_similarity_forward.1} parent=70 // loop_pre_header
                  _
                $region80: #{vector_similarity_forward.1} parent=70 // loop_header
                  %s2838 = sphi 0, %s2840
                  %p2839 = scmp.ge.s32.totalorder %s2838, %s2827
                  %s2843 = sphi 0, %s2854
                  %s2844 = sphi %s2831, %s2857
                  %s2845 = sphi %s2834, %s2858
                $region81: #{vector_similarity_forward.1} parent=70 // loop_header_branch
                  %2842 = sbr.rel (%p2839) target = $region85
                $region82: #{vector_similarity_forward.1} parent=70 // loop_body
                  %v2846 = vld [vmem:[%s2844] sm:$0xff]
                  %2847 = vst [vmem:[%s2845] sm:$0xff] %v2846
                  %v2848 = vld [vmem:[%s2844 + $0x10] sm:$0xff]
                  %2849 = vst [vmem:[%s2845 + $0x14] sm:$0xff] %v2848
                  %v2850 = vld [vmem:[%s2844 + $0x20] sm:$0xff]
                  %2851 = vst [vmem:[%s2845 + $0x28] sm:$0xff] %v2850
                  %s2852 = sadd.s32 1, %s2843
                  %p2853 = scmp.ge.s32.totalorder %s2852, %s2827
                  %s2854 = scalar_select %p2853, 0, %s2852
                  %s2855 = smul.u32 %s2854, 8
                  %s2856 = smul.u32 %s2854, 8
                  %s2857 = scalar_lea.vmem %s2831, %s2855 [#allocation7]
                  %s2858 = scalar_lea.vmem %s2834, %s2856
                $region83: #{vector_similarity_forward.1} parent=70 // loop_footer
                  %s2840 = sadd.s32 %s2838, 1
                $region84: #{vector_similarity_forward.1} parent=70 // loop_footer_branch
                  %2837 = sbr.rel target = $region80
                $region85: #{vector_similarity_forward.1} parent=70 // loop_exit
                  _
              $region71: #{vector_similarity_forward.1} parent=55 // pred_fallthru
                _
              %p2859 = pneg %p2657
              // Predicated region
              $region86: #{vector_similarity_forward.1} parent=55 // pred_check
                _
              $region87: #{vector_similarity_forward.1} parent=55 // pred_check_branch
                %2861 = sbr.rel (%p2657) target = $region89
              $region88: #{vector_similarity_forward.1} parent=55 // pred_region
                %s2862 = sand.u32 %s2629, 7
                %s2863 = ssub.s32 %s2629, %s2862
                %s2864 = scalar_lea.vmem %s2614, %s2863 [#allocation7]
                %s2865 = ssub.s32 %s2629, %s2862
                %s2866 = scalar_lea.vmem %s2628, %s2865
                %s2867 = sshrl.u32 %s2629, 3
                %s2868 = sdiv.u32.pop %s2867, 24
                %s2869 = srem.u32.pop %s2867, 24
                // While loop
                $region90: #{vector_similarity_forward.1} parent=88 // loop_pre_header
                  _
                $region91: #{vector_similarity_forward.1} parent=88 // loop_header
                  %s2873 = sphi 0, %s2875
                  %p2874 = scmp.ge.s32.totalorder %s2873, %s2868
                  %s2878 = sphi 0, %s3027
                  %s2879 = sphi %s2614, %s3030
                  %s2880 = sphi %s2628, %s3031
                $region92: #{vector_similarity_forward.1} parent=88 // loop_header_branch
                  %2877 = sbr.rel (%p2874) target = $region96
                $region93: #{vector_similarity_forward.1} parent=88 // loop_body
                  %v2881 = vld [vmem:[%s2879] sm:$0xff]
                  %2882 = vst [vmem:[%s2880] sm:$0xff] %v2881
                  %v2883 = vld [vmem:[%s2879 + $0x8] sm:$0xff]
                  %2884 = vst [vmem:[%s2880 + $0x8] sm:$0xff] %v2883
                  %v2885 = vld [vmem:[%s2879 + $0x10] sm:$0xff]
                  %2886 = vst [vmem:[%s2880 + $0x10] sm:$0xff] %v2885
                  %v2887 = vld [vmem:[%s2879 + $0x18] sm:$0xff]
                  %2888 = vst [vmem:[%s2880 + $0x18] sm:$0xff] %v2887
                  %v2889 = vld [vmem:[%s2879 + $0x20] sm:$0xff]
                  %2890 = vst [vmem:[%s2880 + $0x20] sm:$0xff] %v2889
                  %v2891 = vld [vmem:[%s2879 + $0x28] sm:$0xff]
                  %2892 = vst [vmem:[%s2880 + $0x28] sm:$0xff] %v2891
                  %v2893 = vld [vmem:[%s2879 + $0x30] sm:$0xff]
                  %2894 = vst [vmem:[%s2880 + $0x30] sm:$0xff] %v2893
                  %v2895 = vld [vmem:[%s2879 + $0x38] sm:$0xff]
                  %2896 = vst [vmem:[%s2880 + $0x38] sm:$0xff] %v2895
                  %v2897 = vld [vmem:[%s2879 + $0x40] sm:$0xff]
                  %2898 = vst [vmem:[%s2880 + $0x40] sm:$0xff] %v2897
                  %v2899 = vld [vmem:[%s2879 + $0x48] sm:$0xff]
                  %2900 = vst [vmem:[%s2880 + $0x48] sm:$0xff] %v2899
                  %v2901 = vld [vmem:[%s2879 + $0x50] sm:$0xff]
                  %2902 = vst [vmem:[%s2880 + $0x50] sm:$0xff] %v2901
                  %v2903 = vld [vmem:[%s2879 + $0x58] sm:$0xff]
                  %2904 = vst [vmem:[%s2880 + $0x58] sm:$0xff] %v2903
                  %v2905 = vld [vmem:[%s2879 + $0x60] sm:$0xff]
                  %2906 = vst [vmem:[%s2880 + $0x60] sm:$0xff] %v2905
                  %v2907 = vld [vmem:[%s2879 + $0x68] sm:$0xff]
                  %2908 = vst [vmem:[%s2880 + $0x68] sm:$0xff] %v2907
                  %v2909 = vld [vmem:[%s2879 + $0x70] sm:$0xff]
                  %2910 = vst [vmem:[%s2880 + $0x70] sm:$0xff] %v2909
                  %v2911 = vld [vmem:[%s2879 + $0x78] sm:$0xff]
                  %2912 = vst [vmem:[%s2880 + $0x78] sm:$0xff] %v2911
                  %v2913 = vld [vmem:[%s2879 + $0x80] sm:$0xff]
                  %2914 = vst [vmem:[%s2880 + $0x80] sm:$0xff] %v2913
                  %v2915 = vld [vmem:[%s2879 + $0x88] sm:$0xff]
                  %2916 = vst [vmem:[%s2880 + $0x88] sm:$0xff] %v2915
                  %v2917 = vld [vmem:[%s2879 + $0x90] sm:$0xff]
                  %2918 = vst [vmem:[%s2880 + $0x90] sm:$0xff] %v2917
                  %v2919 = vld [vmem:[%s2879 + $0x98] sm:$0xff]
                  %2920 = vst [vmem:[%s2880 + $0x98] sm:$0xff] %v2919
                  %v2921 = vld [vmem:[%s2879 + $0xa0] sm:$0xff]
                  %2922 = vst [vmem:[%s2880 + $0xa0] sm:$0xff] %v2921
                  %v2923 = vld [vmem:[%s2879 + $0xa8] sm:$0xff]
                  %2924 = vst [vmem:[%s2880 + $0xa8] sm:$0xff] %v2923
                  %v2925 = vld [vmem:[%s2879 + $0xb0] sm:$0xff]
                  %2926 = vst [vmem:[%s2880 + $0xb0] sm:$0xff] %v2925
                  %v2927 = vld [vmem:[%s2879 + $0xb8] sm:$0xff]
                  %2928 = vst [vmem:[%s2880 + $0xb8] sm:$0xff] %v2927
                  %v2929 = vld [vmem:[%s2879 + $0x10] sm:$0xff]
                  %2930 = vst [vmem:[%s2880 + $0x14] sm:$0xff] %v2929
                  %v2931 = vld [vmem:[%s2879 + $0x18] sm:$0xff]
                  %2932 = vst [vmem:[%s2880 + $0x1c] sm:$0xff] %v2931
                  %v2933 = vld [vmem:[%s2879 + $0x20] sm:$0xff]
                  %2934 = vst [vmem:[%s2880 + $0x24] sm:$0xff] %v2933
                  %v2935 = vld [vmem:[%s2879 + $0x28] sm:$0xff]
                  %2936 = vst [vmem:[%s2880 + $0x2c] sm:$0xff] %v2935
                  %v2937 = vld [vmem:[%s2879 + $0x30] sm:$0xff]
                  %2938 = vst [vmem:[%s2880 + $0x34] sm:$0xff] %v2937
                  %v2939 = vld [vmem:[%s2879 + $0x38] sm:$0xff]
                  %2940 = vst [vmem:[%s2880 + $0x3c] sm:$0xff] %v2939
                  %v2941 = vld [vmem:[%s2879 + $0x40] sm:$0xff]
                  %2942 = vst [vmem:[%s2880 + $0x44] sm:$0xff] %v2941
                  %v2943 = vld [vmem:[%s2879 + $0x48] sm:$0xff]
                  %2944 = vst [vmem:[%s2880 + $0x4c] sm:$0xff] %v2943
                  %v2945 = vld [vmem:[%s2879 + $0x50] sm:$0xff]
                  %2946 = vst [vmem:[%s2880 + $0x54] sm:$0xff] %v2945
                  %v2947 = vld [vmem:[%s2879 + $0x58] sm:$0xff]
                  %2948 = vst [vmem:[%s2880 + $0x5c] sm:$0xff] %v2947
                  %v2949 = vld [vmem:[%s2879 + $0x60] sm:$0xff]
                  %2950 = vst [vmem:[%s2880 + $0x64] sm:$0xff] %v2949
                  %v2951 = vld [vmem:[%s2879 + $0x68] sm:$0xff]
                  %2952 = vst [vmem:[%s2880 + $0x6c] sm:$0xff] %v2951
                  %v2953 = vld [vmem:[%s2879 + $0x70] sm:$0xff]
                  %2954 = vst [vmem:[%s2880 + $0x74] sm:$0xff] %v2953
                  %v2955 = vld [vmem:[%s2879 + $0x78] sm:$0xff]
                  %2956 = vst [vmem:[%s2880 + $0x7c] sm:$0xff] %v2955
                  %v2957 = vld [vmem:[%s2879 + $0x80] sm:$0xff]
                  %2958 = vst [vmem:[%s2880 + $0x84] sm:$0xff] %v2957
                  %v2959 = vld [vmem:[%s2879 + $0x88] sm:$0xff]
                  %2960 = vst [vmem:[%s2880 + $0x8c] sm:$0xff] %v2959
                  %v2961 = vld [vmem:[%s2879 + $0x90] sm:$0xff]
                  %2962 = vst [vmem:[%s2880 + $0x94] sm:$0xff] %v2961
                  %v2963 = vld [vmem:[%s2879 + $0x98] sm:$0xff]
                  %2964 = vst [vmem:[%s2880 + $0x9c] sm:$0xff] %v2963
                  %v2965 = vld [vmem:[%s2879 + $0xa0] sm:$0xff]
                  %2966 = vst [vmem:[%s2880 + $0xa4] sm:$0xff] %v2965
                  %v2967 = vld [vmem:[%s2879 + $0xa8] sm:$0xff]
                  %2968 = vst [vmem:[%s2880 + $0xac] sm:$0xff] %v2967
                  %v2969 = vld [vmem:[%s2879 + $0xb0] sm:$0xff]
                  %2970 = vst [vmem:[%s2880 + $0xb4] sm:$0xff] %v2969
                  %v2971 = vld [vmem:[%s2879 + $0xb8] sm:$0xff]
                  %2972 = vst [vmem:[%s2880 + $0xbc] sm:$0xff] %v2971
                  %v2973 = vld [vmem:[%s2879 + $0xc0] sm:$0xff]
                  %2974 = vst [vmem:[%s2880 + $0xc4] sm:$0xff] %v2973
                  %v2975 = vld [vmem:[%s2879 + $0xc8] sm:$0xff]
                  %2976 = vst [vmem:[%s2880 + $0xcc] sm:$0xff] %v2975
                  %v2977 = vld [vmem:[%s2879 + $0x20] sm:$0xff]
                  %2978 = vst [vmem:[%s2880 + $0x28] sm:$0xff] %v2977
                  %v2979 = vld [vmem:[%s2879 + $0x28] sm:$0xff]
                  %2980 = vst [vmem:[%s2880 + $0x30] sm:$0xff] %v2979
                  %v2981 = vld [vmem:[%s2879 + $0x30] sm:$0xff]
                  %2982 = vst [vmem:[%s2880 + $0x38] sm:$0xff] %v2981
                  %v2983 = vld [vmem:[%s2879 + $0x38] sm:$0xff]
                  %2984 = vst [vmem:[%s2880 + $0x40] sm:$0xff] %v2983
                  %v2985 = vld [vmem:[%s2879 + $0x40] sm:$0xff]
                  %2986 = vst [vmem:[%s2880 + $0x48] sm:$0xff] %v2985
                  %v2987 = vld [vmem:[%s2879 + $0x48] sm:$0xff]
                  %2988 = vst [vmem:[%s2880 + $0x50] sm:$0xff] %v2987
                  %v2989 = vld [vmem:[%s2879 + $0x50] sm:$0xff]
                  %2990 = vst [vmem:[%s2880 + $0x58] sm:$0xff] %v2989
                  %v2991 = vld [vmem:[%s2879 + $0x58] sm:$0xff]
                  %2992 = vst [vmem:[%s2880 + $0x60] sm:$0xff] %v2991
                  %v2993 = vld [vmem:[%s2879 + $0x60] sm:$0xff]
                  %2994 = vst [vmem:[%s2880 + $0x68] sm:$0xff] %v2993
                  %v2995 = vld [vmem:[%s2879 + $0x68] sm:$0xff]
                  %2996 = vst [vmem:[%s2880 + $0x70] sm:$0xff] %v2995
                  %v2997 = vld [vmem:[%s2879 + $0x70] sm:$0xff]
                  %2998 = vst [vmem:[%s2880 + $0x78] sm:$0xff] %v2997
                  %v2999 = vld [vmem:[%s2879 + $0x78] sm:$0xff]
                  %3000 = vst [vmem:[%s2880 + $0x80] sm:$0xff] %v2999
                  %v3001 = vld [vmem:[%s2879 + $0x80] sm:$0xff]
                  %3002 = vst [vmem:[%s2880 + $0x88] sm:$0xff] %v3001
                  %v3003 = vld [vmem:[%s2879 + $0x88] sm:$0xff]
                  %3004 = vst [vmem:[%s2880 + $0x90] sm:$0xff] %v3003
                  %v3005 = vld [vmem:[%s2879 + $0x90] sm:$0xff]
                  %3006 = vst [vmem:[%s2880 + $0x98] sm:$0xff] %v3005
                  %v3007 = vld [vmem:[%s2879 + $0x98] sm:$0xff]
                  %3008 = vst [vmem:[%s2880 + $0xa0] sm:$0xff] %v3007
                  %v3009 = vld [vmem:[%s2879 + $0xa0] sm:$0xff]
                  %3010 = vst [vmem:[%s2880 + $0xa8] sm:$0xff] %v3009
                  %v3011 = vld [vmem:[%s2879 + $0xa8] sm:$0xff]
                  %3012 = vst [vmem:[%s2880 + $0xb0] sm:$0xff] %v3011
                  %v3013 = vld [vmem:[%s2879 + $0xb0] sm:$0xff]
                  %3014 = vst [vmem:[%s2880 + $0xb8] sm:$0xff] %v3013
                  %v3015 = vld [vmem:[%s2879 + $0xb8] sm:$0xff]
                  %3016 = vst [vmem:[%s2880 + $0xc0] sm:$0xff] %v3015
                  %v3017 = vld [vmem:[%s2879 + $0xc0] sm:$0xff]
                  %3018 = vst [vmem:[%s2880 + $0xc8] sm:$0xff] %v3017
                  %v3019 = vld [vmem:[%s2879 + $0xc8] sm:$0xff]
                  %3020 = vst [vmem:[%s2880 + $0xd0] sm:$0xff] %v3019
                  %v3021 = vld [vmem:[%s2879 + $0xd0] sm:$0xff]
                  %3022 = vst [vmem:[%s2880 + $0xd8] sm:$0xff] %v3021
                  %v3023 = vld [vmem:[%s2879 + $0xd8] sm:$0xff]
                  %3024 = vst [vmem:[%s2880 + $0xe0] sm:$0xff] %v3023
                  %s3025 = sadd.s32 1, %s2878
                  %p3026 = scmp.ge.s32.totalorder %s3025, %s2868
                  %s3027 = scalar_select %p3026, 0, %s3025
                  %s3028 = smul.u32 %s3027, 192
                  %s3029 = smul.u32 %s3027, 192
                  %s3030 = scalar_lea.vmem %s2614, %s3028 [#allocation7]
                  %s3031 = scalar_lea.vmem %s2628, %s3029
                $region94: #{vector_similarity_forward.1} parent=88 // loop_footer
                  %s2875 = sadd.s32 %s2873, 1
                $region95: #{vector_similarity_forward.1} parent=88 // loop_footer_branch
                  %2872 = sbr.rel target = $region91
                $region96: #{vector_similarity_forward.1} parent=88 // loop_exit
                  _
                %s3032 = sdiv.u32.pop %s2867, 24
                %s3033 = srem.u32.pop %s2867, 24
                %s3034 = smul.u32 %s3032, 24
                %s3035 = smul.u32 128, %s3034
                %s3036 = sshra.s32 %s3035, 4
                %s3037 = scalar_lea.vmem %s2614, %s3036 [#allocation7]
                %s3038 = smul.u32 128, %s3034
                %s3039 = sshra.s32 %s3038, 4
                %s3040 = scalar_lea.vmem %s2628, %s3039
                // While loop
                $region97: #{vector_similarity_forward.1} parent=88 // loop_pre_header
                  _
                $region98: #{vector_similarity_forward.1} parent=88 // loop_header
                  %s3044 = sphi 0, %s3046
                  %p3045 = scmp.ge.s32.totalorder %s3044, %s3033
                  %s3049 = sphi 0, %s3060
                  %s3050 = sphi %s3037, %s3063
                  %s3051 = sphi %s3040, %s3064
                $region99: #{vector_similarity_forward.1} parent=88 // loop_header_branch
                  %3048 = sbr.rel (%p3045) target = $region103
                $region100: #{vector_similarity_forward.1} parent=88 // loop_body
                  %v3052 = vld [vmem:[%s3050] sm:$0xff]
                  %3053 = vst [vmem:[%s3051] sm:$0xff] %v3052
                  %v3054 = vld [vmem:[%s3050 + $0x10] sm:$0xff]
                  %3055 = vst [vmem:[%s3051 + $0x14] sm:$0xff] %v3054
                  %v3056 = vld [vmem:[%s3050 + $0x20] sm:$0xff]
                  %3057 = vst [vmem:[%s3051 + $0x28] sm:$0xff] %v3056
                  %s3058 = sadd.s32 1, %s3049
                  %p3059 = scmp.ge.s32.totalorder %s3058, %s3033
                  %s3060 = scalar_select %p3059, 0, %s3058
                  %s3061 = smul.u32 %s3060, 8
                  %s3062 = smul.u32 %s3060, 8
                  %s3063 = scalar_lea.vmem %s3037, %s3061 [#allocation7]
                  %s3064 = scalar_lea.vmem %s3040, %s3062
                $region101: #{vector_similarity_forward.1} parent=88 // loop_footer
                  %s3046 = sadd.s32 %s3044, 1
                $region102: #{vector_similarity_forward.1} parent=88 // loop_footer_branch
                  %3043 = sbr.rel target = $region98
                $region103: #{vector_similarity_forward.1} parent=88 // loop_exit
                  _
                %s3065 = sshll.u32 1, %s2862
                %s3066 = ssub.s32 %s3065, 1
                loop: start=0, step=1, limit=1
                $region104: #{vector_similarity_forward.1} parent=88 // loop_pre_header
                  _
                $region105: #{vector_similarity_forward.1} parent=88 // loop_header
                  %s3068 = sphi 0, %s3072
                  %p3069 = scmp.ge.s32.totalorder %s3068, 1
                  %s3073 = sphi %s2864, %s2864
                  %s3074 = sphi %s2866, %s2866
                $region106: #{vector_similarity_forward.1} parent=88 // loop_header_branch
                  %3071 = sbr.rel (%p3069) target = $region110
                $region107: #{vector_similarity_forward.1} parent=88 // loop_body
                  %v3075 = vld [vmem:[%s3073] sm:%s3066]
                  %3076 = vst [vmem:[%s3074] sm:%s3066] %v3075
                  %v3077 = vld [vmem:[%s3073 + $0x10] sm:%s3066]
                  %3078 = vst [vmem:[%s3074 + $0x14] sm:%s3066] %v3077
                  %v3079 = vld [vmem:[%s3073 + $0x20] sm:%s3066]
                  %3080 = vst [vmem:[%s3074 + $0x28] sm:%s3066] %v3079
                $region108: #{vector_similarity_forward.1} parent=88 // loop_footer
                  %s3072 = sadd.s32 1, %s3068
                $region109: #{vector_similarity_forward.1} parent=88 // loop_footer_branch
                  %3067 = sbr.rel target = $region105
                $region110: #{vector_similarity_forward.1} parent=88 // loop_exit
                  _
              $region89: #{vector_similarity_forward.1} parent=55 // pred_fallthru
                _
            $region56: #{vector_similarity_forward.1} parent=51 // pred_fallthru
              _
            // Predicated region
            $region57: #{vector_similarity_forward.1} parent=51 // pred_check
              %p2637 = pneg %p2633
            $region58: #{vector_similarity_forward.1} parent=51 // pred_check_branch
              %2639 = sbr.rel (%p2637) target = $region60
            $region59: #{vector_similarity_forward.1} parent=51 // pred_region
              %s2640 = sshll.u32 1, %s2629
              %s2641 = ssub.s32 %s2640, 1
              loop: start=0, step=1, limit=1
              $region61: #{vector_similarity_forward.1} parent=59 // loop_pre_header
                _
              $region62: #{vector_similarity_forward.1} parent=59 // loop_header
                %s2643 = sphi 0, %s2647
                %p2644 = scmp.ge.s32.totalorder %s2643, 1
                %s2648 = sphi %s2614, %s2614
                %s2649 = sphi %s2628, %s2628
              $region63: #{vector_similarity_forward.1} parent=59 // loop_header_branch
                %2646 = sbr.rel (%p2644) target = $region67
              $region64: #{vector_similarity_forward.1} parent=59 // loop_body
                %v2650 = vld [vmem:[%s2648] sm:%s2641]
                %2651 = vst [vmem:[%s2649] sm:%s2641] %v2650
                %v2652 = vld [vmem:[%s2648 + $0x10] sm:%s2641]
                %2653 = vst [vmem:[%s2649 + $0x14] sm:%s2641] %v2652
                %v2654 = vld [vmem:[%s2648 + $0x20] sm:%s2641]
                %2655 = vst [vmem:[%s2649 + $0x28] sm:%s2641] %v2654
              $region65: #{vector_similarity_forward.1} parent=59 // loop_footer
                %s2647 = sadd.s32 1, %s2643
              $region66: #{vector_similarity_forward.1} parent=59 // loop_footer_branch
                %2642 = sbr.rel target = $region62
              $region67: #{vector_similarity_forward.1} parent=59 // loop_exit
                _
            $region60: #{vector_similarity_forward.1} parent=51 // pred_fallthru
              _
          $region52: #{vector_similarity_forward.1} parent=47 // pred_fallthru
            _
          %3081 = vnop
        $region48: #{vector_similarity_forward.1} parent=31 // pred_fallthru
          _
      $region32: #{vector_similarity_forward.1} parent=5 // pred_fallthru
        _
      %p3082 = scmp.le.s32.totalorder 2, %s13
      // Predicated region
      $region111: #{vector_similarity_forward.1} parent=5 // pred_check
        %p3083 = pneg %p3082
      $region112: #{vector_similarity_forward.1} parent=5 // pred_check_branch
        %3085 = sbr.rel (%p3083) target = $region114
      $region113: #{vector_similarity_forward.1} parent=5 // pred_region
        %s3086 = ssub.s32 %s13, 2
        // Predicated region
        $region115: #{vector_similarity_forward.1} parent=113 // pred_check
          %p3087 = pneg %p134
        $region116: #{vector_similarity_forward.1} parent=113 // pred_check_branch
          %3089 = sbr.rel (%p3087) target = $region118
        $region117: #{vector_similarity_forward.1} parent=113 // pred_region
          %s3090 = sand.u32 %s119, 1
          %s3091 = sand.u32 %s119, 1
          %s3092 = smul.addr %s3091, 48
          %s3093 = scalar_lea.vmem [#allocation7], %s3092
        $region118: #{vector_similarity_forward.1} parent=113 // pred_fallthru
          _
      $region114: #{vector_similarity_forward.1} parent=5 // pred_fallthru
        _
    $region6: #{vector_similarity_forward.1} parent=1 // loop_footer
      %s17 = sadd.s32 1, %s13
    $region7: #{vector_similarity_forward.1} parent=1 // loop_footer_branch
      %12 = sbr.rel target = $region3
    $region8: #{vector_similarity_forward.1} parent=1 // loop_exit
      _
    %3094 = vsyncpa [#allocation4], 1
    %s3095 = scalar_lea.sflag [#allocation4], 1
    %3096 = vsyncpa %s3095, 1
    %3097 = vsyncpa [#allocation6], 1
    %s3098 = scalar_lea.sflag [#allocation6], 1
    %3099 = vsyncpa %s3098, 1

</llo_original>
